<compile_context>
chip_gen: v6e
topology: v6e:2x2x1
jax: 0.10.0
libtpu: 0.0.40
codegen_flags: <defaults>
</compile_context>

<pallas_src>
import functools

import jax
import jax.numpy as jnp
from jax import lax
from jax.experimental import pallas as pl
from jax.experimental.pallas import tpu as pltpu

# ----------------------- "args" / env config (matches module __init__ shapes) -----------------
D_MODEL = 8          # obs dim == transformer d_model (Linear(8 + 5, 400) => state dim 8)
GOAL_DIM = 5         # env.extract_goal output dim (8 + 5 = 13)
NHEAD = 2
HEAD_DIM = D_MODEL // NHEAD
DIM_F = 32           # args.dim_f
LAYERS = 2           # args.layers
MAX_LEN = 16         # args.max_len
DIM_OUT = 4          # env.action_space.n
LN_EPS = 1e-5
NEG_PAD = -1e30      # additive mask for padded key positions (exp()s to exactly 0 in f32)
ATTN_SCALE = 1.0 / float(HEAD_DIM) ** 0.5


# ----------------------------------- fused Pallas kernel --------------------------------------
def _ln(x, w, b):
    mu = jnp.mean(x, axis=-1, keepdims=True)
    d = x - mu
    var = jnp.mean(d * d, axis=-1, keepdims=True)
    return d * lax.rsqrt(var + LN_EPS) * w + b


def _fused_forward_kernel(
        # scalars (SMEM)
        t1_ref, t2_ref,
        # activations / mask / embeddings (VMEM)
        obs_ref, mask_ref, pos_ref, act_ref,
        # goal-emb MLP (bf16 weights, f32 biases); first layer split state/goal
        gw1s_ref, gw1g_ref, gb1_ref, gw2_ref, gb2_ref, gw3_ref, gb3_ref,
        # stacked per-layer attention / FFN / LN params
        wqkv_ref, bqkv_ref, wo_ref, bo_ref, w1_ref, b1_ref, w2_ref, b2_ref,
        ln1w_ref, ln1b_ref, ln2w_ref, ln2b_ref,
        # output projection
        ow_ref, ob_ref,
        # output (B*LP, DIM_OUT), batch-major
        o_ref,
        *, batch, t_len, lp):
    f32 = jnp.float32
    bf16 = jnp.bfloat16

    # ---- goal embedding: MLP(concat(obs[i, t1], extract_goal(obs[i, t2]))) -------------------
    # (new_X[i, t1] == obs[i, t1] and new_X[i, t2+1] == obs[i, t2], so read obs directly.)
    # TODO(synk): env.extract_goal is environment-specific; here it is the first GOAL_DIM dims
    # (implemented by zero-padding the goal-part weight rows GOAL_DIM..D_MODEL-1 at init).
    st_rows = jnp.concatenate(
        [obs_ref[pl.ds(i * t_len + t1_ref[i], 1), :] for i in range(batch)], axis=0)  # (B, D)
    gl_rows = jnp.concatenate(
        [obs_ref[pl.ds(i * t_len + t2_ref[i], 1), :] for i in range(batch)], axis=0)  # (B, D)
    h = (jnp.dot(st_rows.astype(bf16), gw1s_ref[...], preferred_element_type=f32)
         + jnp.dot(gl_rows.astype(bf16), gw1g_ref[...], preferred_element_type=f32)
         + gb1_ref[...])
    h = jnp.maximum(h, 0.0)
    h = jnp.dot(h.astype(bf16), gw2_ref[...], preferred_element_type=f32) + gb2_ref[...]
    h = jnp.maximum(h, 0.0)
    g = jnp.dot(h.astype(bf16), gw3_ref[...], preferred_element_type=f32) + gb3_ref[...]  # (B, D)

    # ---- fused add_act_tokens + goal splice, padded to LP rows per batch ----------------------
    pos_all = pos_ref[...] + act_ref[...]                                     # (MAX_LEN, D)
    pos_full = jnp.concatenate([jnp.zeros((1, D_MODEL), f32), pos_all], axis=0)
    if lp <= MAX_LEN + 1:
        pos_shift = pos_full[:lp]                                             # row j = pos[j-1]+act
    else:
        pos_shift = jnp.concatenate(
            [pos_full, jnp.zeros((lp - MAX_LEN - 1, D_MODEL), f32)], axis=0)

    j = lax.broadcasted_iota(jnp.int32, (lp, 1), 0)
    x_parts, mask_parts = [], []
    for i in range(batch):
        t1i = t1_ref[i]
        t2i = t2_ref[i]
        obs_i = obs_ref[pl.ds(i * t_len, t_len), :]                           # (T, D), static slice
        lo = jnp.concatenate(                                                 # row j = obs[j]
            [obs_i, jnp.zeros((lp - t_len, D_MODEL), f32)], axis=0)           # (LP, D)
        hi = jnp.concatenate(                                                 # row j = obs[j-1]
            [jnp.zeros((1, D_MODEL), f32), lo[:lp - 1]], axis=0)
        xi = jnp.where(j <= t1i, lo, jnp.where(j <= t2i, pos_shift, hi))
        xi = jnp.where(j == t2i + 1, g[i:i + 1, :], xi)                       # goal splice
        x_parts.append(xi)
        mask_parts.append(mask_ref[pl.ds(i * lp, lp), :])                     # (LP, LP) additive
    x = jnp.concatenate(x_parts, axis=0)                                      # (B*LP, D)

    # ---- transformer encoder layers (post-norm, ReLU FFN), per-batch attention ----------------
    for layer in range(LAYERS):                                               # LAYERS=2, unrolled
        # one fused q/k/v projection per layer; 1/sqrt(head_dim) folded into Wq/bq at init
        qkv = (jnp.dot(x.astype(bf16), wqkv_ref[layer], preferred_element_type=f32)
               + bqkv_ref[layer])                                             # (B*LP, 3*D)
        attn_parts = []
        for i in range(batch):
            m_i = mask_parts[i]
            heads = []
            for hh in range(NHEAD):
                qo = hh * HEAD_DIM
                ko = D_MODEL + hh * HEAD_DIM
                vo = 2 * D_MODEL + hh * HEAD_DIM
                q_ih = qkv[i * lp:(i + 1) * lp, qo:qo + HEAD_DIM]             # (LP, HD)
                k_ih = qkv[i * lp:(i + 1) * lp, ko:ko + HEAD_DIM]
                v_ih = qkv[i * lp:(i + 1) * lp, vo:vo + HEAD_DIM]
                # q @ k^T without materializing a transposed copy of k
                s = lax.dot_general(q_ih, k_ih, (((1,), (1,)), ((), ())),
                                    preferred_element_type=f32) + m_i         # (LP, LP)
                s = s - jnp.max(s, axis=-1, keepdims=True)
                p = jnp.exp(s)
                p = p * pl.reciprocal(jnp.sum(p, axis=-1, keepdims=True), approx=True)
                heads.append(jnp.dot(p, v_ih, preferred_element_type=f32))    # (LP, HD)
            head_cat = jnp.concatenate(heads, axis=1)                         # (LP, D) lane concat
            attn_parts.append(jnp.dot(head_cat.astype(bf16), wo_ref[layer],
                                      preferred_element_type=f32))
        attn = jnp.concatenate(attn_parts, axis=0) + bo_ref[layer]            # (B*LP, D)
        x = _ln(x + attn, ln1w_ref[layer], ln1b_ref[layer])                   # norm1(x + sa(x))
        ff = jnp.maximum(jnp.dot(x.astype(bf16), w1_ref[layer], preferred_element_type=f32)
                         + b1_ref[layer], 0.0)
        ff = jnp.dot(ff.astype(bf16), w2_ref[layer], preferred_element_type=f32) + b2_ref[layer]
        x = _ln(x + ff, ln2w_ref[layer], ln2b_ref[layer])                     # norm2(x + ff(x))

    # ---- output projection, single contiguous store (batch-major) ----------------------------
    logits = jnp.dot(x.astype(bf16), ow_ref[...], preferred_element_type=f32) + ob_ref[...]
    o_ref[...] = logits                                                       # (B*LP, DIM_OUT)


# ----------------------------------- kernel wrapper -------------------------------------------
_VMEM = pl.BlockSpec(memory_space=pltpu.MemorySpace.VMEM)
_SMEM = pl.BlockSpec(memory_space=pltpu.MemorySpace.SMEM)


def fused_forward_pallas(params, obs_flat, mask_flat, t1, t2, *, batch, t_len, lp):
    lpar = params["layers"]
    args = (
        t1.astype(jnp.int32), t2.astype(jnp.int32),
        obs_flat, mask_flat, params["pos_embd"], params["act_token"],
        params["gw1_state"], params["gw1_goal"], params["gb1"],
        params["gw2"], params["gb2"], params["gw3"], params["gb3"],
        lpar["wqkv"], lpar["bqkv"], lpar["wo"], lpar["bo"],
        lpar["w1"], lpar["b1"], lpar["w2"], lpar["b2"],
        lpar["ln1w"], lpar["ln1b"], lpar["ln2w"], lpar["ln2b"],
        params["out_w"], params["out_b"],
    )
    return pl.pallas_call(
        functools.partial(_fused_forward_kernel, batch=batch, t_len=t_len, lp=lp),
        out_shape=jax.ShapeDtypeStruct((batch * lp, DIM_OUT), jnp.float32),
        in_specs=[_SMEM, _SMEM] + [_VMEM] * (len(args) - 2),
        out_specs=_VMEM,
        compiler_params=pltpu.CompilerParams(vmem_limit_bytes=32 * 1024 * 1024),
        # TODO(synk): on v7x, a grid=(B,) with dimension_semantics=("parallel",) would shard the
        # per-batch work across the two TensorCores; kept grid-less for v5e/v6e (1 TC).
    )(*args)


# ----------------------------------- plain-JAX glue -------------------------------------------
@jax.jit
def forward(params, obs, mask, t1, t2):
    """obs: (B, T, D_MODEL) f32; mask: (B, T+1, T+1) additive f32 attn mask (shared across heads,
    matching the reference's per-head einops.repeat); also accepts the reference
    (B*NHEAD, T+1, T+1) layout.  t1/t2: (B,) int32 with 0 <= t1 <= t2 <= T-1.
    Returns (T+1, B, DIM_OUT), matching the PyTorch module's output layout."""
    b, t, d = obs.shape
    seq = t + 1
    lp = ((seq + 7) // 8) * 8                    # pad time axis to a sublane multiple
    if mask.shape[0] == b * NHEAD:               # reference '(b repeat)' layout -> one per batch
        mask = mask[::NHEAD]

    pad = lp - seq
    mask_p = jnp.pad(mask.astype(jnp.float32), ((0, 0), (0, pad), (0, pad)),
                     constant_values=NEG_PAD)    # padded keys masked out; tiny (KB-scale) op
    mask_flat = mask_p.reshape(b * lp, lp)
    obs_flat = obs.astype(jnp.float32).reshape(b * t, d)

    out = fused_forward_pallas(params, obs_flat, mask_flat, t1, t2, batch=b, t_len=t, lp=lp)
    out = out.reshape(b, lp, DIM_OUT)[:, :seq]   # drop time padding
    return jnp.transpose(out, (1, 0, 2))         # (T+1, B, DIM_OUT), trivial tiny transpose


# ----------------------------------- parameter init -------------------------------------------
def init_params(key):
    keys = iter(jax.random.split(key, 64))

    def rnd(shape, scale=0.05, dtype=jnp.float32):
        return (scale * jax.random.normal(next(keys), shape)).astype(dtype)

    # All Linear weights are (in, out) == torch weight.T.
    # goal_emb first layer split into state / goal parts; the goal part is zero-padded from
    # GOAL_DIM to D_MODEL input rows so the kernel needs neither a 13-lane concat nor a :5 slice.
    gw1_goal = jnp.zeros((D_MODEL, 400), jnp.float32).at[:GOAL_DIM].set(rnd((GOAL_DIM, 400)))

    # Fused in-projection, columns ordered [q_h0 q_h1 | k_h0 k_h1 | v_h0 v_h1]; the attention
    # 1/sqrt(head_dim) scale is folded into the q slice of the weight and bias.
    wq = rnd((LAYERS, D_MODEL, D_MODEL)) * ATTN_SCALE
    wk = rnd((LAYERS, D_MODEL, D_MODEL))
    wv = rnd((LAYERS, D_MODEL, D_MODEL))
    bq = rnd((LAYERS, 1, D_MODEL)) * ATTN_SCALE
    bk = rnd((LAYERS, 1, D_MODEL))
    bv = rnd((LAYERS, 1, D_MODEL))
    wqkv = jnp.concatenate([wq, wk, wv], axis=2).astype(jnp.bfloat16)   # (L, D, 3D)
    bqkv = jnp.concatenate([bq, bk, bv], axis=2)                        # (L, 1, 3D) f32

    params = {
        "act_token": rnd((1, D_MODEL)),                 # nn.Embedding(1, d_model)
        "pos_embd": rnd((MAX_LEN, D_MODEL)),            # nn.Embedding(max_len, d_model)
        # goal_emb: Linear(13,400) -> ReLU -> Linear(400,300) -> ReLU -> Linear(300,d_model)
        # bf16 weights (halves the only nontrivial HBM transfer), f32 biases / accumulation.
        "gw1_state": rnd((D_MODEL, 400), dtype=jnp.bfloat16),
        "gw1_goal": gw1_goal.astype(jnp.bfloat16),
        "gb1": rnd((1, 400)),
        "gw2": rnd((400, 300), dtype=jnp.bfloat16), "gb2": rnd((1, 300)),
        "gw3": rnd((300, D_MODEL), dtype=jnp.bfloat16), "gb3": rnd((1, D_MODEL)),
        # out: Linear(d_model, action_dim)
        "out_w": rnd((D_MODEL, DIM_OUT), dtype=jnp.bfloat16), "out_b": rnd((1, DIM_OUT)),
        "layers": {
            "wqkv": wqkv, "bqkv": bqkv,
            "wo": rnd((LAYERS, D_MODEL, D_MODEL), dtype=jnp.bfloat16),
            "bo": rnd((LAYERS, 1, D_MODEL)),
            "w1": rnd((LAYERS, D_MODEL, DIM_F), dtype=jnp.bfloat16), "b1": rnd((LAYERS, 1, DIM_F)),
            "w2": rnd((LAYERS, DIM_F, D_MODEL), dtype=jnp.bfloat16), "b2": rnd((LAYERS, 1, D_MODEL)),
            "ln1w": jnp.ones((LAYERS, 1, D_MODEL), jnp.float32),
            "ln1b": jnp.zeros((LAYERS, 1, D_MODEL), jnp.float32),
            "ln2w": jnp.ones((LAYERS, 1, D_MODEL), jnp.float32),
            "ln2b": jnp.zeros((LAYERS, 1, D_MODEL), jnp.float32),
        },
    }
    return params


# ----------------------------------- demo ------------------------------------------------------
if __name__ == "__main__":
    key = jax.random.PRNGKey(0)
    pkey, xkey = jax.random.split(key)
    params = init_params(pkey)

    B, T = 2, 8
    L = T + 1
    obs = jax.random.normal(xkey, (B, T, D_MODEL), dtype=jnp.float32)
    t1 = jnp.array([3, 2], dtype=jnp.int32)
    t2 = jnp.array([6, 5], dtype=jnp.int32)        # must satisfy t2 <= T - 1

    # additive float attention mask, one per batch element (shared across heads)
    key_ok = jnp.arange(L)[None, :] <= (t2 + 1)[:, None]                        # (B, L)
    mask = jnp.broadcast_to(jnp.where(key_ok[:, None, :], 0.0, -1e9),
                            (B, L, L)).astype(jnp.float32)

    out = forward(params, obs, mask, t1, t2)
    out = jax.block_until_ready(out)

    assert out.shape == (L, B, DIM_OUT), out.shape
    assert bool(jnp.all(jnp.isfinite(out)))
    print("KERNEL_OK")
</pallas_src>

<mosaic_0001>
module attributes {stable_mosaic.version = 11 : i64} {
  func.func @_fused_forward_kernel(%arg0: memref<2xi32, #tpu.memory_space<smem>>, %arg1: memref<2xi32, #tpu.memory_space<smem>>, %arg2: memref<16x8xf32, #tpu.memory_space<vmem>>, %arg3: memref<32x16xf32, #tpu.memory_space<vmem>>, %arg4: memref<16x8xf32, #tpu.memory_space<vmem>>, %arg5: memref<1x8xf32, #tpu.memory_space<vmem>>, %arg6: memref<8x400xbf16, #tpu.memory_space<vmem>>, %arg7: memref<8x400xbf16, #tpu.memory_space<vmem>>, %arg8: memref<1x400xf32, #tpu.memory_space<vmem>>, %arg9: memref<400x300xbf16, #tpu.memory_space<vmem>>, %arg10: memref<1x300xf32, #tpu.memory_space<vmem>>, %arg11: memref<300x8xbf16, #tpu.memory_space<vmem>>, %arg12: memref<1x8xf32, #tpu.memory_space<vmem>>, %arg13: memref<2x8x24xbf16, #tpu.memory_space<vmem>>, %arg14: memref<2x1x24xf32, #tpu.memory_space<vmem>>, %arg15: memref<2x8x8xbf16, #tpu.memory_space<vmem>>, %arg16: memref<2x1x8xf32, #tpu.memory_space<vmem>>, %arg17: memref<2x8x32xbf16, #tpu.memory_space<vmem>>, %arg18: memref<2x1x32xf32, #tpu.memory_space<vmem>>, %arg19: memref<2x32x8xbf16, #tpu.memory_space<vmem>>, %arg20: memref<2x1x8xf32, #tpu.memory_space<vmem>>, %arg21: memref<2x1x8xf32, #tpu.memory_space<vmem>>, %arg22: memref<2x1x8xf32, #tpu.memory_space<vmem>>, %arg23: memref<2x1x8xf32, #tpu.memory_space<vmem>>, %arg24: memref<2x1x8xf32, #tpu.memory_space<vmem>>, %arg25: memref<8x4xbf16, #tpu.memory_space<vmem>>, %arg26: memref<1x4xf32, #tpu.memory_space<vmem>>, %arg27: memref<32x4xf32, #tpu.memory_space<vmem>>) attributes {dimension_semantics = [], scalar_prefetch = 0 : i64, scratch_operands = 0 : i64, tpu.core_type = #tpu.core_type<tc>} {
    %c0 = arith.constant 0 : index
    %0 = memref.load %arg0[%c0] : memref<2xi32, #tpu.memory_space<smem>>
    %c0_i32 = arith.constant 0 : i32
    %1 = arith.addi %c0_i32, %0 : i32
    %2 = arith.index_cast %1 : i32 to index
    %c0_0 = arith.constant 0 : index
    %3 = vector.load %arg2[%2, %c0_0] : memref<16x8xf32, #tpu.memory_space<vmem>>, vector<1x8xf32>
    %c1 = arith.constant 1 : index
    %4 = memref.load %arg0[%c1] : memref<2xi32, #tpu.memory_space<smem>>
    %c8_i32 = arith.constant 8 : i32
    %5 = arith.addi %c8_i32, %4 : i32
    %6 = arith.index_cast %5 : i32 to index
    %c0_1 = arith.constant 0 : index
    %7 = vector.load %arg2[%6, %c0_1] : memref<16x8xf32, #tpu.memory_space<vmem>>, vector<1x8xf32>
    %8 = tpu.concatenate %3, %7 in 0 : vector<1x8xf32>, vector<1x8xf32> -> vector<2x8xf32>
    %c0_2 = arith.constant 0 : index
    %9 = memref.load %arg1[%c0_2] : memref<2xi32, #tpu.memory_space<smem>>
    %c0_i32_3 = arith.constant 0 : i32
    %10 = arith.addi %c0_i32_3, %9 : i32
    %11 = arith.index_cast %10 : i32 to index
    %c0_4 = arith.constant 0 : index
    %12 = vector.load %arg2[%11, %c0_4] : memref<16x8xf32, #tpu.memory_space<vmem>>, vector<1x8xf32>
    %c1_5 = arith.constant 1 : index
    %13 = memref.load %arg1[%c1_5] : memref<2xi32, #tpu.memory_space<smem>>
    %c8_i32_6 = arith.constant 8 : i32
    %14 = arith.addi %c8_i32_6, %13 : i32
    %15 = arith.index_cast %14 : i32 to index
    %c0_7 = arith.constant 0 : index
    %16 = vector.load %arg2[%15, %c0_7] : memref<16x8xf32, #tpu.memory_space<vmem>>, vector<1x8xf32>
    %17 = tpu.concatenate %12, %16 in 0 : vector<1x8xf32>, vector<1x8xf32> -> vector<2x8xf32>
    %18 = arith.truncf %8 : vector<2x8xf32> to vector<2x8xbf16>
    %c0_8 = arith.constant 0 : index
    %c0_9 = arith.constant 0 : index
    %19 = vector.load %arg6[%c0_8, %c0_9] : memref<8x400xbf16, #tpu.memory_space<vmem>>, vector<8x400xbf16>
    %cst = arith.constant dense<0.000000e+00> : vector<2x400xf32>
    %20 = tpu.matmul %18, %19, %cst {dimension_numbers = #tpu.dot_dimension_numbers<[1], [0], [0], [1], [0, 0, 1, 1], [], []>} : vector<2x8xbf16>, vector<8x400xbf16>, vector<2x400xf32> -> vector<2x400xf32>
    %21 = arith.truncf %17 : vector<2x8xf32> to vector<2x8xbf16>
    %c0_10 = arith.constant 0 : index
    %c0_11 = arith.constant 0 : index
    %22 = vector.load %arg7[%c0_10, %c0_11] : memref<8x400xbf16, #tpu.memory_space<vmem>>, vector<8x400xbf16>
    %cst_12 = arith.constant dense<0.000000e+00> : vector<2x400xf32>
    %23 = tpu.matmul %21, %22, %cst_12 {dimension_numbers = #tpu.dot_dimension_numbers<[1], [0], [0], [1], [0, 0, 1, 1], [], []>} : vector<2x8xbf16>, vector<8x400xbf16>, vector<2x400xf32> -> vector<2x400xf32>
    %24 = arith.addf %20, %23 : vector<2x400xf32>
    %c0_13 = arith.constant 0 : index
    %c0_14 = arith.constant 0 : index
    %25 = vector.load %arg8[%c0_13, %c0_14] : memref<1x400xf32, #tpu.memory_space<vmem>>, vector<1x400xf32>
    %26 = vector.broadcast %25 : vector<1x400xf32> to vector<2x400xf32>
    %27 = arith.addf %24, %26 : vector<2x400xf32>
    %cst_15 = arith.constant 0.000000e+00 : f32
    %28 = vector.broadcast %cst_15 : f32 to vector<2x400xf32>
    %29 = arith.maximumf %27, %28 : vector<2x400xf32>
    %30 = arith.truncf %29 : vector<2x400xf32> to vector<2x400xbf16>
    %c0_16 = arith.constant 0 : index
    %c0_17 = arith.constant 0 : index
    %31 = vector.load %arg9[%c0_16, %c0_17] : memref<400x300xbf16, #tpu.memory_space<vmem>>, vector<400x300xbf16>
    %cst_18 = arith.constant dense<0.000000e+00> : vector<2x300xf32>
    %32 = tpu.matmul %30, %31, %cst_18 {dimension_numbers = #tpu.dot_dimension_numbers<[1], [0], [0], [1], [0, 0, 1, 1], [], []>} : vector<2x400xbf16>, vector<400x300xbf16>, vector<2x300xf32> -> vector<2x300xf32>
    %c0_19 = arith.constant 0 : index
    %c0_20 = arith.constant 0 : index
    %33 = vector.load %arg10[%c0_19, %c0_20] : memref<1x300xf32, #tpu.memory_space<vmem>>, vector<1x300xf32>
    %34 = vector.broadcast %33 : vector<1x300xf32> to vector<2x300xf32>
    %35 = arith.addf %32, %34 : vector<2x300xf32>
    %cst_21 = arith.constant 0.000000e+00 : f32
    %36 = vector.broadcast %cst_21 : f32 to vector<2x300xf32>
    %37 = arith.maximumf %35, %36 : vector<2x300xf32>
    %38 = arith.truncf %37 : vector<2x300xf32> to vector<2x300xbf16>
    %c0_22 = arith.constant 0 : index
    %c0_23 = arith.constant 0 : index
    %39 = vector.load %arg11[%c0_22, %c0_23] : memref<300x8xbf16, #tpu.memory_space<vmem>>, vector<300x8xbf16>
    %cst_24 = arith.constant dense<0.000000e+00> : vector<2x8xf32>
    %40 = tpu.matmul %38, %39, %cst_24 {dimension_numbers = #tpu.dot_dimension_numbers<[1], [0], [0], [1], [0, 0, 1, 1], [], []>} : vector<2x300xbf16>, vector<300x8xbf16>, vector<2x8xf32> -> vector<2x8xf32>
    %c0_25 = arith.constant 0 : index
    %c0_26 = arith.constant 0 : index
    %41 = vector.load %arg12[%c0_25, %c0_26] : memref<1x8xf32, #tpu.memory_space<vmem>>, vector<1x8xf32>
    %42 = vector.broadcast %41 : vector<1x8xf32> to vector<2x8xf32>
    %43 = arith.addf %40, %42 : vector<2x8xf32>
    %c0_27 = arith.constant 0 : index
    %c0_28 = arith.constant 0 : index
    %44 = vector.load %arg4[%c0_27, %c0_28] : memref<16x8xf32, #tpu.memory_space<vmem>>, vector<16x8xf32>
    %c0_29 = arith.constant 0 : index
    %c0_30 = arith.constant 0 : index
    %45 = vector.load %arg5[%c0_29, %c0_30] : memref<1x8xf32, #tpu.memory_space<vmem>>, vector<1x8xf32>
    %46 = vector.broadcast %45 : vector<1x8xf32> to vector<16x8xf32>
    %47 = arith.addf %44, %46 : vector<16x8xf32>
    %cst_31 = arith.constant 0.000000e+00 : f32
    %48 = vector.broadcast %cst_31 : f32 to vector<1x8xf32>
    %49 = tpu.concatenate %48, %47 in 0 : vector<1x8xf32>, vector<16x8xf32> -> vector<17x8xf32>
    %50 = vector.extract_strided_slice %49 {offsets = [0, 0], sizes = [16, 8], strides = [1, 1]} : vector<17x8xf32> to vector<16x8xf32>
    %51 = tpu.iota {dimensions = array<i32: 0>} : vector<16x1xi32>
    %c0_32 = arith.constant 0 : index
    %52 = memref.load %arg0[%c0_32] : memref<2xi32, #tpu.memory_space<smem>>
    %c0_33 = arith.constant 0 : index
    %53 = memref.load %arg1[%c0_33] : memref<2xi32, #tpu.memory_space<smem>>
    %c0_34 = arith.constant 0 : index
    %c0_35 = arith.constant 0 : index
    %54 = vector.load %arg2[%c0_34, %c0_35] : memref<16x8xf32, #tpu.memory_space<vmem>>, vector<8x8xf32>
    %cst_36 = arith.constant 0.000000e+00 : f32
    %55 = vector.broadcast %cst_36 : f32 to vector<8x8xf32>
    %56 = tpu.concatenate %54, %55 in 0 : vector<8x8xf32>, vector<8x8xf32> -> vector<16x8xf32>
    %cst_37 = arith.constant 0.000000e+00 : f32
    %57 = vector.broadcast %cst_37 : f32 to vector<1x8xf32>
    %58 = vector.extract_strided_slice %56 {offsets = [0, 0], sizes = [15, 8], strides = [1, 1]} : vector<16x8xf32> to vector<15x8xf32>
    %59 = tpu.concatenate %57, %58 in 0 : vector<1x8xf32>, vector<15x8xf32> -> vector<16x8xf32>
    %60 = vector.broadcast %52 : i32 to vector<16x1xi32>
    %61 = arith.cmpi sle, %51, %60 : vector<16x1xi32>
    %62 = vector.broadcast %53 : i32 to vector<16x1xi32>
    %63 = arith.cmpi sle, %51, %62 : vector<16x1xi32>
    %64 = vector.shape_cast %63 : vector<16x1xi1> to vector<16x1xi1>
    %65 = vector.broadcast %64 : vector<16x1xi1> to vector<16x8xi1>
    %66 = arith.select %65, %50, %59 : vector<16x8xi1>, vector<16x8xf32>
    %67 = vector.shape_cast %61 : vector<16x1xi1> to vector<16x1xi1>
    %68 = vector.broadcast %67 : vector<16x1xi1> to vector<16x8xi1>
    %69 = arith.select %68, %56, %66 : vector<16x8xi1>, vector<16x8xf32>
    %c1_i32 = arith.constant 1 : i32
    %70 = arith.addi %53, %c1_i32 : i32
    %71 = vector.broadcast %70 : i32 to vector<16x1xi32>
    %72 = arith.cmpi eq, %51, %71 : vector<16x1xi32>
    %73 = vector.extract_strided_slice %43 {offsets = [0, 0], sizes = [1, 8], strides = [1, 1]} : vector<2x8xf32> to vector<1x8xf32>
    %74 = vector.shape_cast %72 : vector<16x1xi1> to vector<16x1xi1>
    %75 = vector.broadcast %74 : vector<16x1xi1> to vector<16x8xi1>
    %76 = vector.shape_cast %73 : vector<1x8xf32> to vector<1x8xf32>
    %77 = vector.broadcast %76 : vector<1x8xf32> to vector<16x8xf32>
    %78 = arith.select %75, %77, %69 : vector<16x8xi1>, vector<16x8xf32>
    %c0_38 = arith.constant 0 : index
    %c0_39 = arith.constant 0 : index
    %79 = vector.load %arg3[%c0_38, %c0_39] : memref<32x16xf32, #tpu.memory_space<vmem>>, vector<16x16xf32>
    %c1_40 = arith.constant 1 : index
    %80 = memref.load %arg0[%c1_40] : memref<2xi32, #tpu.memory_space<smem>>
    %c1_41 = arith.constant 1 : index
    %81 = memref.load %arg1[%c1_41] : memref<2xi32, #tpu.memory_space<smem>>
    %c8 = arith.constant 8 : index
    %c0_42 = arith.constant 0 : index
    %82 = vector.load %arg2[%c8, %c0_42] : memref<16x8xf32, #tpu.memory_space<vmem>>, vector<8x8xf32>
    %cst_43 = arith.constant 0.000000e+00 : f32
    %83 = vector.broadcast %cst_43 : f32 to vector<8x8xf32>
    %84 = tpu.concatenate %82, %83 in 0 : vector<8x8xf32>, vector<8x8xf32> -> vector<16x8xf32>
    %cst_44 = arith.constant 0.000000e+00 : f32
    %85 = vector.broadcast %cst_44 : f32 to vector<1x8xf32>
    %86 = vector.extract_strided_slice %84 {offsets = [0, 0], sizes = [15, 8], strides = [1, 1]} : vector<16x8xf32> to vector<15x8xf32>
    %87 = tpu.concatenate %85, %86 in 0 : vector<1x8xf32>, vector<15x8xf32> -> vector<16x8xf32>
    %88 = vector.broadcast %80 : i32 to vector<16x1xi32>
    %89 = arith.cmpi sle, %51, %88 : vector<16x1xi32>
    %90 = vector.broadcast %81 : i32 to vector<16x1xi32>
    %91 = arith.cmpi sle, %51, %90 : vector<16x1xi32>
    %92 = vector.shape_cast %91 : vector<16x1xi1> to vector<16x1xi1>
    %93 = vector.broadcast %92 : vector<16x1xi1> to vector<16x8xi1>
    %94 = arith.select %93, %50, %87 : vector<16x8xi1>, vector<16x8xf32>
    %95 = vector.shape_cast %89 : vector<16x1xi1> to vector<16x1xi1>
    %96 = vector.broadcast %95 : vector<16x1xi1> to vector<16x8xi1>
    %97 = arith.select %96, %84, %94 : vector<16x8xi1>, vector<16x8xf32>
    %c1_i32_45 = arith.constant 1 : i32
    %98 = arith.addi %81, %c1_i32_45 : i32
    %99 = vector.broadcast %98 : i32 to vector<16x1xi32>
    %100 = arith.cmpi eq, %51, %99 : vector<16x1xi32>
    %101 = vector.extract_strided_slice %43 {offsets = [1, 0], sizes = [1, 8], strides = [1, 1]} : vector<2x8xf32> to vector<1x8xf32>
    %102 = vector.shape_cast %100 : vector<16x1xi1> to vector<16x1xi1>
    %103 = vector.broadcast %102 : vector<16x1xi1> to vector<16x8xi1>
    %104 = vector.shape_cast %101 : vector<1x8xf32> to vector<1x8xf32>
    %105 = vector.broadcast %104 : vector<1x8xf32> to vector<16x8xf32>
    %106 = arith.select %103, %105, %97 : vector<16x8xi1>, vector<16x8xf32>
    %c16 = arith.constant 16 : index
    %c0_46 = arith.constant 0 : index
    %107 = vector.load %arg3[%c16, %c0_46] : memref<32x16xf32, #tpu.memory_space<vmem>>, vector<16x16xf32>
    %108 = tpu.concatenate %78, %106 in 0 : vector<16x8xf32>, vector<16x8xf32> -> vector<32x8xf32>
    %109 = arith.truncf %108 : vector<32x8xf32> to vector<32x8xbf16>
    %c0_47 = arith.constant 0 : index
    %c0_48 = arith.constant 0 : index
    %c0_49 = arith.constant 0 : index
    %110 = vector.load %arg13[%c0_47, %c0_48, %c0_49] : memref<2x8x24xbf16, #tpu.memory_space<vmem>>, vector<1x8x24xbf16>
    %111 = vector.shape_cast %110 : vector<1x8x24xbf16> to vector<8x24xbf16>
    %cst_50 = arith.constant dense<0.000000e+00> : vector<32x24xf32>
    %112 = tpu.matmul %109, %111, %cst_50 {dimension_numbers = #tpu.dot_dimension_numbers<[1], [0], [0], [1], [0, 0, 1, 1], [], []>} : vector<32x8xbf16>, vector<8x24xbf16>, vector<32x24xf32> -> vector<32x24xf32>
    %c0_51 = arith.constant 0 : index
    %c0_52 = arith.constant 0 : index
    %c0_53 = arith.constant 0 : index
    %113 = vector.load %arg14[%c0_51, %c0_52, %c0_53] : memref<2x1x24xf32, #tpu.memory_space<vmem>>, vector<1x1x24xf32>
    %114 = vector.shape_cast %113 : vector<1x1x24xf32> to vector<1x24xf32>
    %115 = vector.broadcast %114 : vector<1x24xf32> to vector<32x24xf32>
    %116 = arith.addf %112, %115 : vector<32x24xf32>
    %117 = vector.extract_strided_slice %116 {offsets = [0, 0], sizes = [16, 4], strides = [1, 1]} : vector<32x24xf32> to vector<16x4xf32>
    %118 = vector.extract_strided_slice %116 {offsets = [0, 8], sizes = [16, 4], strides = [1, 1]} : vector<32x24xf32> to vector<16x4xf32>
    %119 = vector.extract_strided_slice %116 {offsets = [0, 16], sizes = [16, 4], strides = [1, 1]} : vector<32x24xf32> to vector<16x4xf32>
    %cst_54 = arith.constant dense<0.000000e+00> : vector<16x16xf32>
    %120 = tpu.matmul %117, %118, %cst_54 {dimension_numbers = #tpu.dot_dimension_numbers<[1], [1], [0], [0], [0, 0, 1, 0], [], []>} : vector<16x4xf32>, vector<16x4xf32>, vector<16x16xf32> -> vector<16x16xf32>
    %121 = arith.addf %120, %79 : vector<16x16xf32>
    %cst_55 = arith.constant dense<0xFF800000> : vector<16xf32>
    %122 = vector.multi_reduction <maximumf>, %121, %cst_55 [1] : vector<16x16xf32> to vector<16xf32>
    %123 = vector.shape_cast %122 : vector<16xf32> to vector<16x1xf32>
    %124 = vector.broadcast %123 : vector<16x1xf32> to vector<16x16xf32>
    %125 = arith.subf %121, %124 : vector<16x16xf32>
    %126 = math.exp %125 : vector<16x16xf32>
    %cst_56 = arith.constant dense<0.000000e+00> : vector<16xf32>
    %127 = vector.multi_reduction <add>, %126, %cst_56 [1] : vector<16x16xf32> to vector<16xf32>
    %128 = vector.shape_cast %127 : vector<16xf32> to vector<16x1xf32>
    %129 = tpu.reciprocal %128 {approx = true} : vector<16x1xf32> -> vector<16x1xf32>
    %130 = vector.broadcast %129 : vector<16x1xf32> to vector<16x16xf32>
    %131 = arith.mulf %126, %130 : vector<16x16xf32>
    %cst_57 = arith.constant dense<0.000000e+00> : vector<16x4xf32>
    %132 = tpu.matmul %131, %119, %cst_57 {dimension_numbers = #tpu.dot_dimension_numbers<[1], [0], [0], [1], [0, 0, 1, 1], [], []>} : vector<16x16xf32>, vector<16x4xf32>, vector<16x4xf32> -> vector<16x4xf32>
    %133 = vector.extract_strided_slice %116 {offsets = [0, 4], sizes = [16, 4], strides = [1, 1]} : vector<32x24xf32> to vector<16x4xf32>
    %134 = vector.extract_strided_slice %116 {offsets = [0, 12], sizes = [16, 4], strides = [1, 1]} : vector<32x24xf32> to vector<16x4xf32>
    %135 = vector.extract_strided_slice %116 {offsets = [0, 20], sizes = [16, 4], strides = [1, 1]} : vector<32x24xf32> to vector<16x4xf32>
    %cst_58 = arith.constant dense<0.000000e+00> : vector<16x16xf32>
    %136 = tpu.matmul %133, %134, %cst_58 {dimension_numbers = #tpu.dot_dimension_numbers<[1], [1], [0], [0], [0, 0, 1, 0], [], []>} : vector<16x4xf32>, vector<16x4xf32>, vector<16x16xf32> -> vector<16x16xf32>
    %137 = arith.addf %136, %79 : vector<16x16xf32>
    %cst_59 = arith.constant dense<0xFF800000> : vector<16xf32>
    %138 = vector.multi_reduction <maximumf>, %137, %cst_59 [1] : vector<16x16xf32> to vector<16xf32>
    %139 = vector.shape_cast %138 : vector<16xf32> to vector<16x1xf32>
    %140 = vector.broadcast %139 : vector<16x1xf32> to vector<16x16xf32>
    %141 = arith.subf %137, %140 : vector<16x16xf32>
    %142 = math.exp %141 : vector<16x16xf32>
    %cst_60 = arith.constant dense<0.000000e+00> : vector<16xf32>
    %143 = vector.multi_reduction <add>, %142, %cst_60 [1] : vector<16x16xf32> to vector<16xf32>
    %144 = vector.shape_cast %143 : vector<16xf32> to vector<16x1xf32>
    %145 = tpu.reciprocal %144 {approx = true} : vector<16x1xf32> -> vector<16x1xf32>
    %146 = vector.broadcast %145 : vector<16x1xf32> to vector<16x16xf32>
    %147 = arith.mulf %142, %146 : vector<16x16xf32>
    %cst_61 = arith.constant dense<0.000000e+00> : vector<16x4xf32>
    %148 = tpu.matmul %147, %135, %cst_61 {dimension_numbers = #tpu.dot_dimension_numbers<[1], [0], [0], [1], [0, 0, 1, 1], [], []>} : vector<16x16xf32>, vector<16x4xf32>, vector<16x4xf32> -> vector<16x4xf32>
    %149 = tpu.concatenate %132, %148 in 1 : vector<16x4xf32>, vector<16x4xf32> -> vector<16x8xf32>
    %150 = arith.truncf %149 : vector<16x8xf32> to vector<16x8xbf16>
    %c0_62 = arith.constant 0 : index
    %c0_63 = arith.constant 0 : index
    %c0_64 = arith.constant 0 : index
    %151 = vector.load %arg15[%c0_62, %c0_63, %c0_64] : memref<2x8x8xbf16, #tpu.memory_space<vmem>>, vector<1x8x8xbf16>
    %152 = vector.shape_cast %151 : vector<1x8x8xbf16> to vector<8x8xbf16>
    %cst_65 = arith.constant dense<0.000000e+00> : vector<16x8xf32>
    %153 = tpu.matmul %150, %152, %cst_65 {dimension_numbers = #tpu.dot_dimension_numbers<[1], [0], [0], [1], [0, 0, 1, 1], [], []>} : vector<16x8xbf16>, vector<8x8xbf16>, vector<16x8xf32> -> vector<16x8xf32>
    %154 = vector.extract_strided_slice %116 {offsets = [16, 0], sizes = [16, 4], strides = [1, 1]} : vector<32x24xf32> to vector<16x4xf32>
    %155 = vector.extract_strided_slice %116 {offsets = [16, 8], sizes = [16, 4], strides = [1, 1]} : vector<32x24xf32> to vector<16x4xf32>
    %156 = vector.extract_strided_slice %116 {offsets = [16, 16], sizes = [16, 4], strides = [1, 1]} : vector<32x24xf32> to vector<16x4xf32>
    %cst_66 = arith.constant dense<0.000000e+00> : vector<16x16xf32>
    %157 = tpu.matmul %154, %155, %cst_66 {dimension_numbers = #tpu.dot_dimension_numbers<[1], [1], [0], [0], [0, 0, 1, 0], [], []>} : vector<16x4xf32>, vector<16x4xf32>, vector<16x16xf32> -> vector<16x16xf32>
    %158 = arith.addf %157, %107 : vector<16x16xf32>
    %cst_67 = arith.constant dense<0xFF800000> : vector<16xf32>
    %159 = vector.multi_reduction <maximumf>, %158, %cst_67 [1] : vector<16x16xf32> to vector<16xf32>
    %160 = vector.shape_cast %159 : vector<16xf32> to vector<16x1xf32>
    %161 = vector.broadcast %160 : vector<16x1xf32> to vector<16x16xf32>
    %162 = arith.subf %158, %161 : vector<16x16xf32>
    %163 = math.exp %162 : vector<16x16xf32>
    %cst_68 = arith.constant dense<0.000000e+00> : vector<16xf32>
    %164 = vector.multi_reduction <add>, %163, %cst_68 [1] : vector<16x16xf32> to vector<16xf32>
    %165 = vector.shape_cast %164 : vector<16xf32> to vector<16x1xf32>
    %166 = tpu.reciprocal %165 {approx = true} : vector<16x1xf32> -> vector<16x1xf32>
    %167 = vector.broadcast %166 : vector<16x1xf32> to vector<16x16xf32>
    %168 = arith.mulf %163, %167 : vector<16x16xf32>
    %cst_69 = arith.constant dense<0.000000e+00> : vector<16x4xf32>
    %169 = tpu.matmul %168, %156, %cst_69 {dimension_numbers = #tpu.dot_dimension_numbers<[1], [0], [0], [1], [0, 0, 1, 1], [], []>} : vector<16x16xf32>, vector<16x4xf32>, vector<16x4xf32> -> vector<16x4xf32>
    %170 = vector.extract_strided_slice %116 {offsets = [16, 4], sizes = [16, 4], strides = [1, 1]} : vector<32x24xf32> to vector<16x4xf32>
    %171 = vector.extract_strided_slice %116 {offsets = [16, 12], sizes = [16, 4], strides = [1, 1]} : vector<32x24xf32> to vector<16x4xf32>
    %172 = vector.extract_strided_slice %116 {offsets = [16, 20], sizes = [16, 4], strides = [1, 1]} : vector<32x24xf32> to vector<16x4xf32>
    %cst_70 = arith.constant dense<0.000000e+00> : vector<16x16xf32>
    %173 = tpu.matmul %170, %171, %cst_70 {dimension_numbers = #tpu.dot_dimension_numbers<[1], [1], [0], [0], [0, 0, 1, 0], [], []>} : vector<16x4xf32>, vector<16x4xf32>, vector<16x16xf32> -> vector<16x16xf32>
    %174 = arith.addf %173, %107 : vector<16x16xf32>
    %cst_71 = arith.constant dense<0xFF800000> : vector<16xf32>
    %175 = vector.multi_reduction <maximumf>, %174, %cst_71 [1] : vector<16x16xf32> to vector<16xf32>
    %176 = vector.shape_cast %175 : vector<16xf32> to vector<16x1xf32>
    %177 = vector.broadcast %176 : vector<16x1xf32> to vector<16x16xf32>
    %178 = arith.subf %174, %177 : vector<16x16xf32>
    %179 = math.exp %178 : vector<16x16xf32>
    %cst_72 = arith.constant dense<0.000000e+00> : vector<16xf32>
    %180 = vector.multi_reduction <add>, %179, %cst_72 [1] : vector<16x16xf32> to vector<16xf32>
    %181 = vector.shape_cast %180 : vector<16xf32> to vector<16x1xf32>
    %182 = tpu.reciprocal %181 {approx = true} : vector<16x1xf32> -> vector<16x1xf32>
    %183 = vector.broadcast %182 : vector<16x1xf32> to vector<16x16xf32>
    %184 = arith.mulf %179, %183 : vector<16x16xf32>
    %cst_73 = arith.constant dense<0.000000e+00> : vector<16x4xf32>
    %185 = tpu.matmul %184, %172, %cst_73 {dimension_numbers = #tpu.dot_dimension_numbers<[1], [0], [0], [1], [0, 0, 1, 1], [], []>} : vector<16x16xf32>, vector<16x4xf32>, vector<16x4xf32> -> vector<16x4xf32>
    %186 = tpu.concatenate %169, %185 in 1 : vector<16x4xf32>, vector<16x4xf32> -> vector<16x8xf32>
    %187 = arith.truncf %186 : vector<16x8xf32> to vector<16x8xbf16>
    %c0_74 = arith.constant 0 : index
    %c0_75 = arith.constant 0 : index
    %c0_76 = arith.constant 0 : index
    %188 = vector.load %arg15[%c0_74, %c0_75, %c0_76] : memref<2x8x8xbf16, #tpu.memory_space<vmem>>, vector<1x8x8xbf16>
    %189 = vector.shape_cast %188 : vector<1x8x8xbf16> to vector<8x8xbf16>
    %cst_77 = arith.constant dense<0.000000e+00> : vector<16x8xf32>
    %190 = tpu.matmul %187, %189, %cst_77 {dimension_numbers = #tpu.dot_dimension_numbers<[1], [0], [0], [1], [0, 0, 1, 1], [], []>} : vector<16x8xbf16>, vector<8x8xbf16>, vector<16x8xf32> -> vector<16x8xf32>
    %191 = tpu.concatenate %153, %190 in 0 : vector<16x8xf32>, vector<16x8xf32> -> vector<32x8xf32>
    %c0_78 = arith.constant 0 : index
    %c0_79 = arith.constant 0 : index
    %c0_80 = arith.constant 0 : index
    %192 = vector.load %arg16[%c0_78, %c0_79, %c0_80] : memref<2x1x8xf32, #tpu.memory_space<vmem>>, vector<1x1x8xf32>
    %193 = vector.shape_cast %192 : vector<1x1x8xf32> to vector<1x8xf32>
    %194 = vector.broadcast %193 : vector<1x8xf32> to vector<32x8xf32>
    %195 = arith.addf %191, %194 : vector<32x8xf32>
    %196 = arith.addf %108, %195 : vector<32x8xf32>
    %c0_81 = arith.constant 0 : index
    %c0_82 = arith.constant 0 : index
    %c0_83 = arith.constant 0 : index
    %197 = vector.load %arg21[%c0_81, %c0_82, %c0_83] : memref<2x1x8xf32, #tpu.memory_space<vmem>>, vector<1x1x8xf32>
    %198 = vector.shape_cast %197 : vector<1x1x8xf32> to vector<1x8xf32>
    %c0_84 = arith.constant 0 : index
    %c0_85 = arith.constant 0 : index
    %c0_86 = arith.constant 0 : index
    %199 = vector.load %arg22[%c0_84, %c0_85, %c0_86] : memref<2x1x8xf32, #tpu.memory_space<vmem>>, vector<1x1x8xf32>
    %200 = vector.shape_cast %199 : vector<1x1x8xf32> to vector<1x8xf32>
    %cst_87 = arith.constant dense<0.000000e+00> : vector<32xf32>
    %201 = vector.multi_reduction <add>, %196, %cst_87 [1] : vector<32x8xf32> to vector<32xf32>
    %202 = vector.shape_cast %201 : vector<32xf32> to vector<32x1xf32>
    %cst_88 = arith.constant 8.000000e+00 : f32
    %203 = vector.broadcast %cst_88 : f32 to vector<32x1xf32>
    %204 = arith.divf %202, %203 : vector<32x1xf32>
    %205 = vector.broadcast %204 : vector<32x1xf32> to vector<32x8xf32>
    %206 = arith.subf %196, %205 : vector<32x8xf32>
    %207 = arith.mulf %206, %206 : vector<32x8xf32>
    %cst_89 = arith.constant dense<0.000000e+00> : vector<32xf32>
    %208 = vector.multi_reduction <add>, %207, %cst_89 [1] : vector<32x8xf32> to vector<32xf32>
    %209 = vector.shape_cast %208 : vector<32xf32> to vector<32x1xf32>
    %cst_90 = arith.constant 8.000000e+00 : f32
    %210 = vector.broadcast %cst_90 : f32 to vector<32x1xf32>
    %211 = arith.divf %209, %210 : vector<32x1xf32>
    %cst_91 = arith.constant 9.99999974E-6 : f32
    %212 = vector.broadcast %cst_91 : f32 to vector<32x1xf32>
    %213 = arith.addf %211, %212 : vector<32x1xf32>
    %214 = math.rsqrt %213 : vector<32x1xf32>
    %215 = vector.broadcast %214 : vector<32x1xf32> to vector<32x8xf32>
    %216 = arith.mulf %206, %215 : vector<32x8xf32>
    %217 = vector.broadcast %198 : vector<1x8xf32> to vector<32x8xf32>
    %218 = arith.mulf %216, %217 : vector<32x8xf32>
    %219 = vector.broadcast %200 : vector<1x8xf32> to vector<32x8xf32>
    %220 = arith.addf %218, %219 : vector<32x8xf32>
    %221 = arith.truncf %220 : vector<32x8xf32> to vector<32x8xbf16>
    %c0_92 = arith.constant 0 : index
    %c0_93 = arith.constant 0 : index
    %c0_94 = arith.constant 0 : index
    %222 = vector.load %arg17[%c0_92, %c0_93, %c0_94] : memref<2x8x32xbf16, #tpu.memory_space<vmem>>, vector<1x8x32xbf16>
    %223 = vector.shape_cast %222 : vector<1x8x32xbf16> to vector<8x32xbf16>
    %cst_95 = arith.constant dense<0.000000e+00> : vector<32x32xf32>
    %224 = tpu.matmul %221, %223, %cst_95 {dimension_numbers = #tpu.dot_dimension_numbers<[1], [0], [0], [1], [0, 0, 1, 1], [], []>} : vector<32x8xbf16>, vector<8x32xbf16>, vector<32x32xf32> -> vector<32x32xf32>
    %c0_96 = arith.constant 0 : index
    %c0_97 = arith.constant 0 : index
    %c0_98 = arith.constant 0 : index
    %225 = vector.load %arg18[%c0_96, %c0_97, %c0_98] : memref<2x1x32xf32, #tpu.memory_space<vmem>>, vector<1x1x32xf32>
    %226 = vector.shape_cast %225 : vector<1x1x32xf32> to vector<1x32xf32>
    %227 = vector.broadcast %226 : vector<1x32xf32> to vector<32x32xf32>
    %228 = arith.addf %224, %227 : vector<32x32xf32>
    %cst_99 = arith.constant 0.000000e+00 : f32
    %229 = vector.broadcast %cst_99 : f32 to vector<32x32xf32>
    %230 = arith.maximumf %228, %229 : vector<32x32xf32>
    %231 = arith.truncf %230 : vector<32x32xf32> to vector<32x32xbf16>
    %c0_100 = arith.constant 0 : index
    %c0_101 = arith.constant 0 : index
    %c0_102 = arith.constant 0 : index
    %232 = vector.load %arg19[%c0_100, %c0_101, %c0_102] : memref<2x32x8xbf16, #tpu.memory_space<vmem>>, vector<1x32x8xbf16>
    %233 = vector.shape_cast %232 : vector<1x32x8xbf16> to vector<32x8xbf16>
    %cst_103 = arith.constant dense<0.000000e+00> : vector<32x8xf32>
    %234 = tpu.matmul %231, %233, %cst_103 {dimension_numbers = #tpu.dot_dimension_numbers<[1], [0], [0], [1], [0, 0, 1, 1], [], []>} : vector<32x32xbf16>, vector<32x8xbf16>, vector<32x8xf32> -> vector<32x8xf32>
    %c0_104 = arith.constant 0 : index
    %c0_105 = arith.constant 0 : index
    %c0_106 = arith.constant 0 : index
    %235 = vector.load %arg20[%c0_104, %c0_105, %c0_106] : memref<2x1x8xf32, #tpu.memory_space<vmem>>, vector<1x1x8xf32>
    %236 = vector.shape_cast %235 : vector<1x1x8xf32> to vector<1x8xf32>
    %237 = vector.broadcast %236 : vector<1x8xf32> to vector<32x8xf32>
    %238 = arith.addf %234, %237 : vector<32x8xf32>
    %239 = arith.addf %220, %238 : vector<32x8xf32>
    %c0_107 = arith.constant 0 : index
    %c0_108 = arith.constant 0 : index
    %c0_109 = arith.constant 0 : index
    %240 = vector.load %arg23[%c0_107, %c0_108, %c0_109] : memref<2x1x8xf32, #tpu.memory_space<vmem>>, vector<1x1x8xf32>
    %241 = vector.shape_cast %240 : vector<1x1x8xf32> to vector<1x8xf32>
    %c0_110 = arith.constant 0 : index
    %c0_111 = arith.constant 0 : index
    %c0_112 = arith.constant 0 : index
    %242 = vector.load %arg24[%c0_110, %c0_111, %c0_112] : memref<2x1x8xf32, #tpu.memory_space<vmem>>, vector<1x1x8xf32>
    %243 = vector.shape_cast %242 : vector<1x1x8xf32> to vector<1x8xf32>
    %cst_113 = arith.constant dense<0.000000e+00> : vector<32xf32>
    %244 = vector.multi_reduction <add>, %239, %cst_113 [1] : vector<32x8xf32> to vector<32xf32>
    %245 = vector.shape_cast %244 : vector<32xf32> to vector<32x1xf32>
    %cst_114 = arith.constant 8.000000e+00 : f32
    %246 = vector.broadcast %cst_114 : f32 to vector<32x1xf32>
    %247 = arith.divf %245, %246 : vector<32x1xf32>
    %248 = vector.broadcast %247 : vector<32x1xf32> to vector<32x8xf32>
    %249 = arith.subf %239, %248 : vector<32x8xf32>
    %250 = arith.mulf %249, %249 : vector<32x8xf32>
    %cst_115 = arith.constant dense<0.000000e+00> : vector<32xf32>
    %251 = vector.multi_reduction <add>, %250, %cst_115 [1] : vector<32x8xf32> to vector<32xf32>
    %252 = vector.shape_cast %251 : vector<32xf32> to vector<32x1xf32>
    %cst_116 = arith.constant 8.000000e+00 : f32
    %253 = vector.broadcast %cst_116 : f32 to vector<32x1xf32>
    %254 = arith.divf %252, %253 : vector<32x1xf32>
    %cst_117 = arith.constant 9.99999974E-6 : f32
    %255 = vector.broadcast %cst_117 : f32 to vector<32x1xf32>
    %256 = arith.addf %254, %255 : vector<32x1xf32>
    %257 = math.rsqrt %256 : vector<32x1xf32>
    %258 = vector.broadcast %257 : vector<32x1xf32> to vector<32x8xf32>
    %259 = arith.mulf %249, %258 : vector<32x8xf32>
    %260 = vector.broadcast %241 : vector<1x8xf32> to vector<32x8xf32>
    %261 = arith.mulf %259, %260 : vector<32x8xf32>
    %262 = vector.broadcast %243 : vector<1x8xf32> to vector<32x8xf32>
    %263 = arith.addf %261, %262 : vector<32x8xf32>
    %264 = arith.truncf %263 : vector<32x8xf32> to vector<32x8xbf16>
    %c1_118 = arith.constant 1 : index
    %c0_119 = arith.constant 0 : index
    %c0_120 = arith.constant 0 : index
    %265 = vector.load %arg13[%c1_118, %c0_119, %c0_120] : memref<2x8x24xbf16, #tpu.memory_space<vmem>>, vector<1x8x24xbf16>
    %266 = vector.shape_cast %265 : vector<1x8x24xbf16> to vector<8x24xbf16>
    %cst_121 = arith.constant dense<0.000000e+00> : vector<32x24xf32>
    %267 = tpu.matmul %264, %266, %cst_121 {dimension_numbers = #tpu.dot_dimension_numbers<[1], [0], [0], [1], [0, 0, 1, 1], [], []>} : vector<32x8xbf16>, vector<8x24xbf16>, vector<32x24xf32> -> vector<32x24xf32>
    %c1_122 = arith.constant 1 : index
    %c0_123 = arith.constant 0 : index
    %c0_124 = arith.constant 0 : index
    %268 = vector.load %arg14[%c1_122, %c0_123, %c0_124] : memref<2x1x24xf32, #tpu.memory_space<vmem>>, vector<1x1x24xf32>
    %269 = vector.shape_cast %268 : vector<1x1x24xf32> to vector<1x24xf32>
    %270 = vector.broadcast %269 : vector<1x24xf32> to vector<32x24xf32>
    %271 = arith.addf %267, %270 : vector<32x24xf32>
    %272 = vector.extract_strided_slice %271 {offsets = [0, 0], sizes = [16, 4], strides = [1, 1]} : vector<32x24xf32> to vector<16x4xf32>
    %273 = vector.extract_strided_slice %271 {offsets = [0, 8], sizes = [16, 4], strides = [1, 1]} : vector<32x24xf32> to vector<16x4xf32>
    %274 = vector.extract_strided_slice %271 {offsets = [0, 16], sizes = [16, 4], strides = [1, 1]} : vector<32x24xf32> to vector<16x4xf32>
    %cst_125 = arith.constant dense<0.000000e+00> : vector<16x16xf32>
    %275 = tpu.matmul %272, %273, %cst_125 {dimension_numbers = #tpu.dot_dimension_numbers<[1], [1], [0], [0], [0, 0, 1, 0], [], []>} : vector<16x4xf32>, vector<16x4xf32>, vector<16x16xf32> -> vector<16x16xf32>
    %276 = arith.addf %275, %79 : vector<16x16xf32>
    %cst_126 = arith.constant dense<0xFF800000> : vector<16xf32>
    %277 = vector.multi_reduction <maximumf>, %276, %cst_126 [1] : vector<16x16xf32> to vector<16xf32>
    %278 = vector.shape_cast %277 : vector<16xf32> to vector<16x1xf32>
    %279 = vector.broadcast %278 : vector<16x1xf32> to vector<16x16xf32>
    %280 = arith.subf %276, %279 : vector<16x16xf32>
    %281 = math.exp %280 : vector<16x16xf32>
    %cst_127 = arith.constant dense<0.000000e+00> : vector<16xf32>
    %282 = vector.multi_reduction <add>, %281, %cst_127 [1] : vector<16x16xf32> to vector<16xf32>
    %283 = vector.shape_cast %282 : vector<16xf32> to vector<16x1xf32>
    %284 = tpu.reciprocal %283 {approx = true} : vector<16x1xf32> -> vector<16x1xf32>
    %285 = vector.broadcast %284 : vector<16x1xf32> to vector<16x16xf32>
    %286 = arith.mulf %281, %285 : vector<16x16xf32>
    %cst_128 = arith.constant dense<0.000000e+00> : vector<16x4xf32>
    %287 = tpu.matmul %286, %274, %cst_128 {dimension_numbers = #tpu.dot_dimension_numbers<[1], [0], [0], [1], [0, 0, 1, 1], [], []>} : vector<16x16xf32>, vector<16x4xf32>, vector<16x4xf32> -> vector<16x4xf32>
    %288 = vector.extract_strided_slice %271 {offsets = [0, 4], sizes = [16, 4], strides = [1, 1]} : vector<32x24xf32> to vector<16x4xf32>
    %289 = vector.extract_strided_slice %271 {offsets = [0, 12], sizes = [16, 4], strides = [1, 1]} : vector<32x24xf32> to vector<16x4xf32>
    %290 = vector.extract_strided_slice %271 {offsets = [0, 20], sizes = [16, 4], strides = [1, 1]} : vector<32x24xf32> to vector<16x4xf32>
    %cst_129 = arith.constant dense<0.000000e+00> : vector<16x16xf32>
    %291 = tpu.matmul %288, %289, %cst_129 {dimension_numbers = #tpu.dot_dimension_numbers<[1], [1], [0], [0], [0, 0, 1, 0], [], []>} : vector<16x4xf32>, vector<16x4xf32>, vector<16x16xf32> -> vector<16x16xf32>
    %292 = arith.addf %291, %79 : vector<16x16xf32>
    %cst_130 = arith.constant dense<0xFF800000> : vector<16xf32>
    %293 = vector.multi_reduction <maximumf>, %292, %cst_130 [1] : vector<16x16xf32> to vector<16xf32>
    %294 = vector.shape_cast %293 : vector<16xf32> to vector<16x1xf32>
    %295 = vector.broadcast %294 : vector<16x1xf32> to vector<16x16xf32>
    %296 = arith.subf %292, %295 : vector<16x16xf32>
    %297 = math.exp %296 : vector<16x16xf32>
    %cst_131 = arith.constant dense<0.000000e+00> : vector<16xf32>
    %298 = vector.multi_reduction <add>, %297, %cst_131 [1] : vector<16x16xf32> to vector<16xf32>
    %299 = vector.shape_cast %298 : vector<16xf32> to vector<16x1xf32>
    %300 = tpu.reciprocal %299 {approx = true} : vector<16x1xf32> -> vector<16x1xf32>
    %301 = vector.broadcast %300 : vector<16x1xf32> to vector<16x16xf32>
    %302 = arith.mulf %297, %301 : vector<16x16xf32>
    %cst_132 = arith.constant dense<0.000000e+00> : vector<16x4xf32>
    %303 = tpu.matmul %302, %290, %cst_132 {dimension_numbers = #tpu.dot_dimension_numbers<[1], [0], [0], [1], [0, 0, 1, 1], [], []>} : vector<16x16xf32>, vector<16x4xf32>, vector<16x4xf32> -> vector<16x4xf32>
    %304 = tpu.concatenate %287, %303 in 1 : vector<16x4xf32>, vector<16x4xf32> -> vector<16x8xf32>
    %305 = arith.truncf %304 : vector<16x8xf32> to vector<16x8xbf16>
    %c1_133 = arith.constant 1 : index
    %c0_134 = arith.constant 0 : index
    %c0_135 = arith.constant 0 : index
    %306 = vector.load %arg15[%c1_133, %c0_134, %c0_135] : memref<2x8x8xbf16, #tpu.memory_space<vmem>>, vector<1x8x8xbf16>
    %307 = vector.shape_cast %306 : vector<1x8x8xbf16> to vector<8x8xbf16>
    %cst_136 = arith.constant dense<0.000000e+00> : vector<16x8xf32>
    %308 = tpu.matmul %305, %307, %cst_136 {dimension_numbers = #tpu.dot_dimension_numbers<[1], [0], [0], [1], [0, 0, 1, 1], [], []>} : vector<16x8xbf16>, vector<8x8xbf16>, vector<16x8xf32> -> vector<16x8xf32>
    %309 = vector.extract_strided_slice %271 {offsets = [16, 0], sizes = [16, 4], strides = [1, 1]} : vector<32x24xf32> to vector<16x4xf32>
    %310 = vector.extract_strided_slice %271 {offsets = [16, 8], sizes = [16, 4], strides = [1, 1]} : vector<32x24xf32> to vector<16x4xf32>
    %311 = vector.extract_strided_slice %271 {offsets = [16, 16], sizes = [16, 4], strides = [1, 1]} : vector<32x24xf32> to vector<16x4xf32>
    %cst_137 = arith.constant dense<0.000000e+00> : vector<16x16xf32>
    %312 = tpu.matmul %309, %310, %cst_137 {dimension_numbers = #tpu.dot_dimension_numbers<[1], [1], [0], [0], [0, 0, 1, 0], [], []>} : vector<16x4xf32>, vector<16x4xf32>, vector<16x16xf32> -> vector<16x16xf32>
    %313 = arith.addf %312, %107 : vector<16x16xf32>
    %cst_138 = arith.constant dense<0xFF800000> : vector<16xf32>
    %314 = vector.multi_reduction <maximumf>, %313, %cst_138 [1] : vector<16x16xf32> to vector<16xf32>
    %315 = vector.shape_cast %314 : vector<16xf32> to vector<16x1xf32>
    %316 = vector.broadcast %315 : vector<16x1xf32> to vector<16x16xf32>
    %317 = arith.subf %313, %316 : vector<16x16xf32>
    %318 = math.exp %317 : vector<16x16xf32>
    %cst_139 = arith.constant dense<0.000000e+00> : vector<16xf32>
    %319 = vector.multi_reduction <add>, %318, %cst_139 [1] : vector<16x16xf32> to vector<16xf32>
    %320 = vector.shape_cast %319 : vector<16xf32> to vector<16x1xf32>
    %321 = tpu.reciprocal %320 {approx = true} : vector<16x1xf32> -> vector<16x1xf32>
    %322 = vector.broadcast %321 : vector<16x1xf32> to vector<16x16xf32>
    %323 = arith.mulf %318, %322 : vector<16x16xf32>
    %cst_140 = arith.constant dense<0.000000e+00> : vector<16x4xf32>
    %324 = tpu.matmul %323, %311, %cst_140 {dimension_numbers = #tpu.dot_dimension_numbers<[1], [0], [0], [1], [0, 0, 1, 1], [], []>} : vector<16x16xf32>, vector<16x4xf32>, vector<16x4xf32> -> vector<16x4xf32>
    %325 = vector.extract_strided_slice %271 {offsets = [16, 4], sizes = [16, 4], strides = [1, 1]} : vector<32x24xf32> to vector<16x4xf32>
    %326 = vector.extract_strided_slice %271 {offsets = [16, 12], sizes = [16, 4], strides = [1, 1]} : vector<32x24xf32> to vector<16x4xf32>
    %327 = vector.extract_strided_slice %271 {offsets = [16, 20], sizes = [16, 4], strides = [1, 1]} : vector<32x24xf32> to vector<16x4xf32>
    %cst_141 = arith.constant dense<0.000000e+00> : vector<16x16xf32>
    %328 = tpu.matmul %325, %326, %cst_141 {dimension_numbers = #tpu.dot_dimension_numbers<[1], [1], [0], [0], [0, 0, 1, 0], [], []>} : vector<16x4xf32>, vector<16x4xf32>, vector<16x16xf32> -> vector<16x16xf32>
    %329 = arith.addf %328, %107 : vector<16x16xf32>
    %cst_142 = arith.constant dense<0xFF800000> : vector<16xf32>
    %330 = vector.multi_reduction <maximumf>, %329, %cst_142 [1] : vector<16x16xf32> to vector<16xf32>
    %331 = vector.shape_cast %330 : vector<16xf32> to vector<16x1xf32>
    %332 = vector.broadcast %331 : vector<16x1xf32> to vector<16x16xf32>
    %333 = arith.subf %329, %332 : vector<16x16xf32>
    %334 = math.exp %333 : vector<16x16xf32>
    %cst_143 = arith.constant dense<0.000000e+00> : vector<16xf32>
    %335 = vector.multi_reduction <add>, %334, %cst_143 [1] : vector<16x16xf32> to vector<16xf32>
    %336 = vector.shape_cast %335 : vector<16xf32> to vector<16x1xf32>
    %337 = tpu.reciprocal %336 {approx = true} : vector<16x1xf32> -> vector<16x1xf32>
    %338 = vector.broadcast %337 : vector<16x1xf32> to vector<16x16xf32>
    %339 = arith.mulf %334, %338 : vector<16x16xf32>
    %cst_144 = arith.constant dense<0.000000e+00> : vector<16x4xf32>
    %340 = tpu.matmul %339, %327, %cst_144 {dimension_numbers = #tpu.dot_dimension_numbers<[1], [0], [0], [1], [0, 0, 1, 1], [], []>} : vector<16x16xf32>, vector<16x4xf32>, vector<16x4xf32> -> vector<16x4xf32>
    %341 = tpu.concatenate %324, %340 in 1 : vector<16x4xf32>, vector<16x4xf32> -> vector<16x8xf32>
    %342 = arith.truncf %341 : vector<16x8xf32> to vector<16x8xbf16>
    %c1_145 = arith.constant 1 : index
    %c0_146 = arith.constant 0 : index
    %c0_147 = arith.constant 0 : index
    %343 = vector.load %arg15[%c1_145, %c0_146, %c0_147] : memref<2x8x8xbf16, #tpu.memory_space<vmem>>, vector<1x8x8xbf16>
    %344 = vector.shape_cast %343 : vector<1x8x8xbf16> to vector<8x8xbf16>
    %cst_148 = arith.constant dense<0.000000e+00> : vector<16x8xf32>
    %345 = tpu.matmul %342, %344, %cst_148 {dimension_numbers = #tpu.dot_dimension_numbers<[1], [0], [0], [1], [0, 0, 1, 1], [], []>} : vector<16x8xbf16>, vector<8x8xbf16>, vector<16x8xf32> -> vector<16x8xf32>
    %346 = tpu.concatenate %308, %345 in 0 : vector<16x8xf32>, vector<16x8xf32> -> vector<32x8xf32>
    %c1_149 = arith.constant 1 : index
    %c0_150 = arith.constant 0 : index
    %c0_151 = arith.constant 0 : index
    %347 = vector.load %arg16[%c1_149, %c0_150, %c0_151] : memref<2x1x8xf32, #tpu.memory_space<vmem>>, vector<1x1x8xf32>
    %348 = vector.shape_cast %347 : vector<1x1x8xf32> to vector<1x8xf32>
    %349 = vector.broadcast %348 : vector<1x8xf32> to vector<32x8xf32>
    %350 = arith.addf %346, %349 : vector<32x8xf32>
    %351 = arith.addf %263, %350 : vector<32x8xf32>
    %c1_152 = arith.constant 1 : index
    %c0_153 = arith.constant 0 : index
    %c0_154 = arith.constant 0 : index
    %352 = vector.load %arg21[%c1_152, %c0_153, %c0_154] : memref<2x1x8xf32, #tpu.memory_space<vmem>>, vector<1x1x8xf32>
    %353 = vector.shape_cast %352 : vector<1x1x8xf32> to vector<1x8xf32>
    %c1_155 = arith.constant 1 : index
    %c0_156 = arith.constant 0 : index
    %c0_157 = arith.constant 0 : index
    %354 = vector.load %arg22[%c1_155, %c0_156, %c0_157] : memref<2x1x8xf32, #tpu.memory_space<vmem>>, vector<1x1x8xf32>
    %355 = vector.shape_cast %354 : vector<1x1x8xf32> to vector<1x8xf32>
    %cst_158 = arith.constant dense<0.000000e+00> : vector<32xf32>
    %356 = vector.multi_reduction <add>, %351, %cst_158 [1] : vector<32x8xf32> to vector<32xf32>
    %357 = vector.shape_cast %356 : vector<32xf32> to vector<32x1xf32>
    %cst_159 = arith.constant 8.000000e+00 : f32
    %358 = vector.broadcast %cst_159 : f32 to vector<32x1xf32>
    %359 = arith.divf %357, %358 : vector<32x1xf32>
    %360 = vector.broadcast %359 : vector<32x1xf32> to vector<32x8xf32>
    %361 = arith.subf %351, %360 : vector<32x8xf32>
    %362 = arith.mulf %361, %361 : vector<32x8xf32>
    %cst_160 = arith.constant dense<0.000000e+00> : vector<32xf32>
    %363 = vector.multi_reduction <add>, %362, %cst_160 [1] : vector<32x8xf32> to vector<32xf32>
    %364 = vector.shape_cast %363 : vector<32xf32> to vector<32x1xf32>
    %cst_161 = arith.constant 8.000000e+00 : f32
    %365 = vector.broadcast %cst_161 : f32 to vector<32x1xf32>
    %366 = arith.divf %364, %365 : vector<32x1xf32>
    %cst_162 = arith.constant 9.99999974E-6 : f32
    %367 = vector.broadcast %cst_162 : f32 to vector<32x1xf32>
    %368 = arith.addf %366, %367 : vector<32x1xf32>
    %369 = math.rsqrt %368 : vector<32x1xf32>
    %370 = vector.broadcast %369 : vector<32x1xf32> to vector<32x8xf32>
    %371 = arith.mulf %361, %370 : vector<32x8xf32>
    %372 = vector.broadcast %353 : vector<1x8xf32> to vector<32x8xf32>
    %373 = arith.mulf %371, %372 : vector<32x8xf32>
    %374 = vector.broadcast %355 : vector<1x8xf32> to vector<32x8xf32>
    %375 = arith.addf %373, %374 : vector<32x8xf32>
    %376 = arith.truncf %375 : vector<32x8xf32> to vector<32x8xbf16>
    %c1_163 = arith.constant 1 : index
    %c0_164 = arith.constant 0 : index
    %c0_165 = arith.constant 0 : index
    %377 = vector.load %arg17[%c1_163, %c0_164, %c0_165] : memref<2x8x32xbf16, #tpu.memory_space<vmem>>, vector<1x8x32xbf16>
    %378 = vector.shape_cast %377 : vector<1x8x32xbf16> to vector<8x32xbf16>
    %cst_166 = arith.constant dense<0.000000e+00> : vector<32x32xf32>
    %379 = tpu.matmul %376, %378, %cst_166 {dimension_numbers = #tpu.dot_dimension_numbers<[1], [0], [0], [1], [0, 0, 1, 1], [], []>} : vector<32x8xbf16>, vector<8x32xbf16>, vector<32x32xf32> -> vector<32x32xf32>
    %c1_167 = arith.constant 1 : index
    %c0_168 = arith.constant 0 : index
    %c0_169 = arith.constant 0 : index
    %380 = vector.load %arg18[%c1_167, %c0_168, %c0_169] : memref<2x1x32xf32, #tpu.memory_space<vmem>>, vector<1x1x32xf32>
    %381 = vector.shape_cast %380 : vector<1x1x32xf32> to vector<1x32xf32>
    %382 = vector.broadcast %381 : vector<1x32xf32> to vector<32x32xf32>
    %383 = arith.addf %379, %382 : vector<32x32xf32>
    %cst_170 = arith.constant 0.000000e+00 : f32
    %384 = vector.broadcast %cst_170 : f32 to vector<32x32xf32>
    %385 = arith.maximumf %383, %384 : vector<32x32xf32>
    %386 = arith.truncf %385 : vector<32x32xf32> to vector<32x32xbf16>
    %c1_171 = arith.constant 1 : index
    %c0_172 = arith.constant 0 : index
    %c0_173 = arith.constant 0 : index
    %387 = vector.load %arg19[%c1_171, %c0_172, %c0_173] : memref<2x32x8xbf16, #tpu.memory_space<vmem>>, vector<1x32x8xbf16>
    %388 = vector.shape_cast %387 : vector<1x32x8xbf16> to vector<32x8xbf16>
    %cst_174 = arith.constant dense<0.000000e+00> : vector<32x8xf32>
    %389 = tpu.matmul %386, %388, %cst_174 {dimension_numbers = #tpu.dot_dimension_numbers<[1], [0], [0], [1], [0, 0, 1, 1], [], []>} : vector<32x32xbf16>, vector<32x8xbf16>, vector<32x8xf32> -> vector<32x8xf32>
    %c1_175 = arith.constant 1 : index
    %c0_176 = arith.constant 0 : index
    %c0_177 = arith.constant 0 : index
    %390 = vector.load %arg20[%c1_175, %c0_176, %c0_177] : memref<2x1x8xf32, #tpu.memory_space<vmem>>, vector<1x1x8xf32>
    %391 = vector.shape_cast %390 : vector<1x1x8xf32> to vector<1x8xf32>
    %392 = vector.broadcast %391 : vector<1x8xf32> to vector<32x8xf32>
    %393 = arith.addf %389, %392 : vector<32x8xf32>
    %394 = arith.addf %375, %393 : vector<32x8xf32>
    %c1_178 = arith.constant 1 : index
    %c0_179 = arith.constant 0 : index
    %c0_180 = arith.constant 0 : index
    %395 = vector.load %arg23[%c1_178, %c0_179, %c0_180] : memref<2x1x8xf32, #tpu.memory_space<vmem>>, vector<1x1x8xf32>
    %396 = vector.shape_cast %395 : vector<1x1x8xf32> to vector<1x8xf32>
    %c1_181 = arith.constant 1 : index
    %c0_182 = arith.constant 0 : index
    %c0_183 = arith.constant 0 : index
    %397 = vector.load %arg24[%c1_181, %c0_182, %c0_183] : memref<2x1x8xf32, #tpu.memory_space<vmem>>, vector<1x1x8xf32>
    %398 = vector.shape_cast %397 : vector<1x1x8xf32> to vector<1x8xf32>
    %cst_184 = arith.constant dense<0.000000e+00> : vector<32xf32>
    %399 = vector.multi_reduction <add>, %394, %cst_184 [1] : vector<32x8xf32> to vector<32xf32>
    %400 = vector.shape_cast %399 : vector<32xf32> to vector<32x1xf32>
    %cst_185 = arith.constant 8.000000e+00 : f32
    %401 = vector.broadcast %cst_185 : f32 to vector<32x1xf32>
    %402 = arith.divf %400, %401 : vector<32x1xf32>
    %403 = vector.broadcast %402 : vector<32x1xf32> to vector<32x8xf32>
    %404 = arith.subf %394, %403 : vector<32x8xf32>
    %405 = arith.mulf %404, %404 : vector<32x8xf32>
    %cst_186 = arith.constant dense<0.000000e+00> : vector<32xf32>
    %406 = vector.multi_reduction <add>, %405, %cst_186 [1] : vector<32x8xf32> to vector<32xf32>
    %407 = vector.shape_cast %406 : vector<32xf32> to vector<32x1xf32>
    %cst_187 = arith.constant 8.000000e+00 : f32
    %408 = vector.broadcast %cst_187 : f32 to vector<32x1xf32>
    %409 = arith.divf %407, %408 : vector<32x1xf32>
    %cst_188 = arith.constant 9.99999974E-6 : f32
    %410 = vector.broadcast %cst_188 : f32 to vector<32x1xf32>
    %411 = arith.addf %409, %410 : vector<32x1xf32>
    %412 = math.rsqrt %411 : vector<32x1xf32>
    %413 = vector.broadcast %412 : vector<32x1xf32> to vector<32x8xf32>
    %414 = arith.mulf %404, %413 : vector<32x8xf32>
    %415 = vector.broadcast %396 : vector<1x8xf32> to vector<32x8xf32>
    %416 = arith.mulf %414, %415 : vector<32x8xf32>
    %417 = vector.broadcast %398 : vector<1x8xf32> to vector<32x8xf32>
    %418 = arith.addf %416, %417 : vector<32x8xf32>
    %419 = arith.truncf %418 : vector<32x8xf32> to vector<32x8xbf16>
    %c0_189 = arith.constant 0 : index
    %c0_190 = arith.constant 0 : index
    %420 = vector.load %arg25[%c0_189, %c0_190] : memref<8x4xbf16, #tpu.memory_space<vmem>>, vector<8x4xbf16>
    %cst_191 = arith.constant dense<0.000000e+00> : vector<32x4xf32>
    %421 = tpu.matmul %419, %420, %cst_191 {dimension_numbers = #tpu.dot_dimension_numbers<[1], [0], [0], [1], [0, 0, 1, 1], [], []>} : vector<32x8xbf16>, vector<8x4xbf16>, vector<32x4xf32> -> vector<32x4xf32>
    %c0_192 = arith.constant 0 : index
    %c0_193 = arith.constant 0 : index
    %422 = vector.load %arg26[%c0_192, %c0_193] : memref<1x4xf32, #tpu.memory_space<vmem>>, vector<1x4xf32>
    %423 = vector.broadcast %422 : vector<1x4xf32> to vector<32x4xf32>
    %424 = arith.addf %421, %423 : vector<32x4xf32>
    %c0_194 = arith.constant 0 : index
    %c0_195 = arith.constant 0 : index
    %425 = vector.load %arg27[%c0_194, %c0_195] : memref<32x4xf32, #tpu.memory_space<vmem>>, vector<32x4xf32>
    tpu.vector_store %arg27[%c0_194, %c0_195], %424 {strides = array<i32>} : memref<32x4xf32, #tpu.memory_space<vmem>>, vector<32x4xf32>,
    return
  }
}

</mosaic_0001>

<llo_original>
// kernel: forward.1
$region0: #{forward.1}
  #allocation0 [shape = 'u32[]', space=smem, size = 0x4, offset = 0x4, fixed_abs, tag = 'smem constant byte address 0x4 - core index']
  #allocation1 [shape = 'u32[144,128]{1,0:T(1,128)}', space=vmem, size = 0x12000, scoped, tag = 'internal scratch']
  %s0 = inlined_call_operand.vmem [shape: s32[2], index: 0, kind: input, shape index: {}]
  %s1 = inlined_call_operand.vmem [shape: s32[2], index: 1, kind: input, shape index: {}]
  %s2 = inlined_call_operand.vmem [shape: f32[16,8], index: 2, kind: input, shape index: {}]
  %s3 = inlined_call_operand.vmem [shape: f32[32,16], index: 3, kind: input, shape index: {}]
  %s4 = inlined_call_operand.vmem [shape: f32[16,8], index: 4, kind: input, shape index: {}]
  %s5 = inlined_call_operand.vmem [shape: f32[1,8], index: 5, kind: input, shape index: {}]
  %s6 = inlined_call_operand.vmem [shape: bf16[8,400], index: 6, kind: input, shape index: {}]
  %s7 = inlined_call_operand.vmem [shape: bf16[8,400], index: 7, kind: input, shape index: {}]
  %s8 = inlined_call_operand.vmem [shape: f32[1,400], index: 8, kind: input, shape index: {}]
  %s9 = inlined_call_operand.hbm [shape: bf16[400,300], index: 9, kind: input, shape index: {}]
  %s10 = inlined_call_operand.vmem [shape: f32[1,300], index: 10, kind: input, shape index: {}]
  %s11 = inlined_call_operand.vmem [shape: bf16[300,8], index: 11, kind: input, shape index: {}]
  %s12 = inlined_call_operand.vmem [shape: f32[1,8], index: 12, kind: input, shape index: {}]
  %s13 = inlined_call_operand.vmem [shape: bf16[2,8,24], index: 13, kind: input, shape index: {}]
  %s14 = inlined_call_operand.vmem [shape: f32[2,1,24], index: 14, kind: input, shape index: {}]
  %s15 = inlined_call_operand.vmem [shape: bf16[2,8,8], index: 15, kind: input, shape index: {}]
  %s16 = inlined_call_operand.vmem [shape: f32[2,1,8], index: 16, kind: input, shape index: {}]
  %s17 = inlined_call_operand.vmem [shape: bf16[2,8,32], index: 17, kind: input, shape index: {}]
  %s18 = inlined_call_operand.vmem [shape: f32[2,1,32], index: 18, kind: input, shape index: {}]
  %s19 = inlined_call_operand.vmem [shape: bf16[2,32,8], index: 19, kind: input, shape index: {}]
  %s20 = inlined_call_operand.vmem [shape: f32[2,1,8], index: 20, kind: input, shape index: {}]
  %s21 = inlined_call_operand.vmem [shape: f32[2,1,8], index: 21, kind: input, shape index: {}]
  %s22 = inlined_call_operand.vmem [shape: f32[2,1,8], index: 22, kind: input, shape index: {}]
  %s23 = inlined_call_operand.vmem [shape: f32[2,1,8], index: 23, kind: input, shape index: {}]
  %s24 = inlined_call_operand.vmem [shape: f32[2,1,8], index: 24, kind: input, shape index: {}]
  %s25 = inlined_call_operand.vmem [shape: bf16[8,4], index: 25, kind: input, shape index: {}]
  %s26 = inlined_call_operand.vmem [shape: f32[1,4], index: 26, kind: input, shape index: {}]
  %s27 = inlined_call_operand.vmem [shape: f32[32,4], index: 27, kind: output, shape index: {}]
  %s28 = sld [smem:[#allocation0]]
  $region130: #{forward.1} parent=0
    _
  %s30 = ssub.s32 1, %s28
  %s31 = scalar_select 0, %s30, %s28
  $region1: #{forward.1} parent=0
    #allocation2 [shape = 'u8[512]{0}', space=smem, size = 0x200, scoped, tag = 'input window, operand 0, single buffered']
    #allocation3 [shape = 's32[1]{0}', space=sflag, size = 0x4, scoped, tag = 'scoped memory for forward.1']
    #allocation4 [shape = 's32[1]{0}', space=sflag, size = 0x4, scoped, tag = 'scoped memory for forward.1']
    #allocation5 [shape = 'u8[512]{0}', space=smem, size = 0x200, scoped, tag = 'input window, operand 1, single buffered']
    #allocation6 [shape = 's32[1]{0}', space=sflag, size = 0x4, scoped, tag = 'scoped memory for forward.1']
    #allocation7 [shape = 'u8[307200]{0}', space=vmem, size = 0x4b000, scoped, tag = 'input window, operand 9, single buffered']
    %32 = vsyncpa [#allocation4], 0
    %33 = vsyncpa [#allocation6], 0
    %34 = vsyncpa [#allocation3], 0
    // Predicated region
    $region2: #{forward.1} parent=1 // pred_check
      _
    $region3: #{forward.1} parent=1 // pred_check_branch
      %36 = sbr.rel (0) target = $region5
    $region4: #{forward.1} parent=1 // pred_region
      %s38 = ssub.s32 16, 16
      %39 = vsyncadd [#allocation4], %s38
      %s41 = sshll.u32 %s0, 4
      %s42 = int_to_ptr.vmem [resolvable:$true] %s41
      %44 = dma.vmem_to_smem %s42, 16, [#allocation2], [#allocation4]
    $region5: #{forward.1} parent=1 // pred_fallthru
      _
    // Predicated region
    $region6: #{forward.1} parent=1 // pred_check
      _
    $region7: #{forward.1} parent=1 // pred_check_branch
      %46 = sbr.rel (0) target = $region9
    $region8: #{forward.1} parent=1 // pred_region
      %s48 = ssub.s32 16, 16
      %49 = vsyncadd [#allocation6], %s48
      %s51 = sshll.u32 %s1, 4
      %s52 = int_to_ptr.vmem [resolvable:$true] %s51
      %54 = dma.vmem_to_smem %s52, 16, [#allocation5], [#allocation6]
    $region9: #{forward.1} parent=1 // pred_fallthru
      _
    // Predicated region
    $region10: #{forward.1} parent=1 // pred_check
      _
    $region11: #{forward.1} parent=1 // pred_check_branch
      %56 = sbr.rel (0) target = $region13
    $region12: #{forward.1} parent=1 // pred_region
      _
    $region13: #{forward.1} parent=1 // pred_fallthru
      _
    // Predicated region
    $region14: #{forward.1} parent=1 // pred_check
      _
    $region15: #{forward.1} parent=1 // pred_check_branch
      %58 = sbr.rel (0) target = $region17
    $region16: #{forward.1} parent=1 // pred_region
      _
    $region17: #{forward.1} parent=1 // pred_fallthru
      _
    // Predicated region
    $region18: #{forward.1} parent=1 // pred_check
      _
    $region19: #{forward.1} parent=1 // pred_check_branch
      %60 = sbr.rel (0) target = $region21
    $region20: #{forward.1} parent=1 // pred_region
      _
    $region21: #{forward.1} parent=1 // pred_fallthru
      _
    // Predicated region
    $region22: #{forward.1} parent=1 // pred_check
      _
    $region23: #{forward.1} parent=1 // pred_check_branch
      %62 = sbr.rel (0) target = $region25
    $region24: #{forward.1} parent=1 // pred_region
      _
    $region25: #{forward.1} parent=1 // pred_fallthru
      _
    // Predicated region
    $region26: #{forward.1} parent=1 // pred_check
      _
    $region27: #{forward.1} parent=1 // pred_check_branch
      %64 = sbr.rel (0) target = $region29
    $region28: #{forward.1} parent=1 // pred_region
      _
    $region29: #{forward.1} parent=1 // pred_fallthru
      _
    // Predicated region
    $region30: #{forward.1} parent=1 // pred_check
      _
    $region31: #{forward.1} parent=1 // pred_check_branch
      %66 = sbr.rel (0) target = $region33
    $region32: #{forward.1} parent=1 // pred_region
      _
    $region33: #{forward.1} parent=1 // pred_fallthru
      _
    // Predicated region
    $region34: #{forward.1} parent=1 // pred_check
      _
    $region35: #{forward.1} parent=1 // pred_check_branch
      %68 = sbr.rel (0) target = $region37
    $region36: #{forward.1} parent=1 // pred_region
      _
    $region37: #{forward.1} parent=1 // pred_fallthru
      _
    // Predicated region
    $region38: #{forward.1} parent=1 // pred_check
      _
    $region39: #{forward.1} parent=1 // pred_check_branch
      %70 = sbr.rel (0) target = $region41
    $region40: #{forward.1} parent=1 // pred_region
      %s72 = ssub.s32 9600, 9600
      %73 = vsyncadd [#allocation3], %s72
      %s74 = sshll.u32 [#allocation7], 4
      %s75 = int_to_ptr.vmem [resolvable:$true] %s74
      %80 = dma.hbm_to_vmem [thread:$0]  %s9, 9600, %s75, [#allocation3], 192, 192, 12
    $region41: #{forward.1} parent=1 // pred_fallthru
      _
    // Predicated region
    $region42: #{forward.1} parent=1 // pred_check
      _
    $region43: #{forward.1} parent=1 // pred_check_branch
      %82 = sbr.rel (0) target = $region45
    $region44: #{forward.1} parent=1 // pred_region
      _
    $region45: #{forward.1} parent=1 // pred_fallthru
      _
    // Predicated region
    $region46: #{forward.1} parent=1 // pred_check
      _
    $region47: #{forward.1} parent=1 // pred_check_branch
      %84 = sbr.rel (0) target = $region49
    $region48: #{forward.1} parent=1 // pred_region
      _
    $region49: #{forward.1} parent=1 // pred_fallthru
      _
    // Predicated region
    $region50: #{forward.1} parent=1 // pred_check
      _
    $region51: #{forward.1} parent=1 // pred_check_branch
      %86 = sbr.rel (0) target = $region53
    $region52: #{forward.1} parent=1 // pred_region
      _
    $region53: #{forward.1} parent=1 // pred_fallthru
      _
    // Predicated region
    $region54: #{forward.1} parent=1 // pred_check
      _
    $region55: #{forward.1} parent=1 // pred_check_branch
      %88 = sbr.rel (0) target = $region57
    $region56: #{forward.1} parent=1 // pred_region
      _
    $region57: #{forward.1} parent=1 // pred_fallthru
      _
    // Predicated region
    $region58: #{forward.1} parent=1 // pred_check
      _
    $region59: #{forward.1} parent=1 // pred_check_branch
      %90 = sbr.rel (0) target = $region61
    $region60: #{forward.1} parent=1 // pred_region
      _
    $region61: #{forward.1} parent=1 // pred_fallthru
      _
    // Predicated region
    $region62: #{forward.1} parent=1 // pred_check
      _
    $region63: #{forward.1} parent=1 // pred_check_branch
      %92 = sbr.rel (0) target = $region65
    $region64: #{forward.1} parent=1 // pred_region
      _
    $region65: #{forward.1} parent=1 // pred_fallthru
      _
    // Predicated region
    $region66: #{forward.1} parent=1 // pred_check
      _
    $region67: #{forward.1} parent=1 // pred_check_branch
      %94 = sbr.rel (0) target = $region69
    $region68: #{forward.1} parent=1 // pred_region
      _
    $region69: #{forward.1} parent=1 // pred_fallthru
      _
    // Predicated region
    $region70: #{forward.1} parent=1 // pred_check
      _
    $region71: #{forward.1} parent=1 // pred_check_branch
      %96 = sbr.rel (0) target = $region73
    $region72: #{forward.1} parent=1 // pred_region
      _
    $region73: #{forward.1} parent=1 // pred_fallthru
      _
    // Predicated region
    $region74: #{forward.1} parent=1 // pred_check
      _
    $region75: #{forward.1} parent=1 // pred_check_branch
      %98 = sbr.rel (0) target = $region77
    $region76: #{forward.1} parent=1 // pred_region
      _
    $region77: #{forward.1} parent=1 // pred_fallthru
      _
    // Predicated region
    $region78: #{forward.1} parent=1 // pred_check
      _
    $region79: #{forward.1} parent=1 // pred_check_branch
      %100 = sbr.rel (0) target = $region81
    $region80: #{forward.1} parent=1 // pred_region
      _
    $region81: #{forward.1} parent=1 // pred_fallthru
      _
    // Predicated region
    $region82: #{forward.1} parent=1 // pred_check
      _
    $region83: #{forward.1} parent=1 // pred_check_branch
      %102 = sbr.rel (0) target = $region85
    $region84: #{forward.1} parent=1 // pred_region
      _
    $region85: #{forward.1} parent=1 // pred_fallthru
      _
    // Predicated region
    $region86: #{forward.1} parent=1 // pred_check
      _
    $region87: #{forward.1} parent=1 // pred_check_branch
      %104 = sbr.rel (0) target = $region89
    $region88: #{forward.1} parent=1 // pred_region
      _
    $region89: #{forward.1} parent=1 // pred_fallthru
      _
    // Predicated region
    $region90: #{forward.1} parent=1 // pred_check
      _
    $region91: #{forward.1} parent=1 // pred_check_branch
      %106 = sbr.rel (0) target = $region93
    $region92: #{forward.1} parent=1 // pred_region
      _
    $region93: #{forward.1} parent=1 // pred_fallthru
      _
    // Predicated region
    $region94: #{forward.1} parent=1 // pred_check
      _
    $region95: #{forward.1} parent=1 // pred_check_branch
      %108 = sbr.rel (0) target = $region97
    $region96: #{forward.1} parent=1 // pred_region
      _
    $region97: #{forward.1} parent=1 // pred_fallthru
      _
    // Predicated region
    $region98: #{forward.1} parent=1 // pred_check
      _
    $region99: #{forward.1} parent=1 // pred_check_branch
      %110 = sbr.rel (0) target = $region101
    $region100: #{forward.1} parent=1 // pred_region
      _
    $region101: #{forward.1} parent=1 // pred_fallthru
      _
    // Predicated region
    $region102: #{forward.1} parent=1 // pred_check
      _
    $region103: #{forward.1} parent=1 // pred_check_branch
      %112 = sbr.rel (0) target = $region105
    $region104: #{forward.1} parent=1 // pred_region
      _
    $region105: #{forward.1} parent=1 // pred_fallthru
      _
    // Predicated region
    $region106: #{forward.1} parent=1 // pred_check
      _
    $region107: #{forward.1} parent=1 // pred_check_branch
      %114 = sbr.rel (0) target = $region109
    $region108: #{forward.1} parent=1 // pred_region
      _
    $region109: #{forward.1} parent=1 // pred_fallthru
      _
    // Predicated region
    $region110: #{forward.1} parent=1 // pred_check
      _
    $region111: #{forward.1} parent=1 // pred_check_branch
      %116 = sbr.rel (0) target = $region113
    $region112: #{forward.1} parent=1 // pred_region
      %117 = dma.done [#allocation4], 16
    $region113: #{forward.1} parent=1 // pred_fallthru
      _
    // Predicated region
    $region114: #{forward.1} parent=1 // pred_check
      _
    $region115: #{forward.1} parent=1 // pred_check_branch
      %119 = sbr.rel (0) target = $region117
    $region116: #{forward.1} parent=1 // pred_region
      %120 = dma.done [#allocation6], 16
    $region117: #{forward.1} parent=1 // pred_fallthru
      _
    // Predicated region
    $region118: #{forward.1} parent=1 // pred_check
      _
    $region119: #{forward.1} parent=1 // pred_check_branch
      %122 = sbr.rel (0) target = $region121
    $region120: #{forward.1} parent=1 // pred_region
      %123 = dma.done [#allocation3], 9600
    $region121: #{forward.1} parent=1 // pred_fallthru
      _
    %124 = sfence
    %s126 = sld [smem:[#allocation2]]
    %s127 = scalar_lea.vmem %s2, %s126
    %v128 = vld [vmem:[%s127] sm:$0x1]
    %s129 = sld [smem:[#allocation2 + $0x1]]
    %s130 = sadd.s32 %s129, 8
    %s131 = scalar_lea.vmem %s2, %s130
    %v132 = vld [vmem:[%s131] sm:$0x1]
    %v134 = vrot.slane %v132, 7
    %vm136 = vcmask 1040384
    %v137 = vsel %vm136, %v128, %v134
    %s138 = sld [smem:[#allocation5]]
    %s139 = scalar_lea.vmem %s2, %s138
    %v140 = vld [vmem:[%s139] sm:$0x1]
    %s141 = sld [smem:[#allocation5 + $0x1]]
    %s142 = sadd.s32 %s141, 8
    %s143 = scalar_lea.vmem %s2, %s142
    %v144 = vld [vmem:[%s143] sm:$0x1]
    %v146 = vrot.slane %v144, 7
    %v148 = vsel %vm136, %v140, %v146
    %v149 = vpack.c.bf16 %v137, %v137
    %v150 = vld [vmem:[%s6] sm:$0xff]
    %v151 = vld [vmem:[%s6 + $0x8] sm:$0xff]
    %v152 = vpack.c.bf16 %v148, %v148
    %v153 = vld [vmem:[%s7] sm:$0xff]
    %v154 = vld [vmem:[%s7 + $0x8] sm:$0xff]
    %v157 = vunpack.c.l.b16 %v153
    %v158 = vunpack.c.h.b16 %v153
    %v159 = vunpack.c.l.b16 %v154
    %v160 = vunpack.c.h.b16 %v154
    %v161 = vpack.c.b16 %v157, %v157
    %v162 = vpack.c.b16 %v158, %v158
    %v163 = vpack.c.b16 %v159, %v159
    %v164 = vpack.c.b16 %v160, %v160
    %vm165 = vcmask 64512
    %v167 = vsel %vm165, %v152, 0
    %vm169 = vcmask 1043456
    %v171 = vsel %vm169, %v161, 0
    %v174 = vsel %vm169, %v162, 0
    %v177 = vsel %vm169, %v163, 0
    %v180 = vsel %vm169, %v164, 0
    %182 = vmatprep.subr.bf16.mxu0 0
    %183 = vmatpush1.bf16.msra.mxu0 0
    %184 = vmatprep.subr.bf16.mxu0 0
    %185 = vmatpush1.bf16.msra.mxu0 0
    %186 = vmatprep.subr.bf16.mxu0 0
    %187 = vmatpush1.bf16.msra.mxu0 0
    %188 = vmatprep.subr.bf16.mxu0 0
    %189 = vmatpush1.bf16.msra.mxu0 0
    %190 = vmatprep.subr.bf16.mxu0 0
    %191 = vmatpush1.bf16.msra.mxu0 0
    %192 = vmatprep.subr.bf16.mxu0 0
    %193 = vmatpush1.bf16.msra.mxu0 0
    %194 = vmatprep.subr.bf16.mxu0 0
    %195 = vmatpush1.bf16.msra.mxu0 0
    %196 = vmatprep.subr.bf16.mxu0 %v174
    %197 = vmatpush1.bf16.msra.mxu0 %v171
    %198 = vmatprep.subr.bf16.mxu0 0
    %199 = vmatpush2.bf16.msra.mxu0 0
    %200 = vmatprep.subr.bf16.mxu0 0
    %201 = vmatpush2.bf16.msra.mxu0 0
    %202 = vmatprep.subr.bf16.mxu0 0
    %203 = vmatpush2.bf16.msra.mxu0 0
    %204 = vmatprep.subr.bf16.mxu0 0
    %205 = vmatpush2.bf16.msra.mxu0 0
    %206 = vmatprep.subr.bf16.mxu0 0
    %207 = vmatpush2.bf16.msra.mxu0 0
    %208 = vmatprep.subr.bf16.mxu0 0
    %209 = vmatpush2.bf16.msra.mxu0 0
    %210 = vmatprep.subr.bf16.mxu0 0
    %211 = vmatpush2.bf16.msra.mxu0 0
    %212 = vmatprep.subr.bf16.mxu0 0
    %213 = vmatpush2.bf16.msra.mxu0 0
    %214 = vmatprep.mubr.bf16.mxu0 0
    %215 = vmatmul.mubr.bf16.gmra.mxu0 %v167
    %v216 = vpop.f32.mrf.mxu0
    %v217 = vadd.f32 0.0, %v216
    %v218 = vpop.f32.mrf.mxu0
    %v219 = vadd.f32 0.0, %v218
    %v220 = vpop.f32.mrf.mxu0
    %v221 = vpop.f32.mrf.mxu0
    %222 = vdwg.mxu0
    %223 = vmatprep.subr.bf16.mxu0 0
    %224 = vmatpush1.bf16.msra.mxu0 0
    %225 = vmatprep.subr.bf16.mxu0 0
    %226 = vmatpush1.bf16.msra.mxu0 0
    %227 = vmatprep.subr.bf16.mxu0 0
    %228 = vmatpush1.bf16.msra.mxu0 0
    %229 = vmatprep.subr.bf16.mxu0 0
    %230 = vmatpush1.bf16.msra.mxu0 0
    %231 = vmatprep.subr.bf16.mxu0 0
    %232 = vmatpush1.bf16.msra.mxu0 0
    %233 = vmatprep.subr.bf16.mxu0 0
    %234 = vmatpush1.bf16.msra.mxu0 0
    %235 = vmatprep.subr.bf16.mxu0 0
    %236 = vmatpush1.bf16.msra.mxu0 0
    %237 = vmatprep.subr.bf16.mxu0 %v180
    %238 = vmatpush1.bf16.msra.mxu0 %v177
    %239 = vmatprep.subr.bf16.mxu0 0
    %240 = vmatpush2.bf16.msra.mxu0 0
    %241 = vmatprep.subr.bf16.mxu0 0
    %242 = vmatpush2.bf16.msra.mxu0 0
    %243 = vmatprep.subr.bf16.mxu0 0
    %244 = vmatpush2.bf16.msra.mxu0 0
    %245 = vmatprep.subr.bf16.mxu0 0
    %246 = vmatpush2.bf16.msra.mxu0 0
    %247 = vmatprep.subr.bf16.mxu0 0
    %248 = vmatpush2.bf16.msra.mxu0 0
    %249 = vmatprep.subr.bf16.mxu0 0
    %250 = vmatpush2.bf16.msra.mxu0 0
    %251 = vmatprep.subr.bf16.mxu0 0
    %252 = vmatpush2.bf16.msra.mxu0 0
    %253 = vmatprep.subr.bf16.mxu0 0
    %254 = vmatpush2.bf16.msra.mxu0 0
    %255 = vmatprep.mubr.bf16.mxu0 0
    %256 = vmatmul.mubr.bf16.gmra.mxu0 %v167
    %v257 = vpop.f32.mrf.mxu0
    %v258 = vadd.f32 0.0, %v257
    %v259 = vpop.f32.mrf.mxu0
    %v260 = vadd.f32 0.0, %v259
    %v261 = vpop.f32.mrf.mxu0
    %v262 = vpop.f32.mrf.mxu0
    %263 = vdwg.mxu0
    %v266 = vunpack.c.l.b16 %v150
    %v267 = vunpack.c.h.b16 %v150
    %v268 = vunpack.c.l.b16 %v151
    %v269 = vunpack.c.h.b16 %v151
    %v270 = vpack.c.b16 %v266, %v266
    %v271 = vpack.c.b16 %v267, %v267
    %v272 = vpack.c.b16 %v268, %v268
    %v273 = vpack.c.b16 %v269, %v269
    %v275 = vsel %vm165, %v149, 0
    %v278 = vsel %vm169, %v270, 0
    %v281 = vsel %vm169, %v271, 0
    %v284 = vsel %vm169, %v272, 0
    %v287 = vsel %vm169, %v273, 0
    %289 = vmatprep.subr.bf16.mxu0 0
    %290 = vmatpush1.bf16.msra.mxu0 0
    %291 = vmatprep.subr.bf16.mxu0 0
    %292 = vmatpush1.bf16.msra.mxu0 0
    %293 = vmatprep.subr.bf16.mxu0 0
    %294 = vmatpush1.bf16.msra.mxu0 0
    %295 = vmatprep.subr.bf16.mxu0 0
    %296 = vmatpush1.bf16.msra.mxu0 0
    %297 = vmatprep.subr.bf16.mxu0 0
    %298 = vmatpush1.bf16.msra.mxu0 0
    %299 = vmatprep.subr.bf16.mxu0 0
    %300 = vmatpush1.bf16.msra.mxu0 0
    %301 = vmatprep.subr.bf16.mxu0 0
    %302 = vmatpush1.bf16.msra.mxu0 0
    %303 = vmatprep.subr.bf16.mxu0 %v281
    %304 = vmatpush1.bf16.msra.mxu0 %v278
    %305 = vmatprep.subr.bf16.mxu0 0
    %306 = vmatpush2.bf16.msra.mxu0 0
    %307 = vmatprep.subr.bf16.mxu0 0
    %308 = vmatpush2.bf16.msra.mxu0 0
    %309 = vmatprep.subr.bf16.mxu0 0
    %310 = vmatpush2.bf16.msra.mxu0 0
    %311 = vmatprep.subr.bf16.mxu0 0
    %312 = vmatpush2.bf16.msra.mxu0 0
    %313 = vmatprep.subr.bf16.mxu0 0
    %314 = vmatpush2.bf16.msra.mxu0 0
    %315 = vmatprep.subr.bf16.mxu0 0
    %316 = vmatpush2.bf16.msra.mxu0 0
    %317 = vmatprep.subr.bf16.mxu0 0
    %318 = vmatpush2.bf16.msra.mxu0 0
    %319 = vmatprep.subr.bf16.mxu0 0
    %320 = vmatpush2.bf16.msra.mxu0 0
    %321 = vmatprep.mubr.bf16.mxu0 0
    %322 = vmatmul.mubr.bf16.gmra.mxu0 %v275
    %v323 = vpop.f32.mrf.mxu0
    %v324 = vadd.f32 %v217, %v323
    %v325 = vpop.f32.mrf.mxu0
    %v326 = vadd.f32 %v219, %v325
    %v327 = vpop.f32.mrf.mxu0
    %v328 = vpop.f32.mrf.mxu0
    %329 = vdwg.mxu0
    %330 = vmatprep.subr.bf16.mxu0 0
    %331 = vmatpush1.bf16.msra.mxu0 0
    %332 = vmatprep.subr.bf16.mxu0 0
    %333 = vmatpush1.bf16.msra.mxu0 0
    %334 = vmatprep.subr.bf16.mxu0 0
    %335 = vmatpush1.bf16.msra.mxu0 0
    %336 = vmatprep.subr.bf16.mxu0 0
    %337 = vmatpush1.bf16.msra.mxu0 0
    %338 = vmatprep.subr.bf16.mxu0 0
    %339 = vmatpush1.bf16.msra.mxu0 0
    %340 = vmatprep.subr.bf16.mxu0 0
    %341 = vmatpush1.bf16.msra.mxu0 0
    %342 = vmatprep.subr.bf16.mxu0 0
    %343 = vmatpush1.bf16.msra.mxu0 0
    %344 = vmatprep.subr.bf16.mxu0 %v287
    %345 = vmatpush1.bf16.msra.mxu0 %v284
    %346 = vmatprep.subr.bf16.mxu0 0
    %347 = vmatpush2.bf16.msra.mxu0 0
    %348 = vmatprep.subr.bf16.mxu0 0
    %349 = vmatpush2.bf16.msra.mxu0 0
    %350 = vmatprep.subr.bf16.mxu0 0
    %351 = vmatpush2.bf16.msra.mxu0 0
    %352 = vmatprep.subr.bf16.mxu0 0
    %353 = vmatpush2.bf16.msra.mxu0 0
    %354 = vmatprep.subr.bf16.mxu0 0
    %355 = vmatpush2.bf16.msra.mxu0 0
    %356 = vmatprep.subr.bf16.mxu0 0
    %357 = vmatpush2.bf16.msra.mxu0 0
    %358 = vmatprep.subr.bf16.mxu0 0
    %359 = vmatpush2.bf16.msra.mxu0 0
    %360 = vmatprep.subr.bf16.mxu0 0
    %361 = vmatpush2.bf16.msra.mxu0 0
    %362 = vmatprep.mubr.bf16.mxu0 0
    %363 = vmatmul.mubr.bf16.gmra.mxu0 %v275
    %v364 = vpop.f32.mrf.mxu0
    %v365 = vadd.f32 %v258, %v364
    %v366 = vpop.f32.mrf.mxu0
    %v367 = vadd.f32 %v260, %v366
    %v368 = vpop.f32.mrf.mxu0
    %v369 = vpop.f32.mrf.mxu0
    %370 = vdwg.mxu0
    %v371 = vld [vmem:[%s8] sm:$0xf]
    %v373 = vlaneseq
    %v374 = vshrl.u32 %v373, 7
    %v375 = vsub.s32 0, %v374
    %v376 = vrot.slane %v371, %v375
    %v377 = vlaneseq
    %v378 = vshrl.u32 %v377, 7
    %v379 = vsub.s32 1, %v378
    %v380 = vrot.slane %v371, %v379
    %v381 = vlaneseq
    %v382 = vshrl.u32 %v381, 7
    %v383 = vsub.s32 2, %v382
    %v384 = vrot.slane %v371, %v383
    %v385 = vlaneseq
    %v386 = vshrl.u32 %v385, 7
    %v387 = vsub.s32 3, %v386
    %v388 = vrot.slane %v371, %v387
    %v393 = vadd.f32 %v324, %v376
    %v394 = vadd.f32 %v326, %v380
    %v395 = vadd.f32 %v365, %v384
    %v396 = vadd.f32 %v367, %v388
    %v397 = vmax.f32 %v393, 0.0
    %v398 = vmax.f32 %v394, 0.0
    %v399 = vmax.f32 %v395, 0.0
    %v400 = vmax.f32 %v396, 0.0
    %v401 = vpack.c.bf16 %v397, %v397
    %v402 = vpack.c.bf16 %v398, %v398
    %v403 = vpack.c.bf16 %v399, %v399
    %v404 = vpack.c.bf16 %v400, %v400
    %v405 = vld [vmem:[#allocation7] sm:$0xff]
    %v406 = vld [vmem:[#allocation7 + $0x8] sm:$0xf]
    %v407 = vld [vmem:[#allocation7 + $0xc] sm:$0xff]
    %v408 = vld [vmem:[#allocation7 + $0x14] sm:$0xf]
    %v409 = vld [vmem:[#allocation7 + $0x18] sm:$0xff]
    %v410 = vld [vmem:[#allocation7 + $0x20] sm:$0xf]
    %v411 = vld [vmem:[#allocation7 + $0x24] sm:$0xff]
    %v412 = vld [vmem:[#allocation7 + $0x2c] sm:$0xf]
    %v413 = vld [vmem:[#allocation7 + $0x30] sm:$0xff]
    %v414 = vld [vmem:[#allocation7 + $0x38] sm:$0xf]
    %v415 = vld [vmem:[#allocation7 + $0x3c] sm:$0xff]
    %v416 = vld [vmem:[#allocation7 + $0x44] sm:$0xf]
    %v417 = vld [vmem:[#allocation7 + $0x48] sm:$0xff]
    %v418 = vld [vmem:[#allocation7 + $0x50] sm:$0xf]
    %v419 = vld [vmem:[#allocation7 + $0x54] sm:$0xff]
    %v420 = vld [vmem:[#allocation7 + $0x5c] sm:$0xf]
    %v421 = vld [vmem:[#allocation7 + $0x60] sm:$0xff]
    %v422 = vld [vmem:[#allocation7 + $0x68] sm:$0xf]
    %v423 = vld [vmem:[#allocation7 + $0x6c] sm:$0xff]
    %v424 = vld [vmem:[#allocation7 + $0x74] sm:$0xf]
    %v425 = vld [vmem:[#allocation7 + $0x78] sm:$0xff]
    %v426 = vld [vmem:[#allocation7 + $0x80] sm:$0xf]
    %v427 = vld [vmem:[#allocation7 + $0x84] sm:$0xff]
    %v428 = vld [vmem:[#allocation7 + $0x8c] sm:$0xf]
    %v429 = vld [vmem:[#allocation7 + $0x90] sm:$0xff]
    %v430 = vld [vmem:[#allocation7 + $0x98] sm:$0xf]
    %v431 = vld [vmem:[#allocation7 + $0x9c] sm:$0xff]
    %v432 = vld [vmem:[#allocation7 + $0xa4] sm:$0xf]
    %v433 = vld [vmem:[#allocation7 + $0xa8] sm:$0xff]
    %v434 = vld [vmem:[#allocation7 + $0xb0] sm:$0xf]
    %v435 = vld [vmem:[#allocation7 + $0xb4] sm:$0xff]
    %v436 = vld [vmem:[#allocation7 + $0xbc] sm:$0xf]
    %v437 = vld [vmem:[#allocation7 + $0xc0] sm:$0xff]
    %v438 = vld [vmem:[#allocation7 + $0xc8] sm:$0xf]
    %v439 = vld [vmem:[#allocation7 + $0xcc] sm:$0xff]
    %v440 = vld [vmem:[#allocation7 + $0xd4] sm:$0xf]
    %v441 = vld [vmem:[#allocation7 + $0xd8] sm:$0xff]
    %v442 = vld [vmem:[#allocation7 + $0xe0] sm:$0xf]
    %v443 = vld [vmem:[#allocation7 + $0xe4] sm:$0xff]
    %v444 = vld [vmem:[#allocation7 + $0xec] sm:$0xf]
    %v445 = vld [vmem:[#allocation7 + $0xf0] sm:$0xff]
    %v446 = vld [vmem:[#allocation7 + $0xf8] sm:$0xf]
    %v447 = vld [vmem:[#allocation7 + $0xfc] sm:$0xff]
    %v448 = vld [vmem:[#allocation7 + $0x104] sm:$0xf]
    %v449 = vld [vmem:[#allocation7 + $0x108] sm:$0xff]
    %v450 = vld [vmem:[#allocation7 + $0x110] sm:$0xf]
    %v451 = vld [vmem:[#allocation7 + $0x114] sm:$0xff]
    %v452 = vld [vmem:[#allocation7 + $0x11c] sm:$0xf]
    %v453 = vld [vmem:[#allocation7 + $0x120] sm:$0xff]
    %v454 = vld [vmem:[#allocation7 + $0x128] sm:$0xf]
    %v455 = vld [vmem:[#allocation7 + $0x12c] sm:$0xff]
    %v456 = vld [vmem:[#allocation7 + $0x134] sm:$0xf]
    %v457 = vld [vmem:[#allocation7 + $0x138] sm:$0xff]
    %v458 = vld [vmem:[#allocation7 + $0x140] sm:$0xf]
    %v459 = vld [vmem:[#allocation7 + $0x144] sm:$0xff]
    %v460 = vld [vmem:[#allocation7 + $0x14c] sm:$0xf]
    %v461 = vld [vmem:[#allocation7 + $0x150] sm:$0xff]
    %v462 = vld [vmem:[#allocation7 + $0x158] sm:$0xf]
    %v463 = vld [vmem:[#allocation7 + $0x15c] sm:$0xff]
    %v464 = vld [vmem:[#allocation7 + $0x164] sm:$0xf]
    %v465 = vld [vmem:[#allocation7 + $0x168] sm:$0xff]
    %v466 = vld [vmem:[#allocation7 + $0x170] sm:$0xf]
    %v467 = vld [vmem:[#allocation7 + $0x174] sm:$0xff]
    %v468 = vld [vmem:[#allocation7 + $0x17c] sm:$0xf]
    %v469 = vld [vmem:[#allocation7 + $0x180] sm:$0xff]
    %v470 = vld [vmem:[#allocation7 + $0x188] sm:$0xf]
    %v471 = vld [vmem:[#allocation7 + $0x18c] sm:$0xff]
    %v472 = vld [vmem:[#allocation7 + $0x194] sm:$0xf]
    %v473 = vld [vmem:[#allocation7 + $0x198] sm:$0xff]
    %v474 = vld [vmem:[#allocation7 + $0x1a0] sm:$0xf]
    %v475 = vld [vmem:[#allocation7 + $0x1a4] sm:$0xff]
    %v476 = vld [vmem:[#allocation7 + $0x1ac] sm:$0xf]
    %v477 = vld [vmem:[#allocation7 + $0x1b0] sm:$0xff]
    %v478 = vld [vmem:[#allocation7 + $0x1b8] sm:$0xf]
    %v479 = vld [vmem:[#allocation7 + $0x1bc] sm:$0xff]
    %v480 = vld [vmem:[#allocation7 + $0x1c4] sm:$0xf]
    %v481 = vld [vmem:[#allocation7 + $0x1c8] sm:$0xff]
    %v482 = vld [vmem:[#allocation7 + $0x1d0] sm:$0xf]
    %v483 = vld [vmem:[#allocation7 + $0x1d4] sm:$0xff]
    %v484 = vld [vmem:[#allocation7 + $0x1dc] sm:$0xf]
    %v485 = vld [vmem:[#allocation7 + $0x1e0] sm:$0xff]
    %v486 = vld [vmem:[#allocation7 + $0x1e8] sm:$0xf]
    %v487 = vld [vmem:[#allocation7 + $0x1ec] sm:$0xff]
    %v488 = vld [vmem:[#allocation7 + $0x1f4] sm:$0xf]
    %v489 = vld [vmem:[#allocation7 + $0x1f8] sm:$0xff]
    %v490 = vld [vmem:[#allocation7 + $0x200] sm:$0xf]
    %v491 = vld [vmem:[#allocation7 + $0x204] sm:$0xff]
    %v492 = vld [vmem:[#allocation7 + $0x20c] sm:$0xf]
    %v493 = vld [vmem:[#allocation7 + $0x210] sm:$0xff]
    %v494 = vld [vmem:[#allocation7 + $0x218] sm:$0xf]
    %v495 = vld [vmem:[#allocation7 + $0x21c] sm:$0xff]
    %v496 = vld [vmem:[#allocation7 + $0x224] sm:$0xf]
    %v497 = vld [vmem:[#allocation7 + $0x228] sm:$0xff]
    %v498 = vld [vmem:[#allocation7 + $0x230] sm:$0xf]
    %v499 = vld [vmem:[#allocation7 + $0x234] sm:$0xff]
    %v500 = vld [vmem:[#allocation7 + $0x23c] sm:$0xf]
    %v501 = vld [vmem:[#allocation7 + $0x240] sm:$0xff]
    %v502 = vld [vmem:[#allocation7 + $0x248] sm:$0xf]
    %v503 = vld [vmem:[#allocation7 + $0x24c] sm:$0xff]
    %v504 = vld [vmem:[#allocation7 + $0x254] sm:$0xf]
    %v505 = vld [vmem:[%s10] sm:$0x7]
    %v507 = vlaneseq
    %v508 = vshrl.u32 %v507, 7
    %v509 = vsub.s32 0, %v508
    %v510 = vrot.slane %v505, %v509
    %v511 = vlaneseq
    %v512 = vshrl.u32 %v511, 7
    %v513 = vsub.s32 1, %v512
    %v514 = vrot.slane %v505, %v513
    %v515 = vlaneseq
    %v516 = vshrl.u32 %v515, 7
    %v517 = vsub.s32 2, %v516
    %v518 = vrot.slane %v505, %v517
    %v622 = vunpack.c.l.b16 %v405
    %v623 = vunpack.c.h.b16 %v405
    %v624 = vunpack.c.l.b16 %v406
    %v625 = vunpack.c.l.b16 %v407
    %v626 = vunpack.c.h.b16 %v407
    %v627 = vunpack.c.l.b16 %v408
    %v628 = vunpack.c.l.b16 %v409
    %v629 = vunpack.c.h.b16 %v409
    %v630 = vunpack.c.l.b16 %v410
    %v631 = vunpack.c.l.b16 %v411
    %v632 = vunpack.c.h.b16 %v411
    %v633 = vunpack.c.l.b16 %v412
    %v634 = vunpack.c.l.b16 %v413
    %v635 = vunpack.c.h.b16 %v413
    %v636 = vunpack.c.l.b16 %v414
    %v637 = vunpack.c.l.b16 %v415
    %v638 = vunpack.c.h.b16 %v415
    %v639 = vunpack.c.l.b16 %v416
    %v640 = vunpack.c.l.b16 %v417
    %v641 = vunpack.c.h.b16 %v417
    %v642 = vunpack.c.l.b16 %v418
    %v643 = vunpack.c.l.b16 %v419
    %v644 = vunpack.c.h.b16 %v419
    %v645 = vunpack.c.l.b16 %v420
    %v646 = vunpack.c.l.b16 %v421
    %v647 = vunpack.c.h.b16 %v421
    %v648 = vunpack.c.l.b16 %v422
    %v649 = vunpack.c.l.b16 %v423
    %v650 = vunpack.c.h.b16 %v423
    %v651 = vunpack.c.l.b16 %v424
    %v652 = vunpack.c.l.b16 %v425
    %v653 = vunpack.c.h.b16 %v425
    %v654 = vunpack.c.l.b16 %v426
    %v655 = vunpack.c.l.b16 %v427
    %v656 = vunpack.c.h.b16 %v427
    %v657 = vunpack.c.l.b16 %v428
    %v658 = vunpack.c.l.b16 %v429
    %v659 = vunpack.c.h.b16 %v429
    %v660 = vunpack.c.l.b16 %v430
    %v661 = vunpack.c.l.b16 %v431
    %v662 = vunpack.c.h.b16 %v431
    %v663 = vunpack.c.l.b16 %v432
    %v664 = vunpack.c.l.b16 %v433
    %v665 = vunpack.c.h.b16 %v433
    %v666 = vunpack.c.l.b16 %v434
    %v667 = vunpack.c.l.b16 %v435
    %v668 = vunpack.c.h.b16 %v435
    %v669 = vunpack.c.l.b16 %v436
    %v670 = vunpack.c.l.b16 %v437
    %v671 = vunpack.c.h.b16 %v437
    %v672 = vunpack.c.l.b16 %v438
    %v673 = vunpack.c.l.b16 %v439
    %v674 = vunpack.c.h.b16 %v439
    %v675 = vunpack.c.l.b16 %v440
    %v676 = vunpack.c.l.b16 %v441
    %v677 = vunpack.c.h.b16 %v441
    %v678 = vunpack.c.l.b16 %v442
    %v679 = vunpack.c.l.b16 %v443
    %v680 = vunpack.c.h.b16 %v443
    %v681 = vunpack.c.l.b16 %v444
    %v682 = vunpack.c.l.b16 %v445
    %v683 = vunpack.c.h.b16 %v445
    %v684 = vunpack.c.l.b16 %v446
    %v685 = vunpack.c.l.b16 %v447
    %v686 = vunpack.c.h.b16 %v447
    %v687 = vunpack.c.l.b16 %v448
    %v688 = vunpack.c.l.b16 %v449
    %v689 = vunpack.c.h.b16 %v449
    %v690 = vunpack.c.l.b16 %v450
    %v691 = vunpack.c.l.b16 %v451
    %v692 = vunpack.c.h.b16 %v451
    %v693 = vunpack.c.l.b16 %v452
    %v694 = vunpack.c.l.b16 %v453
    %v695 = vunpack.c.h.b16 %v453
    %v696 = vunpack.c.l.b16 %v454
    %v697 = vunpack.c.l.b16 %v455
    %v698 = vunpack.c.h.b16 %v455
    %v699 = vunpack.c.l.b16 %v456
    %v700 = vunpack.c.l.b16 %v457
    %v701 = vunpack.c.h.b16 %v457
    %v702 = vunpack.c.l.b16 %v458
    %v703 = vunpack.c.l.b16 %v459
    %v704 = vunpack.c.h.b16 %v459
    %v705 = vunpack.c.l.b16 %v460
    %v706 = vunpack.c.l.b16 %v461
    %v707 = vunpack.c.h.b16 %v461
    %v708 = vunpack.c.l.b16 %v462
    %v709 = vunpack.c.l.b16 %v463
    %v710 = vunpack.c.h.b16 %v463
    %v711 = vunpack.c.l.b16 %v464
    %v712 = vunpack.c.l.b16 %v465
    %v713 = vunpack.c.h.b16 %v465
    %v714 = vunpack.c.l.b16 %v466
    %v715 = vunpack.c.l.b16 %v467
    %v716 = vunpack.c.h.b16 %v467
    %v717 = vunpack.c.l.b16 %v468
    %v718 = vunpack.c.l.b16 %v469
    %v719 = vunpack.c.h.b16 %v469
    %v720 = vunpack.c.l.b16 %v470
    %v721 = vunpack.c.l.b16 %v471
    %v722 = vunpack.c.h.b16 %v471
    %v723 = vunpack.c.l.b16 %v472
    %v724 = vunpack.c.l.b16 %v473
    %v725 = vunpack.c.h.b16 %v473
    %v726 = vunpack.c.l.b16 %v474
    %v727 = vunpack.c.l.b16 %v475
    %v728 = vunpack.c.h.b16 %v475
    %v729 = vunpack.c.l.b16 %v476
    %v730 = vunpack.c.l.b16 %v477
    %v731 = vunpack.c.h.b16 %v477
    %v732 = vunpack.c.l.b16 %v478
    %v733 = vunpack.c.l.b16 %v479
    %v734 = vunpack.c.h.b16 %v479
    %v735 = vunpack.c.l.b16 %v480
    %v736 = vunpack.c.l.b16 %v481
    %v737 = vunpack.c.h.b16 %v481
    %v738 = vunpack.c.l.b16 %v482
    %v739 = vunpack.c.l.b16 %v483
    %v740 = vunpack.c.h.b16 %v483
    %v741 = vunpack.c.l.b16 %v484
    %v742 = vunpack.c.l.b16 %v485
    %v743 = vunpack.c.h.b16 %v485
    %v744 = vunpack.c.l.b16 %v486
    %v745 = vunpack.c.l.b16 %v487
    %v746 = vunpack.c.h.b16 %v487
    %v747 = vunpack.c.l.b16 %v488
    %v748 = vunpack.c.l.b16 %v489
    %v749 = vunpack.c.h.b16 %v489
    %v750 = vunpack.c.l.b16 %v490
    %v751 = vunpack.c.l.b16 %v491
    %v752 = vunpack.c.h.b16 %v491
    %v753 = vunpack.c.l.b16 %v492
    %v754 = vunpack.c.l.b16 %v493
    %v755 = vunpack.c.h.b16 %v493
    %v756 = vunpack.c.l.b16 %v494
    %v757 = vunpack.c.l.b16 %v495
    %v758 = vunpack.c.h.b16 %v495
    %v759 = vunpack.c.l.b16 %v496
    %v760 = vunpack.c.l.b16 %v497
    %v761 = vunpack.c.h.b16 %v497
    %v762 = vunpack.c.l.b16 %v498
    %v763 = vunpack.c.l.b16 %v499
    %v764 = vunpack.c.h.b16 %v499
    %v765 = vunpack.c.l.b16 %v500
    %v766 = vunpack.c.l.b16 %v501
    %v767 = vunpack.c.h.b16 %v501
    %v768 = vunpack.c.l.b16 %v502
    %v769 = vunpack.c.l.b16 %v503
    %v770 = vunpack.c.h.b16 %v503
    %v771 = vunpack.c.l.b16 %v504
    %v772 = vpack.c.b16 %v625, %v622
    %v773 = vpack.c.b16 %v626, %v623
    %v774 = vpack.c.b16 %v627, %v624
    %v775 = vpack.c.b16 %v631, %v628
    %v776 = vpack.c.b16 %v632, %v629
    %v777 = vpack.c.b16 %v633, %v630
    %v778 = vpack.c.b16 %v637, %v634
    %v779 = vpack.c.b16 %v638, %v635
    %v780 = vpack.c.b16 %v639, %v636
    %v781 = vpack.c.b16 %v643, %v640
    %v782 = vpack.c.b16 %v644, %v641
    %v783 = vpack.c.b16 %v645, %v642
    %v784 = vpack.c.b16 %v649, %v646
    %v785 = vpack.c.b16 %v650, %v647
    %v786 = vpack.c.b16 %v651, %v648
    %v787 = vpack.c.b16 %v655, %v652
    %v788 = vpack.c.b16 %v656, %v653
    %v789 = vpack.c.b16 %v657, %v654
    %v790 = vpack.c.b16 %v661, %v658
    %v791 = vpack.c.b16 %v662, %v659
    %v792 = vpack.c.b16 %v663, %v660
    %v793 = vpack.c.b16 %v667, %v664
    %v794 = vpack.c.b16 %v668, %v665
    %v795 = vpack.c.b16 %v669, %v666
    %v796 = vpack.c.b16 %v673, %v670
    %v797 = vpack.c.b16 %v674, %v671
    %v798 = vpack.c.b16 %v675, %v672
    %v799 = vpack.c.b16 %v679, %v676
    %v800 = vpack.c.b16 %v680, %v677
    %v801 = vpack.c.b16 %v681, %v678
    %v802 = vpack.c.b16 %v685, %v682
    %v803 = vpack.c.b16 %v686, %v683
    %v804 = vpack.c.b16 %v687, %v684
    %v805 = vpack.c.b16 %v691, %v688
    %v806 = vpack.c.b16 %v692, %v689
    %v807 = vpack.c.b16 %v693, %v690
    %v808 = vpack.c.b16 %v697, %v694
    %v809 = vpack.c.b16 %v698, %v695
    %v810 = vpack.c.b16 %v699, %v696
    %v811 = vpack.c.b16 %v703, %v700
    %v812 = vpack.c.b16 %v704, %v701
    %v813 = vpack.c.b16 %v705, %v702
    %v814 = vpack.c.b16 %v709, %v706
    %v815 = vpack.c.b16 %v710, %v707
    %v816 = vpack.c.b16 %v711, %v708
    %v817 = vpack.c.b16 %v715, %v712
    %v818 = vpack.c.b16 %v716, %v713
    %v819 = vpack.c.b16 %v717, %v714
    %v820 = vpack.c.b16 %v721, %v718
    %v821 = vpack.c.b16 %v722, %v719
    %v822 = vpack.c.b16 %v723, %v720
    %v823 = vpack.c.b16 %v727, %v724
    %v824 = vpack.c.b16 %v728, %v725
    %v825 = vpack.c.b16 %v729, %v726
    %v826 = vpack.c.b16 %v733, %v730
    %v827 = vpack.c.b16 %v734, %v731
    %v828 = vpack.c.b16 %v735, %v732
    %v829 = vpack.c.b16 %v739, %v736
    %v830 = vpack.c.b16 %v740, %v737
    %v831 = vpack.c.b16 %v741, %v738
    %v832 = vpack.c.b16 %v745, %v742
    %v833 = vpack.c.b16 %v746, %v743
    %v834 = vpack.c.b16 %v747, %v744
    %v835 = vpack.c.b16 %v751, %v748
    %v836 = vpack.c.b16 %v752, %v749
    %v837 = vpack.c.b16 %v753, %v750
    %v838 = vpack.c.b16 %v757, %v754
    %v839 = vpack.c.b16 %v758, %v755
    %v840 = vpack.c.b16 %v759, %v756
    %v841 = vpack.c.b16 %v763, %v760
    %v842 = vpack.c.b16 %v764, %v761
    %v843 = vpack.c.b16 %v765, %v762
    %v844 = vpack.c.b16 %v769, %v766
    %v845 = vpack.c.b16 %v770, %v767
    %v846 = vpack.c.b16 %v771, %v768
    %vm922 = vcmask 130048
    %v924 = vsel %vm922, %v404, 0
    %926 = vmatprep.subr.bf16.mxu0 %v794
    %927 = vmatpush1.bf16.msra.mxu0 %v793
    %928 = vmatprep.subr.bf16.mxu0 %v791
    %929 = vmatpush1.bf16.msra.mxu0 %v790
    %930 = vmatprep.subr.bf16.mxu0 %v788
    %931 = vmatpush1.bf16.msra.mxu0 %v787
    %932 = vmatprep.subr.bf16.mxu0 %v785
    %933 = vmatpush1.bf16.msra.mxu0 %v784
    %934 = vmatprep.subr.bf16.mxu0 %v782
    %935 = vmatpush1.bf16.msra.mxu0 %v781
    %936 = vmatprep.subr.bf16.mxu0 %v779
    %937 = vmatpush1.bf16.msra.mxu0 %v778
    %938 = vmatprep.subr.bf16.mxu0 %v776
    %939 = vmatpush1.bf16.msra.mxu0 %v775
    %940 = vmatprep.subr.bf16.mxu0 %v773
    %941 = vmatpush1.bf16.msra.mxu0 %v772
    %942 = vmatprep.subr.bf16.mxu0 %v818
    %943 = vmatpush2.bf16.msra.mxu0 %v817
    %944 = vmatprep.subr.bf16.mxu0 %v815
    %945 = vmatpush2.bf16.msra.mxu0 %v814
    %946 = vmatprep.subr.bf16.mxu0 %v812
    %947 = vmatpush2.bf16.msra.mxu0 %v811
    %948 = vmatprep.subr.bf16.mxu0 %v809
    %949 = vmatpush2.bf16.msra.mxu0 %v808
    %950 = vmatprep.subr.bf16.mxu0 %v806
    %951 = vmatpush2.bf16.msra.mxu0 %v805
    %952 = vmatprep.subr.bf16.mxu0 %v803
    %953 = vmatpush2.bf16.msra.mxu0 %v802
    %954 = vmatprep.subr.bf16.mxu0 %v800
    %955 = vmatpush2.bf16.msra.mxu0 %v799
    %956 = vmatprep.subr.bf16.mxu0 %v797
    %957 = vmatpush2.bf16.msra.mxu0 %v796
    %958 = vmatprep.mubr.bf16.mxu0 %v402
    %959 = vmatmul.mubr.bf16.gmra.mxu0 %v401
    %v960 = vpop.f32.mrf.mxu0
    %v961 = vadd.f32 %v510, %v960
    %v962 = vpop.f32.mrf.mxu0
    %v963 = vadd.f32 %v514, %v962
    %v964 = vpop.f32.mrf.mxu0
    %v965 = vpop.f32.mrf.mxu0
    %966 = vdwg.mxu0
    %967 = vmatprep.subr.bf16.mxu0 %v842
    %968 = vmatpush1.bf16.msra.mxu0 %v841
    %969 = vmatprep.subr.bf16.mxu0 %v839
    %970 = vmatpush1.bf16.msra.mxu0 %v838
    %971 = vmatprep.subr.bf16.mxu0 %v836
    %972 = vmatpush1.bf16.msra.mxu0 %v835
    %973 = vmatprep.subr.bf16.mxu0 %v833
    %974 = vmatpush1.bf16.msra.mxu0 %v832
    %975 = vmatprep.subr.bf16.mxu0 %v830
    %976 = vmatpush1.bf16.msra.mxu0 %v829
    %977 = vmatprep.subr.bf16.mxu0 %v827
    %978 = vmatpush1.bf16.msra.mxu0 %v826
    %979 = vmatprep.subr.bf16.mxu0 %v824
    %980 = vmatpush1.bf16.msra.mxu0 %v823
    %981 = vmatprep.subr.bf16.mxu0 %v821
    %982 = vmatpush1.bf16.msra.mxu0 %v820
    %983 = vmatprep.subr.bf16.mxu0 0
    %984 = vmatpush2.bf16.msra.mxu0 0
    %985 = vmatprep.subr.bf16.mxu0 0
    %986 = vmatpush2.bf16.msra.mxu0 0
    %987 = vmatprep.subr.bf16.mxu0 0
    %988 = vmatpush2.bf16.msra.mxu0 0
    %989 = vmatprep.subr.bf16.mxu0 0
    %990 = vmatpush2.bf16.msra.mxu0 0
    %991 = vmatprep.subr.bf16.mxu0 0
    %992 = vmatpush2.bf16.msra.mxu0 0
    %993 = vmatprep.subr.bf16.mxu0 0
    %994 = vmatpush2.bf16.msra.mxu0 0
    %995 = vmatprep.subr.bf16.mxu0 0
    %996 = vmatpush2.bf16.msra.mxu0 0
    %997 = vmatprep.subr.bf16.mxu0 %v845
    %998 = vmatpush2.bf16.msra.mxu0 %v844
    %999 = vmatprep.mubr.bf16.mxu0 %v924
    %1000 = vmatmul.mubr.bf16.gmra.mxu0 %v403
    %v1001 = vpop.f32.mrf.mxu0
    %v1002 = vadd.f32 %v961, %v1001
    %v1003 = vpop.f32.mrf.mxu0
    %v1004 = vadd.f32 %v963, %v1003
    %v1005 = vpop.f32.mrf.mxu0
    %v1006 = vpop.f32.mrf.mxu0
    %1007 = vdwg.mxu0
    %1008 = vmatprep.subr.bf16.mxu0 0
    %1009 = vmatpush1.bf16.msra.mxu0 %v795
    %1010 = vmatprep.subr.bf16.mxu0 0
    %1011 = vmatpush1.bf16.msra.mxu0 %v792
    %1012 = vmatprep.subr.bf16.mxu0 0
    %1013 = vmatpush1.bf16.msra.mxu0 %v789
    %1014 = vmatprep.subr.bf16.mxu0 0
    %1015 = vmatpush1.bf16.msra.mxu0 %v786
    %1016 = vmatprep.subr.bf16.mxu0 0
    %1017 = vmatpush1.bf16.msra.mxu0 %v783
    %1018 = vmatprep.subr.bf16.mxu0 0
    %1019 = vmatpush1.bf16.msra.mxu0 %v780
    %1020 = vmatprep.subr.bf16.mxu0 0
    %1021 = vmatpush1.bf16.msra.mxu0 %v777
    %1022 = vmatprep.subr.bf16.mxu0 0
    %1023 = vmatpush1.bf16.msra.mxu0 %v774
    %1024 = vmatprep.subr.bf16.mxu0 0
    %1025 = vmatpush2.bf16.msra.mxu0 %v819
    %1026 = vmatprep.subr.bf16.mxu0 0
    %1027 = vmatpush2.bf16.msra.mxu0 %v816
    %1028 = vmatprep.subr.bf16.mxu0 0
    %1029 = vmatpush2.bf16.msra.mxu0 %v813
    %1030 = vmatprep.subr.bf16.mxu0 0
    %1031 = vmatpush2.bf16.msra.mxu0 %v810
    %1032 = vmatprep.subr.bf16.mxu0 0
    %1033 = vmatpush2.bf16.msra.mxu0 %v807
    %1034 = vmatprep.subr.bf16.mxu0 0
    %1035 = vmatpush2.bf16.msra.mxu0 %v804
    %1036 = vmatprep.subr.bf16.mxu0 0
    %1037 = vmatpush2.bf16.msra.mxu0 %v801
    %1038 = vmatprep.subr.bf16.mxu0 0
    %1039 = vmatpush2.bf16.msra.mxu0 %v798
    %1040 = vmatprep.mubr.bf16.mxu0 %v402
    %1041 = vmatmul.mubr.bf16.gmra.mxu0 %v401
    %v1042 = vpop.f32.mrf.mxu0
    %v1043 = vadd.f32 %v518, %v1042
    %v1044 = vpop.f32.mrf.mxu0
    %v1045 = vpop.f32.mrf.mxu0
    %v1046 = vpop.f32.mrf.mxu0
    %1047 = vdwg.mxu0
    %1048 = vmatprep.subr.bf16.mxu0 0
    %1049 = vmatpush1.bf16.msra.mxu0 %v843
    %1050 = vmatprep.subr.bf16.mxu0 0
    %1051 = vmatpush1.bf16.msra.mxu0 %v840
    %1052 = vmatprep.subr.bf16.mxu0 0
    %1053 = vmatpush1.bf16.msra.mxu0 %v837
    %1054 = vmatprep.subr.bf16.mxu0 0
    %1055 = vmatpush1.bf16.msra.mxu0 %v834
    %1056 = vmatprep.subr.bf16.mxu0 0
    %1057 = vmatpush1.bf16.msra.mxu0 %v831
    %1058 = vmatprep.subr.bf16.mxu0 0
    %1059 = vmatpush1.bf16.msra.mxu0 %v828
    %1060 = vmatprep.subr.bf16.mxu0 0
    %1061 = vmatpush1.bf16.msra.mxu0 %v825
    %1062 = vmatprep.subr.bf16.mxu0 0
    %1063 = vmatpush1.bf16.msra.mxu0 %v822
    %1064 = vmatprep.subr.bf16.mxu0 0
    %1065 = vmatpush2.bf16.msra.mxu0 0
    %1066 = vmatprep.subr.bf16.mxu0 0
    %1067 = vmatpush2.bf16.msra.mxu0 0
    %1068 = vmatprep.subr.bf16.mxu0 0
    %1069 = vmatpush2.bf16.msra.mxu0 0
    %1070 = vmatprep.subr.bf16.mxu0 0
    %1071 = vmatpush2.bf16.msra.mxu0 0
    %1072 = vmatprep.subr.bf16.mxu0 0
    %1073 = vmatpush2.bf16.msra.mxu0 0
    %1074 = vmatprep.subr.bf16.mxu0 0
    %1075 = vmatpush2.bf16.msra.mxu0 0
    %1076 = vmatprep.subr.bf16.mxu0 0
    %1077 = vmatpush2.bf16.msra.mxu0 0
    %1078 = vmatprep.subr.bf16.mxu0 0
    %1079 = vmatpush2.bf16.msra.mxu0 %v846
    %1080 = vmatprep.mubr.bf16.mxu0 %v924
    %1081 = vmatmul.mubr.bf16.gmra.mxu0 %v403
    %v1082 = vpop.f32.mrf.mxu0
    %v1083 = vadd.f32 %v1043, %v1082
    %v1084 = vpop.f32.mrf.mxu0
    %v1085 = vpop.f32.mrf.mxu0
    %v1086 = vpop.f32.mrf.mxu0
    %1087 = vdwg.mxu0
    %v1088 = vmax.f32 %v1002, 0.0
    %v1089 = vmax.f32 %v1004, 0.0
    %v1090 = vmax.f32 %v1083, 0.0
    %v1091 = vpack.c.bf16 %v1088, %v1088
    %v1092 = vpack.c.bf16 %v1089, %v1089
    %v1093 = vpack.c.bf16 %v1090, %v1090
    %v1094 = vld [vmem:[%s11] sm:$0xf]
    %v1095 = vld [vmem:[%s11 + $0x4] sm:$0xf]
    %v1096 = vld [vmem:[%s11 + $0x8] sm:$0xf]
    %v1097 = vld [vmem:[%s11 + $0xc] sm:$0xf]
    %v1098 = vld [vmem:[%s11 + $0x10] sm:$0xf]
    %v1099 = vld [vmem:[%s11 + $0x14] sm:$0xf]
    %v1100 = vld [vmem:[%s11 + $0x18] sm:$0xf]
    %v1101 = vld [vmem:[%s11 + $0x1c] sm:$0xf]
    %v1102 = vld [vmem:[%s11 + $0x20] sm:$0xf]
    %v1103 = vld [vmem:[%s11 + $0x24] sm:$0xf]
    %v1104 = vld [vmem:[%s11 + $0x28] sm:$0xf]
    %v1105 = vld [vmem:[%s11 + $0x2c] sm:$0xf]
    %v1106 = vld [vmem:[%s11 + $0x30] sm:$0xf]
    %v1107 = vld [vmem:[%s11 + $0x34] sm:$0xf]
    %v1108 = vld [vmem:[%s11 + $0x38] sm:$0xf]
    %v1109 = vld [vmem:[%s11 + $0x3c] sm:$0xf]
    %v1110 = vld [vmem:[%s11 + $0x40] sm:$0xf]
    %v1111 = vld [vmem:[%s11 + $0x44] sm:$0xf]
    %v1112 = vld [vmem:[%s11 + $0x48] sm:$0xf]
    %v1113 = vld [vmem:[%s11 + $0x4c] sm:$0xf]
    %v1114 = vld [vmem:[%s11 + $0x50] sm:$0xf]
    %v1115 = vld [vmem:[%s11 + $0x54] sm:$0xf]
    %v1116 = vld [vmem:[%s11 + $0x58] sm:$0xf]
    %v1117 = vld [vmem:[%s11 + $0x5c] sm:$0xf]
    %v1118 = vld [vmem:[%s11 + $0x60] sm:$0xf]
    %v1119 = vld [vmem:[%s11 + $0x64] sm:$0xf]
    %v1120 = vld [vmem:[%s11 + $0x68] sm:$0xf]
    %v1121 = vld [vmem:[%s11 + $0x6c] sm:$0xf]
    %v1122 = vld [vmem:[%s11 + $0x70] sm:$0xf]
    %v1123 = vld [vmem:[%s11 + $0x74] sm:$0xf]
    %v1124 = vld [vmem:[%s11 + $0x78] sm:$0xf]
    %v1125 = vld [vmem:[%s11 + $0x7c] sm:$0xf]
    %v1126 = vld [vmem:[%s11 + $0x80] sm:$0xf]
    %v1127 = vld [vmem:[%s11 + $0x84] sm:$0xf]
    %v1128 = vld [vmem:[%s11 + $0x88] sm:$0xf]
    %v1129 = vld [vmem:[%s11 + $0x8c] sm:$0xf]
    %v1130 = vld [vmem:[%s11 + $0x90] sm:$0xf]
    %v1131 = vld [vmem:[%s11 + $0x94] sm:$0x3]
    %v1132 = vld [vmem:[%s12] sm:$0x1]
    %v1134 = vlaneseq
    %v1135 = vshrl.u32 %v1134, 7
    %v1136 = vsub.s32 0, %v1135
    %v1137 = vrot.slane %v1132, %v1136
    %v1177 = vunpack.c.l.b16 %v1094
    %v1178 = vunpack.c.l.b16 %v1095
    %v1179 = vunpack.c.l.b16 %v1096
    %v1180 = vunpack.c.l.b16 %v1097
    %v1181 = vunpack.c.l.b16 %v1098
    %v1182 = vunpack.c.l.b16 %v1099
    %v1183 = vunpack.c.l.b16 %v1100
    %v1184 = vunpack.c.l.b16 %v1101
    %v1185 = vunpack.c.l.b16 %v1102
    %v1186 = vunpack.c.l.b16 %v1103
    %v1187 = vunpack.c.l.b16 %v1104
    %v1188 = vunpack.c.l.b16 %v1105
    %v1189 = vunpack.c.l.b16 %v1106
    %v1190 = vunpack.c.l.b16 %v1107
    %v1191 = vunpack.c.l.b16 %v1108
    %v1192 = vunpack.c.l.b16 %v1109
    %v1193 = vunpack.c.l.b16 %v1110
    %v1194 = vunpack.c.l.b16 %v1111
    %v1195 = vunpack.c.l.b16 %v1112
    %v1196 = vunpack.c.l.b16 %v1113
    %v1197 = vunpack.c.l.b16 %v1114
    %v1198 = vunpack.c.l.b16 %v1115
    %v1199 = vunpack.c.l.b16 %v1116
    %v1200 = vunpack.c.l.b16 %v1117
    %v1201 = vunpack.c.l.b16 %v1118
    %v1202 = vunpack.c.l.b16 %v1119
    %v1203 = vunpack.c.l.b16 %v1120
    %v1204 = vunpack.c.l.b16 %v1121
    %v1205 = vunpack.c.l.b16 %v1122
    %v1206 = vunpack.c.l.b16 %v1123
    %v1207 = vunpack.c.l.b16 %v1124
    %v1208 = vunpack.c.l.b16 %v1125
    %v1209 = vunpack.c.l.b16 %v1126
    %v1210 = vunpack.c.l.b16 %v1127
    %v1211 = vunpack.c.l.b16 %v1128
    %v1212 = vunpack.c.l.b16 %v1129
    %v1213 = vunpack.c.l.b16 %v1130
    %v1214 = vunpack.c.l.b16 %v1131
    %v1215 = vpack.c.b16 %v1178, %v1177
    %v1216 = vpack.c.b16 %v1180, %v1179
    %v1217 = vpack.c.b16 %v1182, %v1181
    %v1218 = vpack.c.b16 %v1184, %v1183
    %v1219 = vpack.c.b16 %v1186, %v1185
    %v1220 = vpack.c.b16 %v1188, %v1187
    %v1221 = vpack.c.b16 %v1190, %v1189
    %v1222 = vpack.c.b16 %v1192, %v1191
    %v1223 = vpack.c.b16 %v1194, %v1193
    %v1224 = vpack.c.b16 %v1196, %v1195
    %v1225 = vpack.c.b16 %v1198, %v1197
    %v1226 = vpack.c.b16 %v1200, %v1199
    %v1227 = vpack.c.b16 %v1202, %v1201
    %v1228 = vpack.c.b16 %v1204, %v1203
    %v1229 = vpack.c.b16 %v1206, %v1205
    %v1230 = vpack.c.b16 %v1208, %v1207
    %v1231 = vpack.c.b16 %v1210, %v1209
    %v1232 = vpack.c.b16 %v1212, %v1211
    %v1233 = vpack.c.b16 %v1214, %v1213
    %vm1252 = vcmask 359424
    %v1254 = vsel %vm1252, %v1093, 0
    %vm1256 = vcmask 1045504
    %v1258 = vsel %vm1256, %v1233, 0
    %1260 = vmatprep.subr.bf16.mxu0 0
    %1261 = vmatpush1.bf16.msra.mxu0 %v1222
    %1262 = vmatprep.subr.bf16.mxu0 0
    %1263 = vmatpush1.bf16.msra.mxu0 %v1221
    %1264 = vmatprep.subr.bf16.mxu0 0
    %1265 = vmatpush1.bf16.msra.mxu0 %v1220
    %1266 = vmatprep.subr.bf16.mxu0 0
    %1267 = vmatpush1.bf16.msra.mxu0 %v1219
    %1268 = vmatprep.subr.bf16.mxu0 0
    %1269 = vmatpush1.bf16.msra.mxu0 %v1218
    %1270 = vmatprep.subr.bf16.mxu0 0
    %1271 = vmatpush1.bf16.msra.mxu0 %v1217
    %1272 = vmatprep.subr.bf16.mxu0 0
    %1273 = vmatpush1.bf16.msra.mxu0 %v1216
    %1274 = vmatprep.subr.bf16.mxu0 0
    %1275 = vmatpush1.bf16.msra.mxu0 %v1215
    %1276 = vmatprep.subr.bf16.mxu0 0
    %1277 = vmatpush2.bf16.msra.mxu0 %v1230
    %1278 = vmatprep.subr.bf16.mxu0 0
    %1279 = vmatpush2.bf16.msra.mxu0 %v1229
    %1280 = vmatprep.subr.bf16.mxu0 0
    %1281 = vmatpush2.bf16.msra.mxu0 %v1228
    %1282 = vmatprep.subr.bf16.mxu0 0
    %1283 = vmatpush2.bf16.msra.mxu0 %v1227
    %1284 = vmatprep.subr.bf16.mxu0 0
    %1285 = vmatpush2.bf16.msra.mxu0 %v1226
    %1286 = vmatprep.subr.bf16.mxu0 0
    %1287 = vmatpush2.bf16.msra.mxu0 %v1225
    %1288 = vmatprep.subr.bf16.mxu0 0
    %1289 = vmatpush2.bf16.msra.mxu0 %v1224
    %1290 = vmatprep.subr.bf16.mxu0 0
    %1291 = vmatpush2.bf16.msra.mxu0 %v1223
    %1292 = vmatprep.mubr.bf16.mxu0 %v1092
    %1293 = vmatmul.mubr.bf16.gmra.mxu0 %v1091
    %v1294 = vpop.f32.mrf.mxu0
    %v1295 = vadd.f32 %v1137, %v1294
    %v1296 = vpop.f32.mrf.mxu0
    %v1297 = vpop.f32.mrf.mxu0
    %v1298 = vpop.f32.mrf.mxu0
    %1299 = vdwg.mxu0
    %1300 = vmatprep.subr.bf16.mxu0 0
    %1301 = vmatpush1.bf16.msra.mxu0 0
    %1302 = vmatprep.subr.bf16.mxu0 0
    %1303 = vmatpush1.bf16.msra.mxu0 0
    %1304 = vmatprep.subr.bf16.mxu0 0
    %1305 = vmatpush1.bf16.msra.mxu0 0
    %1306 = vmatprep.subr.bf16.mxu0 0
    %1307 = vmatpush1.bf16.msra.mxu0 0
    %1308 = vmatprep.subr.bf16.mxu0 0
    %1309 = vmatpush1.bf16.msra.mxu0 0
    %1310 = vmatprep.subr.bf16.mxu0 0
    %1311 = vmatpush1.bf16.msra.mxu0 %v1258
    %1312 = vmatprep.subr.bf16.mxu0 0
    %1313 = vmatpush1.bf16.msra.mxu0 %v1232
    %1314 = vmatprep.subr.bf16.mxu0 0
    %1315 = vmatpush1.bf16.msra.mxu0 %v1231
    %1316 = vmatprep.subr.bf16.mxu0 0
    %1317 = vmatpush2.bf16.msra.mxu0 0
    %1318 = vmatprep.subr.bf16.mxu0 0
    %1319 = vmatpush2.bf16.msra.mxu0 0
    %1320 = vmatprep.subr.bf16.mxu0 0
    %1321 = vmatpush2.bf16.msra.mxu0 0
    %1322 = vmatprep.subr.bf16.mxu0 0
    %1323 = vmatpush2.bf16.msra.mxu0 0
    %1324 = vmatprep.subr.bf16.mxu0 0
    %1325 = vmatpush2.bf16.msra.mxu0 0
    %1326 = vmatprep.subr.bf16.mxu0 0
    %1327 = vmatpush2.bf16.msra.mxu0 0
    %1328 = vmatprep.subr.bf16.mxu0 0
    %1329 = vmatpush2.bf16.msra.mxu0 0
    %1330 = vmatprep.subr.bf16.mxu0 0
    %1331 = vmatpush2.bf16.msra.mxu0 0
    %1332 = vmatprep.mubr.bf16.mxu0 0
    %1333 = vmatmul.mubr.bf16.gmra.mxu0 %v1254
    %v1334 = vpop.f32.mrf.mxu0
    %v1335 = vadd.f32 %v1295, %v1334
    %v1336 = vpop.f32.mrf.mxu0
    %v1337 = vpop.f32.mrf.mxu0
    %v1338 = vpop.f32.mrf.mxu0
    %1339 = vdwg.mxu0
    %v1340 = vld [vmem:[%s4] sm:$0xff]
    %v1341 = vld [vmem:[%s4 + $0x8] sm:$0xff]
    %v1342 = vld [vmem:[%s5] sm:$0x1]
    %v1344 = vlaneseq
    %v1345 = vshrl.u32 %v1344, 7
    %v1346 = vsub.s32 0, %v1345
    %v1347 = vrot.slane %v1342, %v1346
    %v1349 = vadd.f32 %v1340, %v1347
    %v1350 = vadd.f32 %v1341, %v1347
    %v1353 = vrot.slane %v1349, 7
    %v1354 = vrot.slane %v1350, 7
    %v1355 = vsel %vm136, %v1353, %v1354
    %v1358 = vsel %vm136, 0.0, %v1353
    %v1359 = vlaneseq
    %v1360 = vshrl.u32 %v1359, 7
    %v1361 = vadd.s32 %v1360, 8
    %v1362 = vld [vmem:[%s2] sm:$0xff]
    %v1365 = vrot.slane %v1362, 7
    %v1366 = vrot.slane 0.0, 7
    %v1367 = vsel %vm136, %v1365, %v1366
    %v1370 = vsel %vm136, 0.0, %v1365
    %v1371 = vstv %s126
    %vm1372 = vcmp.le.s32.totalorder %v1360, %v1371
    %vm1373 = vcmp.le.s32.totalorder %v1361, %v1371
    %v1374 = vstv %s138
    %vm1375 = vcmp.le.s32.totalorder %v1360, %v1374
    %vm1376 = vcmp.le.s32.totalorder %v1361, %v1374
    %v1377 = vsel %vm1375, 1, 0
    %v1378 = vsel %vm1376, 1, 0
    %vm1379 = vcmp.eq.s32.totalorder %v1377, 1
    %vm1380 = vcmp.eq.s32.totalorder %v1378, 1
    %v1381 = vsel %vm1379, %v1358, %v1370
    %v1382 = vsel %vm1380, %v1355, %v1367
    %v1383 = vsel %vm1372, 1, 0
    %v1384 = vsel %vm1373, 1, 0
    %vm1385 = vcmp.eq.s32.totalorder %v1383, 1
    %vm1386 = vcmp.eq.s32.totalorder %v1384, 1
    %v1387 = vsel %vm1385, %v1362, %v1381
    %v1388 = vsel %vm1386, 0.0, %v1382
    %s1389 = sadd.s32 %s138, 1
    %v1390 = vstv %s1389
    %vm1391 = vcmp.eq.s32.totalorder %v1360, %v1390
    %vm1392 = vcmp.eq.s32.totalorder %v1361, %v1390
    %v1393 = vsel %vm1391, 1, 0
    %v1394 = vsel %vm1392, 1, 0
    %vm1395 = vcmp.eq.s32.totalorder %v1393, 1
    %vm1396 = vcmp.eq.s32.totalorder %v1394, 1
    %v1397 = vlaneseq
    %v1398 = vshrl.u32 %v1397, 7
    %v1399 = vsub.s32 0, %v1398
    %v1400 = vrot.slane %v1335, %v1399
    %v1401 = vsel %vm1395, %v1400, %v1387
    %v1402 = vsel %vm1396, %v1400, %v1388
    %v1403 = vld [vmem:[%s3] sm:$0xff]
    %v1404 = vld [vmem:[%s3 + $0x8] sm:$0xff]
    %v1405 = vld [vmem:[%s2 + $0x8] sm:$0xff]
    %v1407 = vrot.slane %v1405, 7
    %v1408 = vsel %vm136, %v1407, %v1366
    %v1411 = vsel %vm136, 0.0, %v1407
    %v1412 = vstv %s129
    %vm1413 = vcmp.le.s32.totalorder %v1360, %v1412
    %vm1414 = vcmp.le.s32.totalorder %v1361, %v1412
    %v1415 = vstv %s141
    %vm1416 = vcmp.le.s32.totalorder %v1360, %v1415
    %vm1417 = vcmp.le.s32.totalorder %v1361, %v1415
    %v1418 = vsel %vm1416, 1, 0
    %v1419 = vsel %vm1417, 1, 0
    %vm1420 = vcmp.eq.s32.totalorder %v1418, 1
    %vm1421 = vcmp.eq.s32.totalorder %v1419, 1
    %v1422 = vsel %vm1420, %v1358, %v1411
    %v1423 = vsel %vm1421, %v1355, %v1408
    %v1424 = vsel %vm1413, 1, 0
    %v1425 = vsel %vm1414, 1, 0
    %vm1426 = vcmp.eq.s32.totalorder %v1424, 1
    %vm1427 = vcmp.eq.s32.totalorder %v1425, 1
    %v1428 = vsel %vm1426, %v1405, %v1422
    %v1429 = vsel %vm1427, 0.0, %v1423
    %s1430 = sadd.s32 %s141, 1
    %v1431 = vstv %s1430
    %vm1432 = vcmp.eq.s32.totalorder %v1360, %v1431
    %vm1433 = vcmp.eq.s32.totalorder %v1361, %v1431
    %v1434 = vsel %vm1432, 1, 0
    %v1435 = vsel %vm1433, 1, 0
    %vm1436 = vcmp.eq.s32.totalorder %v1434, 1
    %vm1437 = vcmp.eq.s32.totalorder %v1435, 1
    %v1438 = vlaneseq
    %v1439 = vshrl.u32 %v1438, 7
    %v1440 = vsub.s32 1, %v1439
    %v1441 = vrot.slane %v1335, %v1440
    %v1442 = vsel %vm1436, %v1441, %v1428
    %v1443 = vsel %vm1437, %v1441, %v1429
    %v1444 = vld [vmem:[%s3 + $0x10] sm:$0xff]
    %v1445 = vld [vmem:[%s3 + $0x18] sm:$0xff]
    %v1446 = vpack.c.bf16 %v1402, %v1401
    %v1447 = vpack.c.bf16 %v1443, %v1442
    %v1448 = vld [vmem:[%s13] sm:$0xf]
    %v1449 = vld [vmem:[%s14] sm:$0x1]
    %v1451 = vlaneseq
    %v1452 = vshrl.u32 %v1451, 7
    %v1453 = vsub.s32 0, %v1452
    %v1454 = vrot.slane %v1449, %v1453
    %v1457 = vsel %vm165, %v1446, 0
    %v1460 = vsel %vm165, %v1447, 0
    %v1463 = vsel %vm169, %v1448, 0
    %1465 = vmatprep.subr.bf16.mxu0 0
    %1466 = vmatpush1.bf16.msra.mxu0 0
    %1467 = vmatprep.subr.bf16.mxu0 0
    %1468 = vmatpush1.bf16.msra.mxu0 0
    %1469 = vmatprep.subr.bf16.mxu0 0
    %1470 = vmatpush1.bf16.msra.mxu0 0
    %1471 = vmatprep.subr.bf16.mxu0 0
    %1472 = vmatpush1.bf16.msra.mxu0 0
    %1473 = vmatprep.subr.bf16.mxu0 0
    %1474 = vmatpush1.bf16.msra.mxu0 0
    %1475 = vmatprep.subr.bf16.mxu0 0
    %1476 = vmatpush1.bf16.msra.mxu0 0
    %1477 = vmatprep.subr.bf16.mxu0 0
    %1478 = vmatpush1.bf16.msra.mxu0 0
    %1479 = vmatprep.subr.bf16.mxu0 0
    %1480 = vmatpush1.bf16.msra.mxu0 %v1463
    %1481 = vmatprep.subr.bf16.mxu0 0
    %1482 = vmatpush2.bf16.msra.mxu0 0
    %1483 = vmatprep.subr.bf16.mxu0 0
    %1484 = vmatpush2.bf16.msra.mxu0 0
    %1485 = vmatprep.subr.bf16.mxu0 0
    %1486 = vmatpush2.bf16.msra.mxu0 0
    %1487 = vmatprep.subr.bf16.mxu0 0
    %1488 = vmatpush2.bf16.msra.mxu0 0
    %1489 = vmatprep.subr.bf16.mxu0 0
    %1490 = vmatpush2.bf16.msra.mxu0 0
    %1491 = vmatprep.subr.bf16.mxu0 0
    %1492 = vmatpush2.bf16.msra.mxu0 0
    %1493 = vmatprep.subr.bf16.mxu0 0
    %1494 = vmatpush2.bf16.msra.mxu0 0
    %1495 = vmatprep.subr.bf16.mxu0 0
    %1496 = vmatpush2.bf16.msra.mxu0 0
    %1497 = vmatprep.mubr.bf16.mxu0 0
    %1498 = vmatmul.mubr.bf16.gmra.mxu0 %v1457
    %v1499 = vpop.f32.mrf.mxu0
    %v1500 = vadd.f32 %v1454, %v1499
    %v1501 = vpop.f32.mrf.mxu0
    %v1502 = vpop.f32.mrf.mxu0
    %v1503 = vadd.f32 %v1454, %v1502
    %v1504 = vpop.f32.mrf.mxu0
    %1505 = vmatprep.mubr.bf16.mxu0 0
    %1506 = vmatmul.mubr.bf16.gmra.mxu0 %v1460
    %v1507 = vpop.f32.mrf.mxu0
    %v1508 = vadd.f32 %v1454, %v1507
    %v1509 = vpop.f32.mrf.mxu0
    %v1510 = vpop.f32.mrf.mxu0
    %v1511 = vadd.f32 %v1454, %v1510
    %v1512 = vpop.f32.mrf.mxu0
    %1513 = vdwg.mxu0
    %1516 = vrot.lane.b32.xlu0 %v1500, 120
    %v1517 = vpop.permute.xlu0 %1516
    %1518 = vrot.lane.b32.xlu0 %v1503, 120
    %v1519 = vpop.permute.xlu0 %1518
    %vm1520 = vcmask 31744
    %v1521 = vsel %vm1520, %v1500, 0
    %v1523 = vsel %vm1520, %v1503, 0
    %v1525 = vsel %vm1520, %v1517, 0
    %v1527 = vsel %vm1520, %v1519, 0
    %1529 = vmatprep.subr.mxu0 0.0
    %1530 = vmatpush1.xpose.msra.mxu0 0.0
    %1531 = vmatprep.subr.mxu0 0.0
    %1532 = vmatpush1.xpose.msra.mxu0 0.0
    %1533 = vmatprep.subr.mxu0 0.0
    %1534 = vmatpush1.xpose.msra.mxu0 0.0
    %1535 = vmatprep.subr.mxu0 0.0
    %1536 = vmatpush1.xpose.msra.mxu0 0.0
    %1537 = vmatprep.subr.mxu0 0.0
    %1538 = vmatpush1.xpose.msra.mxu0 0.0
    %1539 = vmatprep.subr.mxu0 0.0
    %1540 = vmatpush1.xpose.msra.mxu0 0.0
    %1541 = vmatprep.subr.mxu0 0.0
    %1542 = vmatpush1.xpose.msra.mxu0 0.0
    %1543 = vmatprep.subr.mxu0 0.0
    %1544 = vmatpush1.xpose.msra.mxu0 0.0
    %1545 = vmatprep.subr.mxu0 0.0
    %1546 = vmatpush1.xpose.msra.mxu0 0.0
    %1547 = vmatprep.subr.mxu0 0.0
    %1548 = vmatpush1.xpose.msra.mxu0 0.0
    %1549 = vmatprep.subr.mxu0 0.0
    %1550 = vmatpush1.xpose.msra.mxu0 0.0
    %1551 = vmatprep.subr.mxu0 0.0
    %1552 = vmatpush1.xpose.msra.mxu0 0.0
    %1553 = vmatprep.subr.mxu0 0.0
    %1554 = vmatpush1.xpose.msra.mxu0 0.0
    %1555 = vmatprep.subr.mxu0 0.0
    %1556 = vmatpush1.xpose.msra.mxu0 0.0
    %1557 = vmatprep.subr.mxu0 0.0
    %1558 = vmatpush1.xpose.msra.mxu0 %v1527
    %1559 = vmatprep.subr.mxu0 0.0
    %1560 = vmatpush1.xpose.msra.mxu0 %v1525
    %1561 = vmatprep.subr.mxu0 0.0
    %1562 = vmatpush2.xpose.msra.mxu0 0.0
    %1563 = vmatprep.subr.mxu0 0.0
    %1564 = vmatpush2.xpose.msra.mxu0 0.0
    %1565 = vmatprep.subr.mxu0 0.0
    %1566 = vmatpush2.xpose.msra.mxu0 0.0
    %1567 = vmatprep.subr.mxu0 0.0
    %1568 = vmatpush2.xpose.msra.mxu0 0.0
    %1569 = vmatprep.subr.mxu0 0.0
    %1570 = vmatpush2.xpose.msra.mxu0 0.0
    %1571 = vmatprep.subr.mxu0 0.0
    %1572 = vmatpush2.xpose.msra.mxu0 0.0
    %1573 = vmatprep.subr.mxu0 0.0
    %1574 = vmatpush2.xpose.msra.mxu0 0.0
    %1575 = vmatprep.subr.mxu0 0.0
    %1576 = vmatpush2.xpose.msra.mxu0 0.0
    %1577 = vmatprep.subr.mxu0 0.0
    %1578 = vmatpush2.xpose.msra.mxu0 0.0
    %1579 = vmatprep.subr.mxu0 0.0
    %1580 = vmatpush2.xpose.msra.mxu0 0.0
    %1581 = vmatprep.subr.mxu0 0.0
    %1582 = vmatpush2.xpose.msra.mxu0 0.0
    %1583 = vmatprep.subr.mxu0 0.0
    %1584 = vmatpush2.xpose.msra.mxu0 0.0
    %1585 = vmatprep.subr.mxu0 0.0
    %1586 = vmatpush2.xpose.msra.mxu0 0.0
    %1587 = vmatprep.subr.mxu0 0.0
    %1588 = vmatpush2.xpose.msra.mxu0 0.0
    %1589 = vmatprep.subr.mxu0 0.0
    %1590 = vmatpush2.xpose.msra.mxu0 0.0
    %1591 = vmatprep.subr.mxu0 0.0
    %1592 = vmatpush2.xpose.msra.mxu0 0.0
    %1593 = vmatprep.mubr.f32.mxu0 0.0
    %1594 = vmatmul.mubr.f32.gmra.mxu0 %v1521
    %v1595 = vpop.f32.mrf.mxu0
    %v1596 = vadd.f32 %v1403, %v1595
    %v1597 = vpop.f32.mrf.mxu0
    %1598 = vmatprep.mubr.f32.mxu0 0.0
    %1599 = vmatmul.mubr.f32.gmra.mxu0 %v1523
    %v1600 = vpop.f32.mrf.mxu0
    %v1601 = vadd.f32 %v1404, %v1600
    %v1602 = vpop.f32.mrf.mxu0
    %1603 = vdwg.mxu0
    %v1604 = vsel %vm922, %v1596, -inf
    %1605 = vmax.xlane.f32.xlu0 %v1604
    %v1606 = vpop.xlane.xlu0 %1605
    %v1607 = vsel %vm922, %v1601, -inf
    %1608 = vmax.xlane.f32.xlu0 %v1607
    %v1609 = vpop.xlane.xlu0 %1608
    %v1610 = vsub.f32 %v1596, %v1606
    %v1611 = vsub.f32 %v1601, %v1609
    %v1612 = vmul.f32 %v1610, 1.442695
    %v1613 = vpow.pop %v1612
    %v1614 = vmul.f32 %v1611, 1.442695
    %v1615 = vpow.pop %v1614
    %v1616 = vsel %vm922, %v1613, 0.0
    %1617 = vadd.xlane.f32.xlu0 %v1616
    %v1618 = vpop.xlane.xlu0 %1617
    %v1619 = vsel %vm922, %v1615, 0.0
    %1620 = vadd.xlane.f32.xlu0 %v1619
    %v1621 = vpop.xlane.xlu0 %1620
    %v1622 = vrcp.pop %v1618
    %v1623 = vrcp.pop %v1621
    %v1624 = vmul.f32 %v1613, %v1622
    %v1625 = vmul.f32 %v1615, %v1623
    %1626 = vrot.lane.b32.xlu0 %v1500, 112
    %v1627 = vpop.permute.xlu0 %1626
    %1628 = vrot.lane.b32.xlu0 %v1503, 112
    %v1629 = vpop.permute.xlu0 %1628
    %v1633 = vsel %vm922, %v1624, 0
    %v1636 = vsel %vm922, %v1625, 0
    %1638 = vmatprep.subr.mxu0 0.0
    %1639 = vmatpush1.msra.mxu0 0.0
    %1640 = vmatprep.subr.mxu0 0.0
    %1641 = vmatpush1.msra.mxu0 0.0
    %1642 = vmatprep.subr.mxu0 0.0
    %1643 = vmatpush1.msra.mxu0 0.0
    %1644 = vmatprep.subr.mxu0 0.0
    %1645 = vmatpush1.msra.mxu0 0.0
    %1646 = vmatprep.subr.mxu0 0.0
    %1647 = vmatpush1.msra.mxu0 0.0
    %1648 = vmatprep.subr.mxu0 0.0
    %1649 = vmatpush1.msra.mxu0 0.0
    %1650 = vmatprep.subr.mxu0 0.0
    %1651 = vmatpush1.msra.mxu0 0.0
    %1652 = vmatprep.subr.mxu0 0.0
    %1653 = vmatpush1.msra.mxu0 0.0
    %1654 = vmatprep.subr.mxu0 0.0
    %1655 = vmatpush1.msra.mxu0 0.0
    %1656 = vmatprep.subr.mxu0 0.0
    %1657 = vmatpush1.msra.mxu0 0.0
    %1658 = vmatprep.subr.mxu0 0.0
    %1659 = vmatpush1.msra.mxu0 0.0
    %1660 = vmatprep.subr.mxu0 0.0
    %1661 = vmatpush1.msra.mxu0 0.0
    %1662 = vmatprep.subr.mxu0 0.0
    %1663 = vmatpush1.msra.mxu0 0.0
    %1664 = vmatprep.subr.mxu0 0.0
    %1665 = vmatpush1.msra.mxu0 0.0
    %1666 = vmatprep.subr.mxu0 0.0
    %1667 = vmatpush1.msra.mxu0 %v1629
    %1668 = vmatprep.subr.mxu0 0.0
    %1669 = vmatpush1.msra.mxu0 %v1627
    %1670 = vmatprep.subr.mxu0 0.0
    %1671 = vmatpush2.msra.mxu0 0.0
    %1672 = vmatprep.subr.mxu0 0.0
    %1673 = vmatpush2.msra.mxu0 0.0
    %1674 = vmatprep.subr.mxu0 0.0
    %1675 = vmatpush2.msra.mxu0 0.0
    %1676 = vmatprep.subr.mxu0 0.0
    %1677 = vmatpush2.msra.mxu0 0.0
    %1678 = vmatprep.subr.mxu0 0.0
    %1679 = vmatpush2.msra.mxu0 0.0
    %1680 = vmatprep.subr.mxu0 0.0
    %1681 = vmatpush2.msra.mxu0 0.0
    %1682 = vmatprep.subr.mxu0 0.0
    %1683 = vmatpush2.msra.mxu0 0.0
    %1684 = vmatprep.subr.mxu0 0.0
    %1685 = vmatpush2.msra.mxu0 0.0
    %1686 = vmatprep.subr.mxu0 0.0
    %1687 = vmatpush2.msra.mxu0 0.0
    %1688 = vmatprep.subr.mxu0 0.0
    %1689 = vmatpush2.msra.mxu0 0.0
    %1690 = vmatprep.subr.mxu0 0.0
    %1691 = vmatpush2.msra.mxu0 0.0
    %1692 = vmatprep.subr.mxu0 0.0
    %1693 = vmatpush2.msra.mxu0 0.0
    %1694 = vmatprep.subr.mxu0 0.0
    %1695 = vmatpush2.msra.mxu0 0.0
    %1696 = vmatprep.subr.mxu0 0.0
    %1697 = vmatpush2.msra.mxu0 0.0
    %1698 = vmatprep.subr.mxu0 0.0
    %1699 = vmatpush2.msra.mxu0 0.0
    %1700 = vmatprep.subr.mxu0 0.0
    %1701 = vmatpush2.msra.mxu0 0.0
    %1702 = vmatprep.mubr.f32.mxu0 0.0
    %1703 = vmatmul.mubr.f32.gmra.mxu0 %v1633
    %v1704 = vpop.f32.mrf.mxu0
    %v1705 = vadd.f32 0.0, %v1704
    %v1706 = vpop.f32.mrf.mxu0
    %1707 = vmatprep.mubr.f32.mxu0 0.0
    %1708 = vmatmul.mubr.f32.gmra.mxu0 %v1636
    %v1709 = vpop.f32.mrf.mxu0
    %v1710 = vadd.f32 0.0, %v1709
    %v1711 = vpop.f32.mrf.mxu0
    %1712 = vdwg.mxu0
    %1713 = vrot.lane.b32.xlu0 %v1500, 124
    %v1714 = vpop.permute.xlu0 %1713
    %1715 = vrot.lane.b32.xlu0 %v1503, 124
    %v1716 = vpop.permute.xlu0 %1715
    %1717 = vrot.lane.b32.xlu0 %v1500, 116
    %v1718 = vpop.permute.xlu0 %1717
    %1719 = vrot.lane.b32.xlu0 %v1503, 116
    %v1720 = vpop.permute.xlu0 %1719
    %v1721 = vsel %vm1520, %v1714, 0
    %v1723 = vsel %vm1520, %v1716, 0
    %v1725 = vsel %vm1520, %v1718, 0
    %v1727 = vsel %vm1520, %v1720, 0
    %1729 = vmatprep.subr.mxu0 0.0
    %1730 = vmatpush1.xpose.msra.mxu0 0.0
    %1731 = vmatprep.subr.mxu0 0.0
    %1732 = vmatpush1.xpose.msra.mxu0 0.0
    %1733 = vmatprep.subr.mxu0 0.0
    %1734 = vmatpush1.xpose.msra.mxu0 0.0
    %1735 = vmatprep.subr.mxu0 0.0
    %1736 = vmatpush1.xpose.msra.mxu0 0.0
    %1737 = vmatprep.subr.mxu0 0.0
    %1738 = vmatpush1.xpose.msra.mxu0 0.0
    %1739 = vmatprep.subr.mxu0 0.0
    %1740 = vmatpush1.xpose.msra.mxu0 0.0
    %1741 = vmatprep.subr.mxu0 0.0
    %1742 = vmatpush1.xpose.msra.mxu0 0.0
    %1743 = vmatprep.subr.mxu0 0.0
    %1744 = vmatpush1.xpose.msra.mxu0 0.0
    %1745 = vmatprep.subr.mxu0 0.0
    %1746 = vmatpush1.xpose.msra.mxu0 0.0
    %1747 = vmatprep.subr.mxu0 0.0
    %1748 = vmatpush1.xpose.msra.mxu0 0.0
    %1749 = vmatprep.subr.mxu0 0.0
    %1750 = vmatpush1.xpose.msra.mxu0 0.0
    %1751 = vmatprep.subr.mxu0 0.0
    %1752 = vmatpush1.xpose.msra.mxu0 0.0
    %1753 = vmatprep.subr.mxu0 0.0
    %1754 = vmatpush1.xpose.msra.mxu0 0.0
    %1755 = vmatprep.subr.mxu0 0.0
    %1756 = vmatpush1.xpose.msra.mxu0 0.0
    %1757 = vmatprep.subr.mxu0 0.0
    %1758 = vmatpush1.xpose.msra.mxu0 %v1727
    %1759 = vmatprep.subr.mxu0 0.0
    %1760 = vmatpush1.xpose.msra.mxu0 %v1725
    %1761 = vmatprep.subr.mxu0 0.0
    %1762 = vmatpush2.xpose.msra.mxu0 0.0
    %1763 = vmatprep.subr.mxu0 0.0
    %1764 = vmatpush2.xpose.msra.mxu0 0.0
    %1765 = vmatprep.subr.mxu0 0.0
    %1766 = vmatpush2.xpose.msra.mxu0 0.0
    %1767 = vmatprep.subr.mxu0 0.0
    %1768 = vmatpush2.xpose.msra.mxu0 0.0
    %1769 = vmatprep.subr.mxu0 0.0
    %1770 = vmatpush2.xpose.msra.mxu0 0.0
    %1771 = vmatprep.subr.mxu0 0.0
    %1772 = vmatpush2.xpose.msra.mxu0 0.0
    %1773 = vmatprep.subr.mxu0 0.0
    %1774 = vmatpush2.xpose.msra.mxu0 0.0
    %1775 = vmatprep.subr.mxu0 0.0
    %1776 = vmatpush2.xpose.msra.mxu0 0.0
    %1777 = vmatprep.subr.mxu0 0.0
    %1778 = vmatpush2.xpose.msra.mxu0 0.0
    %1779 = vmatprep.subr.mxu0 0.0
    %1780 = vmatpush2.xpose.msra.mxu0 0.0
    %1781 = vmatprep.subr.mxu0 0.0
    %1782 = vmatpush2.xpose.msra.mxu0 0.0
    %1783 = vmatprep.subr.mxu0 0.0
    %1784 = vmatpush2.xpose.msra.mxu0 0.0
    %1785 = vmatprep.subr.mxu0 0.0
    %1786 = vmatpush2.xpose.msra.mxu0 0.0
    %1787 = vmatprep.subr.mxu0 0.0
    %1788 = vmatpush2.xpose.msra.mxu0 0.0
    %1789 = vmatprep.subr.mxu0 0.0
    %1790 = vmatpush2.xpose.msra.mxu0 0.0
    %1791 = vmatprep.subr.mxu0 0.0
    %1792 = vmatpush2.xpose.msra.mxu0 0.0
    %1793 = vmatprep.mubr.f32.mxu0 0.0
    %1794 = vmatmul.mubr.f32.gmra.mxu0 %v1721
    %v1795 = vpop.f32.mrf.mxu0
    %v1796 = vadd.f32 %v1403, %v1795
    %v1797 = vpop.f32.mrf.mxu0
    %1798 = vmatprep.mubr.f32.mxu0 0.0
    %1799 = vmatmul.mubr.f32.gmra.mxu0 %v1723
    %v1800 = vpop.f32.mrf.mxu0
    %v1801 = vadd.f32 %v1404, %v1800
    %v1802 = vpop.f32.mrf.mxu0
    %1803 = vdwg.mxu0
    %v1804 = vsel %vm922, %v1796, -inf
    %1805 = vmax.xlane.f32.xlu0 %v1804
    %v1806 = vpop.xlane.xlu0 %1805
    %v1807 = vsel %vm922, %v1801, -inf
    %1808 = vmax.xlane.f32.xlu0 %v1807
    %v1809 = vpop.xlane.xlu0 %1808
    %v1810 = vsub.f32 %v1796, %v1806
    %v1811 = vsub.f32 %v1801, %v1809
    %v1812 = vmul.f32 %v1810, 1.442695
    %v1813 = vpow.pop %v1812
    %v1814 = vmul.f32 %v1811, 1.442695
    %v1815 = vpow.pop %v1814
    %v1816 = vsel %vm922, %v1813, 0.0
    %1817 = vadd.xlane.f32.xlu0 %v1816
    %v1818 = vpop.xlane.xlu0 %1817
    %v1819 = vsel %vm922, %v1815, 0.0
    %1820 = vadd.xlane.f32.xlu0 %v1819
    %v1821 = vpop.xlane.xlu0 %1820
    %v1822 = vrcp.pop %v1818
    %v1823 = vrcp.pop %v1821
    %v1824 = vmul.f32 %v1813, %v1822
    %v1825 = vmul.f32 %v1815, %v1823
    %1826 = vrot.lane.b32.xlu0 %v1500, 108
    %v1827 = vpop.permute.xlu0 %1826
    %1828 = vrot.lane.b32.xlu0 %v1503, 108
    %v1829 = vpop.permute.xlu0 %1828
    %v1833 = vsel %vm922, %v1824, 0
    %v1836 = vsel %vm922, %v1825, 0
    %1838 = vmatprep.subr.mxu0 0.0
    %1839 = vmatpush1.msra.mxu0 0.0
    %1840 = vmatprep.subr.mxu0 0.0
    %1841 = vmatpush1.msra.mxu0 0.0
    %1842 = vmatprep.subr.mxu0 0.0
    %1843 = vmatpush1.msra.mxu0 0.0
    %1844 = vmatprep.subr.mxu0 0.0
    %1845 = vmatpush1.msra.mxu0 0.0
    %1846 = vmatprep.subr.mxu0 0.0
    %1847 = vmatpush1.msra.mxu0 0.0
    %1848 = vmatprep.subr.mxu0 0.0
    %1849 = vmatpush1.msra.mxu0 0.0
    %1850 = vmatprep.subr.mxu0 0.0
    %1851 = vmatpush1.msra.mxu0 0.0
    %1852 = vmatprep.subr.mxu0 0.0
    %1853 = vmatpush1.msra.mxu0 0.0
    %1854 = vmatprep.subr.mxu0 0.0
    %1855 = vmatpush1.msra.mxu0 0.0
    %1856 = vmatprep.subr.mxu0 0.0
    %1857 = vmatpush1.msra.mxu0 0.0
    %1858 = vmatprep.subr.mxu0 0.0
    %1859 = vmatpush1.msra.mxu0 0.0
    %1860 = vmatprep.subr.mxu0 0.0
    %1861 = vmatpush1.msra.mxu0 0.0
    %1862 = vmatprep.subr.mxu0 0.0
    %1863 = vmatpush1.msra.mxu0 0.0
    %1864 = vmatprep.subr.mxu0 0.0
    %1865 = vmatpush1.msra.mxu0 0.0
    %1866 = vmatprep.subr.mxu0 0.0
    %1867 = vmatpush1.msra.mxu0 %v1829
    %1868 = vmatprep.subr.mxu0 0.0
    %1869 = vmatpush1.msra.mxu0 %v1827
    %1870 = vmatprep.subr.mxu0 0.0
    %1871 = vmatpush2.msra.mxu0 0.0
    %1872 = vmatprep.subr.mxu0 0.0
    %1873 = vmatpush2.msra.mxu0 0.0
    %1874 = vmatprep.subr.mxu0 0.0
    %1875 = vmatpush2.msra.mxu0 0.0
    %1876 = vmatprep.subr.mxu0 0.0
    %1877 = vmatpush2.msra.mxu0 0.0
    %1878 = vmatprep.subr.mxu0 0.0
    %1879 = vmatpush2.msra.mxu0 0.0
    %1880 = vmatprep.subr.mxu0 0.0
    %1881 = vmatpush2.msra.mxu0 0.0
    %1882 = vmatprep.subr.mxu0 0.0
    %1883 = vmatpush2.msra.mxu0 0.0
    %1884 = vmatprep.subr.mxu0 0.0
    %1885 = vmatpush2.msra.mxu0 0.0
    %1886 = vmatprep.subr.mxu0 0.0
    %1887 = vmatpush2.msra.mxu0 0.0
    %1888 = vmatprep.subr.mxu0 0.0
    %1889 = vmatpush2.msra.mxu0 0.0
    %1890 = vmatprep.subr.mxu0 0.0
    %1891 = vmatpush2.msra.mxu0 0.0
    %1892 = vmatprep.subr.mxu0 0.0
    %1893 = vmatpush2.msra.mxu0 0.0
    %1894 = vmatprep.subr.mxu0 0.0
    %1895 = vmatpush2.msra.mxu0 0.0
    %1896 = vmatprep.subr.mxu0 0.0
    %1897 = vmatpush2.msra.mxu0 0.0
    %1898 = vmatprep.subr.mxu0 0.0
    %1899 = vmatpush2.msra.mxu0 0.0
    %1900 = vmatprep.subr.mxu0 0.0
    %1901 = vmatpush2.msra.mxu0 0.0
    %1902 = vmatprep.mubr.f32.mxu0 0.0
    %1903 = vmatmul.mubr.f32.gmra.mxu0 %v1833
    %v1904 = vpop.f32.mrf.mxu0
    %v1905 = vadd.f32 0.0, %v1904
    %v1906 = vpop.f32.mrf.mxu0
    %1907 = vmatprep.mubr.f32.mxu0 0.0
    %1908 = vmatmul.mubr.f32.gmra.mxu0 %v1836
    %v1909 = vpop.f32.mrf.mxu0
    %v1910 = vadd.f32 0.0, %v1909
    %v1911 = vpop.f32.mrf.mxu0
    %1912 = vdwg.mxu0
    %1915 = vrot.lane.b32.xlu0 %v1905, 4
    %v1916 = vpop.permute.xlu0 %1915
    %1917 = vrot.lane.b32.xlu0 %v1910, 4
    %v1918 = vpop.permute.xlu0 %1917
    %v1921 = vsel %vm1520, %v1705, %v1916
    %v1922 = vsel %vm1520, %v1710, %v1918
    %v1923 = vpack.c.bf16 %v1922, %v1921
    %v1924 = vld [vmem:[%s15] sm:$0xf]
    %v1926 = vsel %vm165, %v1923, 0
    %v1929 = vsel %vm169, %v1924, 0
    %1931 = vmatprep.subr.bf16.mxu0 0
    %1932 = vmatpush1.bf16.msra.mxu0 0
    %1933 = vmatprep.subr.bf16.mxu0 0
    %1934 = vmatpush1.bf16.msra.mxu0 0
    %1935 = vmatprep.subr.bf16.mxu0 0
    %1936 = vmatpush1.bf16.msra.mxu0 0
    %1937 = vmatprep.subr.bf16.mxu0 0
    %1938 = vmatpush1.bf16.msra.mxu0 0
    %1939 = vmatprep.subr.bf16.mxu0 0
    %1940 = vmatpush1.bf16.msra.mxu0 0
    %1941 = vmatprep.subr.bf16.mxu0 0
    %1942 = vmatpush1.bf16.msra.mxu0 0
    %1943 = vmatprep.subr.bf16.mxu0 0
    %1944 = vmatpush1.bf16.msra.mxu0 0
    %1945 = vmatprep.subr.bf16.mxu0 0
    %1946 = vmatpush1.bf16.msra.mxu0 %v1929
    %1947 = vmatprep.subr.bf16.mxu0 0
    %1948 = vmatpush2.bf16.msra.mxu0 0
    %1949 = vmatprep.subr.bf16.mxu0 0
    %1950 = vmatpush2.bf16.msra.mxu0 0
    %1951 = vmatprep.subr.bf16.mxu0 0
    %1952 = vmatpush2.bf16.msra.mxu0 0
    %1953 = vmatprep.subr.bf16.mxu0 0
    %1954 = vmatpush2.bf16.msra.mxu0 0
    %1955 = vmatprep.subr.bf16.mxu0 0
    %1956 = vmatpush2.bf16.msra.mxu0 0
    %1957 = vmatprep.subr.bf16.mxu0 0
    %1958 = vmatpush2.bf16.msra.mxu0 0
    %1959 = vmatprep.subr.bf16.mxu0 0
    %1960 = vmatpush2.bf16.msra.mxu0 0
    %1961 = vmatprep.subr.bf16.mxu0 0
    %1962 = vmatpush2.bf16.msra.mxu0 0
    %1963 = vmatprep.mubr.bf16.mxu0 0
    %1964 = vmatmul.mubr.bf16.gmra.mxu0 %v1926
    %v1965 = vpop.f32.mrf.mxu0
    %v1966 = vadd.f32 0.0, %v1965
    %v1967 = vpop.f32.mrf.mxu0
    %v1968 = vpop.f32.mrf.mxu0
    %v1969 = vadd.f32 0.0, %v1968
    %v1970 = vpop.f32.mrf.mxu0
    %1971 = vdwg.mxu0
    %1974 = vrot.lane.b32.xlu0 %v1508, 120
    %v1975 = vpop.permute.xlu0 %1974
    %1976 = vrot.lane.b32.xlu0 %v1511, 120
    %v1977 = vpop.permute.xlu0 %1976
    %v1978 = vsel %vm1520, %v1508, 0
    %v1980 = vsel %vm1520, %v1511, 0
    %v1982 = vsel %vm1520, %v1975, 0
    %v1984 = vsel %vm1520, %v1977, 0
    %1986 = vmatprep.subr.mxu0 0.0
    %1987 = vmatpush1.xpose.msra.mxu0 0.0
    %1988 = vmatprep.subr.mxu0 0.0
    %1989 = vmatpush1.xpose.msra.mxu0 0.0
    %1990 = vmatprep.subr.mxu0 0.0
    %1991 = vmatpush1.xpose.msra.mxu0 0.0
    %1992 = vmatprep.subr.mxu0 0.0
    %1993 = vmatpush1.xpose.msra.mxu0 0.0
    %1994 = vmatprep.subr.mxu0 0.0
    %1995 = vmatpush1.xpose.msra.mxu0 0.0
    %1996 = vmatprep.subr.mxu0 0.0
    %1997 = vmatpush1.xpose.msra.mxu0 0.0
    %1998 = vmatprep.subr.mxu0 0.0
    %1999 = vmatpush1.xpose.msra.mxu0 0.0
    %2000 = vmatprep.subr.mxu0 0.0
    %2001 = vmatpush1.xpose.msra.mxu0 0.0
    %2002 = vmatprep.subr.mxu0 0.0
    %2003 = vmatpush1.xpose.msra.mxu0 0.0
    %2004 = vmatprep.subr.mxu0 0.0
    %2005 = vmatpush1.xpose.msra.mxu0 0.0
    %2006 = vmatprep.subr.mxu0 0.0
    %2007 = vmatpush1.xpose.msra.mxu0 0.0
    %2008 = vmatprep.subr.mxu0 0.0
    %2009 = vmatpush1.xpose.msra.mxu0 0.0
    %2010 = vmatprep.subr.mxu0 0.0
    %2011 = vmatpush1.xpose.msra.mxu0 0.0
    %2012 = vmatprep.subr.mxu0 0.0
    %2013 = vmatpush1.xpose.msra.mxu0 0.0
    %2014 = vmatprep.subr.mxu0 0.0
    %2015 = vmatpush1.xpose.msra.mxu0 %v1984
    %2016 = vmatprep.subr.mxu0 0.0
    %2017 = vmatpush1.xpose.msra.mxu0 %v1982
    %2018 = vmatprep.subr.mxu0 0.0
    %2019 = vmatpush2.xpose.msra.mxu0 0.0
    %2020 = vmatprep.subr.mxu0 0.0
    %2021 = vmatpush2.xpose.msra.mxu0 0.0
    %2022 = vmatprep.subr.mxu0 0.0
    %2023 = vmatpush2.xpose.msra.mxu0 0.0
    %2024 = vmatprep.subr.mxu0 0.0
    %2025 = vmatpush2.xpose.msra.mxu0 0.0
    %2026 = vmatprep.subr.mxu0 0.0
    %2027 = vmatpush2.xpose.msra.mxu0 0.0
    %2028 = vmatprep.subr.mxu0 0.0
    %2029 = vmatpush2.xpose.msra.mxu0 0.0
    %2030 = vmatprep.subr.mxu0 0.0
    %2031 = vmatpush2.xpose.msra.mxu0 0.0
    %2032 = vmatprep.subr.mxu0 0.0
    %2033 = vmatpush2.xpose.msra.mxu0 0.0
    %2034 = vmatprep.subr.mxu0 0.0
    %2035 = vmatpush2.xpose.msra.mxu0 0.0
    %2036 = vmatprep.subr.mxu0 0.0
    %2037 = vmatpush2.xpose.msra.mxu0 0.0
    %2038 = vmatprep.subr.mxu0 0.0
    %2039 = vmatpush2.xpose.msra.mxu0 0.0
    %2040 = vmatprep.subr.mxu0 0.0
    %2041 = vmatpush2.xpose.msra.mxu0 0.0
    %2042 = vmatprep.subr.mxu0 0.0
    %2043 = vmatpush2.xpose.msra.mxu0 0.0
    %2044 = vmatprep.subr.mxu0 0.0
    %2045 = vmatpush2.xpose.msra.mxu0 0.0
    %2046 = vmatprep.subr.mxu0 0.0
    %2047 = vmatpush2.xpose.msra.mxu0 0.0
    %2048 = vmatprep.subr.mxu0 0.0
    %2049 = vmatpush2.xpose.msra.mxu0 0.0
    %2050 = vmatprep.mubr.f32.mxu0 0.0
    %2051 = vmatmul.mubr.f32.gmra.mxu0 %v1978
    %v2052 = vpop.f32.mrf.mxu0
    %v2053 = vadd.f32 %v1444, %v2052
    %v2054 = vpop.f32.mrf.mxu0
    %2055 = vmatprep.mubr.f32.mxu0 0.0
    %2056 = vmatmul.mubr.f32.gmra.mxu0 %v1980
    %v2057 = vpop.f32.mrf.mxu0
    %v2058 = vadd.f32 %v1445, %v2057
    %v2059 = vpop.f32.mrf.mxu0
    %2060 = vdwg.mxu0
    %v2061 = vsel %vm922, %v2053, -inf
    %2062 = vmax.xlane.f32.xlu0 %v2061
    %v2063 = vpop.xlane.xlu0 %2062
    %v2064 = vsel %vm922, %v2058, -inf
    %2065 = vmax.xlane.f32.xlu0 %v2064
    %v2066 = vpop.xlane.xlu0 %2065
    %v2067 = vsub.f32 %v2053, %v2063
    %v2068 = vsub.f32 %v2058, %v2066
    %v2069 = vmul.f32 %v2067, 1.442695
    %v2070 = vpow.pop %v2069
    %v2071 = vmul.f32 %v2068, 1.442695
    %v2072 = vpow.pop %v2071
    %v2073 = vsel %vm922, %v2070, 0.0
    %2074 = vadd.xlane.f32.xlu0 %v2073
    %v2075 = vpop.xlane.xlu0 %2074
    %v2076 = vsel %vm922, %v2072, 0.0
    %2077 = vadd.xlane.f32.xlu0 %v2076
    %v2078 = vpop.xlane.xlu0 %2077
    %v2079 = vrcp.pop %v2075
    %v2080 = vrcp.pop %v2078
    %v2081 = vmul.f32 %v2070, %v2079
    %v2082 = vmul.f32 %v2072, %v2080
    %2083 = vrot.lane.b32.xlu0 %v1508, 112
    %v2084 = vpop.permute.xlu0 %2083
    %2085 = vrot.lane.b32.xlu0 %v1511, 112
    %v2086 = vpop.permute.xlu0 %2085
    %v2090 = vsel %vm922, %v2081, 0
    %v2093 = vsel %vm922, %v2082, 0
    %2095 = vmatprep.subr.mxu0 0.0
    %2096 = vmatpush1.msra.mxu0 0.0
    %2097 = vmatprep.subr.mxu0 0.0
    %2098 = vmatpush1.msra.mxu0 0.0
    %2099 = vmatprep.subr.mxu0 0.0
    %2100 = vmatpush1.msra.mxu0 0.0
    %2101 = vmatprep.subr.mxu0 0.0
    %2102 = vmatpush1.msra.mxu0 0.0
    %2103 = vmatprep.subr.mxu0 0.0
    %2104 = vmatpush1.msra.mxu0 0.0
    %2105 = vmatprep.subr.mxu0 0.0
    %2106 = vmatpush1.msra.mxu0 0.0
    %2107 = vmatprep.subr.mxu0 0.0
    %2108 = vmatpush1.msra.mxu0 0.0
    %2109 = vmatprep.subr.mxu0 0.0
    %2110 = vmatpush1.msra.mxu0 0.0
    %2111 = vmatprep.subr.mxu0 0.0
    %2112 = vmatpush1.msra.mxu0 0.0
    %2113 = vmatprep.subr.mxu0 0.0
    %2114 = vmatpush1.msra.mxu0 0.0
    %2115 = vmatprep.subr.mxu0 0.0
    %2116 = vmatpush1.msra.mxu0 0.0
    %2117 = vmatprep.subr.mxu0 0.0
    %2118 = vmatpush1.msra.mxu0 0.0
    %2119 = vmatprep.subr.mxu0 0.0
    %2120 = vmatpush1.msra.mxu0 0.0
    %2121 = vmatprep.subr.mxu0 0.0
    %2122 = vmatpush1.msra.mxu0 0.0
    %2123 = vmatprep.subr.mxu0 0.0
    %2124 = vmatpush1.msra.mxu0 %v2086
    %2125 = vmatprep.subr.mxu0 0.0
    %2126 = vmatpush1.msra.mxu0 %v2084
    %2127 = vmatprep.subr.mxu0 0.0
    %2128 = vmatpush2.msra.mxu0 0.0
    %2129 = vmatprep.subr.mxu0 0.0
    %2130 = vmatpush2.msra.mxu0 0.0
    %2131 = vmatprep.subr.mxu0 0.0
    %2132 = vmatpush2.msra.mxu0 0.0
    %2133 = vmatprep.subr.mxu0 0.0
    %2134 = vmatpush2.msra.mxu0 0.0
    %2135 = vmatprep.subr.mxu0 0.0
    %2136 = vmatpush2.msra.mxu0 0.0
    %2137 = vmatprep.subr.mxu0 0.0
    %2138 = vmatpush2.msra.mxu0 0.0
    %2139 = vmatprep.subr.mxu0 0.0
    %2140 = vmatpush2.msra.mxu0 0.0
    %2141 = vmatprep.subr.mxu0 0.0
    %2142 = vmatpush2.msra.mxu0 0.0
    %2143 = vmatprep.subr.mxu0 0.0
    %2144 = vmatpush2.msra.mxu0 0.0
    %2145 = vmatprep.subr.mxu0 0.0
    %2146 = vmatpush2.msra.mxu0 0.0
    %2147 = vmatprep.subr.mxu0 0.0
    %2148 = vmatpush2.msra.mxu0 0.0
    %2149 = vmatprep.subr.mxu0 0.0
    %2150 = vmatpush2.msra.mxu0 0.0
    %2151 = vmatprep.subr.mxu0 0.0
    %2152 = vmatpush2.msra.mxu0 0.0
    %2153 = vmatprep.subr.mxu0 0.0
    %2154 = vmatpush2.msra.mxu0 0.0
    %2155 = vmatprep.subr.mxu0 0.0
    %2156 = vmatpush2.msra.mxu0 0.0
    %2157 = vmatprep.subr.mxu0 0.0
    %2158 = vmatpush2.msra.mxu0 0.0
    %2159 = vmatprep.mubr.f32.mxu0 0.0
    %2160 = vmatmul.mubr.f32.gmra.mxu0 %v2090
    %v2161 = vpop.f32.mrf.mxu0
    %v2162 = vadd.f32 0.0, %v2161
    %v2163 = vpop.f32.mrf.mxu0
    %2164 = vmatprep.mubr.f32.mxu0 0.0
    %2165 = vmatmul.mubr.f32.gmra.mxu0 %v2093
    %v2166 = vpop.f32.mrf.mxu0
    %v2167 = vadd.f32 0.0, %v2166
    %v2168 = vpop.f32.mrf.mxu0
    %2169 = vdwg.mxu0
    %2170 = vrot.lane.b32.xlu0 %v1508, 124
    %v2171 = vpop.permute.xlu0 %2170
    %2172 = vrot.lane.b32.xlu0 %v1511, 124
    %v2173 = vpop.permute.xlu0 %2172
    %2174 = vrot.lane.b32.xlu0 %v1508, 116
    %v2175 = vpop.permute.xlu0 %2174
    %2176 = vrot.lane.b32.xlu0 %v1511, 116
    %v2177 = vpop.permute.xlu0 %2176
    %v2178 = vsel %vm1520, %v2171, 0
    %v2180 = vsel %vm1520, %v2173, 0
    %v2182 = vsel %vm1520, %v2175, 0
    %v2184 = vsel %vm1520, %v2177, 0
    %2186 = vmatprep.subr.mxu0 0.0
    %2187 = vmatpush1.xpose.msra.mxu0 0.0
    %2188 = vmatprep.subr.mxu0 0.0
    %2189 = vmatpush1.xpose.msra.mxu0 0.0
    %2190 = vmatprep.subr.mxu0 0.0
    %2191 = vmatpush1.xpose.msra.mxu0 0.0
    %2192 = vmatprep.subr.mxu0 0.0
    %2193 = vmatpush1.xpose.msra.mxu0 0.0
    %2194 = vmatprep.subr.mxu0 0.0
    %2195 = vmatpush1.xpose.msra.mxu0 0.0
    %2196 = vmatprep.subr.mxu0 0.0
    %2197 = vmatpush1.xpose.msra.mxu0 0.0
    %2198 = vmatprep.subr.mxu0 0.0
    %2199 = vmatpush1.xpose.msra.mxu0 0.0
    %2200 = vmatprep.subr.mxu0 0.0
    %2201 = vmatpush1.xpose.msra.mxu0 0.0
    %2202 = vmatprep.subr.mxu0 0.0
    %2203 = vmatpush1.xpose.msra.mxu0 0.0
    %2204 = vmatprep.subr.mxu0 0.0
    %2205 = vmatpush1.xpose.msra.mxu0 0.0
    %2206 = vmatprep.subr.mxu0 0.0
    %2207 = vmatpush1.xpose.msra.mxu0 0.0
    %2208 = vmatprep.subr.mxu0 0.0
    %2209 = vmatpush1.xpose.msra.mxu0 0.0
    %2210 = vmatprep.subr.mxu0 0.0
    %2211 = vmatpush1.xpose.msra.mxu0 0.0
    %2212 = vmatprep.subr.mxu0 0.0
    %2213 = vmatpush1.xpose.msra.mxu0 0.0
    %2214 = vmatprep.subr.mxu0 0.0
    %2215 = vmatpush1.xpose.msra.mxu0 %v2184
    %2216 = vmatprep.subr.mxu0 0.0
    %2217 = vmatpush1.xpose.msra.mxu0 %v2182
    %2218 = vmatprep.subr.mxu0 0.0
    %2219 = vmatpush2.xpose.msra.mxu0 0.0
    %2220 = vmatprep.subr.mxu0 0.0
    %2221 = vmatpush2.xpose.msra.mxu0 0.0
    %2222 = vmatprep.subr.mxu0 0.0
    %2223 = vmatpush2.xpose.msra.mxu0 0.0
    %2224 = vmatprep.subr.mxu0 0.0
    %2225 = vmatpush2.xpose.msra.mxu0 0.0
    %2226 = vmatprep.subr.mxu0 0.0
    %2227 = vmatpush2.xpose.msra.mxu0 0.0
    %2228 = vmatprep.subr.mxu0 0.0
    %2229 = vmatpush2.xpose.msra.mxu0 0.0
    %2230 = vmatprep.subr.mxu0 0.0
    %2231 = vmatpush2.xpose.msra.mxu0 0.0
    %2232 = vmatprep.subr.mxu0 0.0
    %2233 = vmatpush2.xpose.msra.mxu0 0.0
    %2234 = vmatprep.subr.mxu0 0.0
    %2235 = vmatpush2.xpose.msra.mxu0 0.0
    %2236 = vmatprep.subr.mxu0 0.0
    %2237 = vmatpush2.xpose.msra.mxu0 0.0
    %2238 = vmatprep.subr.mxu0 0.0
    %2239 = vmatpush2.xpose.msra.mxu0 0.0
    %2240 = vmatprep.subr.mxu0 0.0
    %2241 = vmatpush2.xpose.msra.mxu0 0.0
    %2242 = vmatprep.subr.mxu0 0.0
    %2243 = vmatpush2.xpose.msra.mxu0 0.0
    %2244 = vmatprep.subr.mxu0 0.0
    %2245 = vmatpush2.xpose.msra.mxu0 0.0
    %2246 = vmatprep.subr.mxu0 0.0
    %2247 = vmatpush2.xpose.msra.mxu0 0.0
    %2248 = vmatprep.subr.mxu0 0.0
    %2249 = vmatpush2.xpose.msra.mxu0 0.0
    %2250 = vmatprep.mubr.f32.mxu0 0.0
    %2251 = vmatmul.mubr.f32.gmra.mxu0 %v2178
    %v2252 = vpop.f32.mrf.mxu0
    %v2253 = vadd.f32 %v1444, %v2252
    %v2254 = vpop.f32.mrf.mxu0
    %2255 = vmatprep.mubr.f32.mxu0 0.0
    %2256 = vmatmul.mubr.f32.gmra.mxu0 %v2180
    %v2257 = vpop.f32.mrf.mxu0
    %v2258 = vadd.f32 %v1445, %v2257
    %v2259 = vpop.f32.mrf.mxu0
    %2260 = vdwg.mxu0
    %v2261 = vsel %vm922, %v2253, -inf
    %2262 = vmax.xlane.f32.xlu0 %v2261
    %v2263 = vpop.xlane.xlu0 %2262
    %v2264 = vsel %vm922, %v2258, -inf
    %2265 = vmax.xlane.f32.xlu0 %v2264
    %v2266 = vpop.xlane.xlu0 %2265
    %v2267 = vsub.f32 %v2253, %v2263
    %v2268 = vsub.f32 %v2258, %v2266
    %v2269 = vmul.f32 %v2267, 1.442695
    %v2270 = vpow.pop %v2269
    %v2271 = vmul.f32 %v2268, 1.442695
    %v2272 = vpow.pop %v2271
    %v2273 = vsel %vm922, %v2270, 0.0
    %2274 = vadd.xlane.f32.xlu0 %v2273
    %v2275 = vpop.xlane.xlu0 %2274
    %v2276 = vsel %vm922, %v2272, 0.0
    %2277 = vadd.xlane.f32.xlu0 %v2276
    %v2278 = vpop.xlane.xlu0 %2277
    %v2279 = vrcp.pop %v2275
    %v2280 = vrcp.pop %v2278
    %v2281 = vmul.f32 %v2270, %v2279
    %v2282 = vmul.f32 %v2272, %v2280
    %2283 = vrot.lane.b32.xlu0 %v1508, 108
    %v2284 = vpop.permute.xlu0 %2283
    %2285 = vrot.lane.b32.xlu0 %v1511, 108
    %v2286 = vpop.permute.xlu0 %2285
    %v2290 = vsel %vm922, %v2281, 0
    %v2293 = vsel %vm922, %v2282, 0
    %2295 = vmatprep.subr.mxu0 0.0
    %2296 = vmatpush1.msra.mxu0 0.0
    %2297 = vmatprep.subr.mxu0 0.0
    %2298 = vmatpush1.msra.mxu0 0.0
    %2299 = vmatprep.subr.mxu0 0.0
    %2300 = vmatpush1.msra.mxu0 0.0
    %2301 = vmatprep.subr.mxu0 0.0
    %2302 = vmatpush1.msra.mxu0 0.0
    %2303 = vmatprep.subr.mxu0 0.0
    %2304 = vmatpush1.msra.mxu0 0.0
    %2305 = vmatprep.subr.mxu0 0.0
    %2306 = vmatpush1.msra.mxu0 0.0
    %2307 = vmatprep.subr.mxu0 0.0
    %2308 = vmatpush1.msra.mxu0 0.0
    %2309 = vmatprep.subr.mxu0 0.0
    %2310 = vmatpush1.msra.mxu0 0.0
    %2311 = vmatprep.subr.mxu0 0.0
    %2312 = vmatpush1.msra.mxu0 0.0
    %2313 = vmatprep.subr.mxu0 0.0
    %2314 = vmatpush1.msra.mxu0 0.0
    %2315 = vmatprep.subr.mxu0 0.0
    %2316 = vmatpush1.msra.mxu0 0.0
    %2317 = vmatprep.subr.mxu0 0.0
    %2318 = vmatpush1.msra.mxu0 0.0
    %2319 = vmatprep.subr.mxu0 0.0
    %2320 = vmatpush1.msra.mxu0 0.0
    %2321 = vmatprep.subr.mxu0 0.0
    %2322 = vmatpush1.msra.mxu0 0.0
    %2323 = vmatprep.subr.mxu0 0.0
    %2324 = vmatpush1.msra.mxu0 %v2286
    %2325 = vmatprep.subr.mxu0 0.0
    %2326 = vmatpush1.msra.mxu0 %v2284
    %2327 = vmatprep.subr.mxu0 0.0
    %2328 = vmatpush2.msra.mxu0 0.0
    %2329 = vmatprep.subr.mxu0 0.0
    %2330 = vmatpush2.msra.mxu0 0.0
    %2331 = vmatprep.subr.mxu0 0.0
    %2332 = vmatpush2.msra.mxu0 0.0
    %2333 = vmatprep.subr.mxu0 0.0
    %2334 = vmatpush2.msra.mxu0 0.0
    %2335 = vmatprep.subr.mxu0 0.0
    %2336 = vmatpush2.msra.mxu0 0.0
    %2337 = vmatprep.subr.mxu0 0.0
    %2338 = vmatpush2.msra.mxu0 0.0
    %2339 = vmatprep.subr.mxu0 0.0
    %2340 = vmatpush2.msra.mxu0 0.0
    %2341 = vmatprep.subr.mxu0 0.0
    %2342 = vmatpush2.msra.mxu0 0.0
    %2343 = vmatprep.subr.mxu0 0.0
    %2344 = vmatpush2.msra.mxu0 0.0
    %2345 = vmatprep.subr.mxu0 0.0
    %2346 = vmatpush2.msra.mxu0 0.0
    %2347 = vmatprep.subr.mxu0 0.0
    %2348 = vmatpush2.msra.mxu0 0.0
    %2349 = vmatprep.subr.mxu0 0.0
    %2350 = vmatpush2.msra.mxu0 0.0
    %2351 = vmatprep.subr.mxu0 0.0
    %2352 = vmatpush2.msra.mxu0 0.0
    %2353 = vmatprep.subr.mxu0 0.0
    %2354 = vmatpush2.msra.mxu0 0.0
    %2355 = vmatprep.subr.mxu0 0.0
    %2356 = vmatpush2.msra.mxu0 0.0
    %2357 = vmatprep.subr.mxu0 0.0
    %2358 = vmatpush2.msra.mxu0 0.0
    %2359 = vmatprep.mubr.f32.mxu0 0.0
    %2360 = vmatmul.mubr.f32.gmra.mxu0 %v2290
    %v2361 = vpop.f32.mrf.mxu0
    %v2362 = vadd.f32 0.0, %v2361
    %v2363 = vpop.f32.mrf.mxu0
    %2364 = vmatprep.mubr.f32.mxu0 0.0
    %2365 = vmatmul.mubr.f32.gmra.mxu0 %v2293
    %v2366 = vpop.f32.mrf.mxu0
    %v2367 = vadd.f32 0.0, %v2366
    %v2368 = vpop.f32.mrf.mxu0
    %2369 = vdwg.mxu0
    %2372 = vrot.lane.b32.xlu0 %v2362, 4
    %v2373 = vpop.permute.xlu0 %2372
    %2374 = vrot.lane.b32.xlu0 %v2367, 4
    %v2375 = vpop.permute.xlu0 %2374
    %v2378 = vsel %vm1520, %v2162, %v2373
    %v2379 = vsel %vm1520, %v2167, %v2375
    %v2380 = vpack.c.bf16 %v2379, %v2378
    %v2382 = vsel %vm165, %v2380, 0
    %2384 = vmatprep.subr.bf16.mxu0 0
    %2385 = vmatpush1.bf16.msra.mxu0 0
    %2386 = vmatprep.subr.bf16.mxu0 0
    %2387 = vmatpush1.bf16.msra.mxu0 0
    %2388 = vmatprep.subr.bf16.mxu0 0
    %2389 = vmatpush1.bf16.msra.mxu0 0
    %2390 = vmatprep.subr.bf16.mxu0 0
    %2391 = vmatpush1.bf16.msra.mxu0 0
    %2392 = vmatprep.subr.bf16.mxu0 0
    %2393 = vmatpush1.bf16.msra.mxu0 0
    %2394 = vmatprep.subr.bf16.mxu0 0
    %2395 = vmatpush1.bf16.msra.mxu0 0
    %2396 = vmatprep.subr.bf16.mxu0 0
    %2397 = vmatpush1.bf16.msra.mxu0 0
    %2398 = vmatprep.subr.bf16.mxu0 0
    %2399 = vmatpush1.bf16.msra.mxu0 %v1929
    %2400 = vmatprep.subr.bf16.mxu0 0
    %2401 = vmatpush2.bf16.msra.mxu0 0
    %2402 = vmatprep.subr.bf16.mxu0 0
    %2403 = vmatpush2.bf16.msra.mxu0 0
    %2404 = vmatprep.subr.bf16.mxu0 0
    %2405 = vmatpush2.bf16.msra.mxu0 0
    %2406 = vmatprep.subr.bf16.mxu0 0
    %2407 = vmatpush2.bf16.msra.mxu0 0
    %2408 = vmatprep.subr.bf16.mxu0 0
    %2409 = vmatpush2.bf16.msra.mxu0 0
    %2410 = vmatprep.subr.bf16.mxu0 0
    %2411 = vmatpush2.bf16.msra.mxu0 0
    %2412 = vmatprep.subr.bf16.mxu0 0
    %2413 = vmatpush2.bf16.msra.mxu0 0
    %2414 = vmatprep.subr.bf16.mxu0 0
    %2415 = vmatpush2.bf16.msra.mxu0 0
    %2416 = vmatprep.mubr.bf16.mxu0 0
    %2417 = vmatmul.mubr.bf16.gmra.mxu0 %v2382
    %v2418 = vpop.f32.mrf.mxu0
    %v2419 = vadd.f32 0.0, %v2418
    %v2420 = vpop.f32.mrf.mxu0
    %v2421 = vpop.f32.mrf.mxu0
    %v2422 = vadd.f32 0.0, %v2421
    %v2423 = vpop.f32.mrf.mxu0
    %2424 = vdwg.mxu0
    %v2425 = vld [vmem:[%s16] sm:$0x1]
    %v2427 = vlaneseq
    %v2428 = vshrl.u32 %v2427, 7
    %v2429 = vsub.s32 0, %v2428
    %v2430 = vrot.slane %v2425, %v2429
    %v2432 = vadd.f32 %v1966, %v2430
    %v2433 = vadd.f32 %v1969, %v2430
    %v2434 = vadd.f32 %v2419, %v2430
    %v2435 = vadd.f32 %v2422, %v2430
    %v2436 = vadd.f32 %v1401, %v2432
    %v2437 = vadd.f32 %v1402, %v2433
    %v2438 = vadd.f32 %v1442, %v2434
    %v2439 = vadd.f32 %v1443, %v2435
    %v2440 = vld [vmem:[%s21] sm:$0x1]
    %v2441 = vld [vmem:[%s22] sm:$0x1]
    %v2442 = vsel %vm165, %v2436, 0.0
    %2443 = vadd.xlane.f32.xlu0 %v2442
    %v2444 = vpop.xlane.xlu0 %2443
    %v2445 = vsel %vm165, %v2437, 0.0
    %2446 = vadd.xlane.f32.xlu0 %v2445
    %v2447 = vpop.xlane.xlu0 %2446
    %v2448 = vsel %vm165, %v2438, 0.0
    %2449 = vadd.xlane.f32.xlu0 %v2448
    %v2450 = vpop.xlane.xlu0 %2449
    %v2451 = vsel %vm165, %v2439, 0.0
    %2452 = vadd.xlane.f32.xlu0 %v2451
    %v2453 = vpop.xlane.xlu0 %2452
    %v2454 = vrcp.pop 8.0
    %v2455 = vmul.f32 %v2444, %v2454
    %v2456 = vmul.f32 %v2447, %v2454
    %v2457 = vmul.f32 %v2450, %v2454
    %v2458 = vmul.f32 %v2453, %v2454
    %v2459 = vsub.f32 %v2436, %v2455
    %v2460 = vsub.f32 %v2437, %v2456
    %v2461 = vsub.f32 %v2438, %v2457
    %v2462 = vsub.f32 %v2439, %v2458
    %v2463 = vmul.f32 %v2459, %v2459
    %v2464 = vmul.f32 %v2460, %v2460
    %v2465 = vmul.f32 %v2461, %v2461
    %v2466 = vmul.f32 %v2462, %v2462
    %v2467 = vsel %vm165, %v2463, 0.0
    %2468 = vadd.xlane.f32.xlu0 %v2467
    %v2469 = vpop.xlane.xlu0 %2468
    %v2470 = vsel %vm165, %v2464, 0.0
    %2471 = vadd.xlane.f32.xlu0 %v2470
    %v2472 = vpop.xlane.xlu0 %2471
    %v2473 = vsel %vm165, %v2465, 0.0
    %2474 = vadd.xlane.f32.xlu0 %v2473
    %v2475 = vpop.xlane.xlu0 %2474
    %v2476 = vsel %vm165, %v2466, 0.0
    %2477 = vadd.xlane.f32.xlu0 %v2476
    %v2478 = vpop.xlane.xlu0 %2477
    %v2479 = vmul.f32 %v2469, %v2454
    %v2480 = vmul.f32 %v2472, %v2454
    %v2481 = vmul.f32 %v2475, %v2454
    %v2482 = vmul.f32 %v2478, %v2454
    %v2483 = vadd.f32 %v2479, 1e-05
    %v2484 = vadd.f32 %v2480, 1e-05
    %v2485 = vadd.f32 %v2481, 1e-05
    %v2486 = vadd.f32 %v2482, 1e-05
    %v2487 = vrsqrt.pop %v2483
    %v2488 = vrsqrt.pop %v2484
    %v2489 = vrsqrt.pop %v2485
    %v2490 = vrsqrt.pop %v2486
    %v2491 = vmul.f32 %v2459, %v2487
    %v2492 = vmul.f32 %v2460, %v2488
    %v2493 = vmul.f32 %v2461, %v2489
    %v2494 = vmul.f32 %v2462, %v2490
    %v2496 = vlaneseq
    %v2497 = vshrl.u32 %v2496, 7
    %v2498 = vsub.s32 0, %v2497
    %v2499 = vrot.slane %v2440, %v2498
    %v2501 = vmul.f32 %v2491, %v2499
    %v2502 = vmul.f32 %v2492, %v2499
    %v2503 = vmul.f32 %v2493, %v2499
    %v2504 = vmul.f32 %v2494, %v2499
    %v2506 = vlaneseq
    %v2507 = vshrl.u32 %v2506, 7
    %v2508 = vsub.s32 0, %v2507
    %v2509 = vrot.slane %v2441, %v2508
    %v2511 = vadd.f32 %v2501, %v2509
    %v2512 = vadd.f32 %v2502, %v2509
    %v2513 = vadd.f32 %v2503, %v2509
    %v2514 = vadd.f32 %v2504, %v2509
    %v2515 = vpack.c.bf16 %v2512, %v2511
    %v2516 = vpack.c.bf16 %v2514, %v2513
    %v2517 = vld [vmem:[%s17] sm:$0xf]
    %v2518 = vld [vmem:[%s18] sm:$0x1]
    %v2520 = vlaneseq
    %v2521 = vshrl.u32 %v2520, 7
    %v2522 = vsub.s32 0, %v2521
    %v2523 = vrot.slane %v2518, %v2522
    %v2526 = vsel %vm165, %v2515, 0
    %v2529 = vsel %vm165, %v2516, 0
    %v2532 = vsel %vm169, %v2517, 0
    %2534 = vmatprep.subr.bf16.mxu0 0
    %2535 = vmatpush1.bf16.msra.mxu0 0
    %2536 = vmatprep.subr.bf16.mxu0 0
    %2537 = vmatpush1.bf16.msra.mxu0 0
    %2538 = vmatprep.subr.bf16.mxu0 0
    %2539 = vmatpush1.bf16.msra.mxu0 0
    %2540 = vmatprep.subr.bf16.mxu0 0
    %2541 = vmatpush1.bf16.msra.mxu0 0
    %2542 = vmatprep.subr.bf16.mxu0 0
    %2543 = vmatpush1.bf16.msra.mxu0 0
    %2544 = vmatprep.subr.bf16.mxu0 0
    %2545 = vmatpush1.bf16.msra.mxu0 0
    %2546 = vmatprep.subr.bf16.mxu0 0
    %2547 = vmatpush1.bf16.msra.mxu0 0
    %2548 = vmatprep.subr.bf16.mxu0 0
    %2549 = vmatpush1.bf16.msra.mxu0 %v2532
    %2550 = vmatprep.subr.bf16.mxu0 0
    %2551 = vmatpush2.bf16.msra.mxu0 0
    %2552 = vmatprep.subr.bf16.mxu0 0
    %2553 = vmatpush2.bf16.msra.mxu0 0
    %2554 = vmatprep.subr.bf16.mxu0 0
    %2555 = vmatpush2.bf16.msra.mxu0 0
    %2556 = vmatprep.subr.bf16.mxu0 0
    %2557 = vmatpush2.bf16.msra.mxu0 0
    %2558 = vmatprep.subr.bf16.mxu0 0
    %2559 = vmatpush2.bf16.msra.mxu0 0
    %2560 = vmatprep.subr.bf16.mxu0 0
    %2561 = vmatpush2.bf16.msra.mxu0 0
    %2562 = vmatprep.subr.bf16.mxu0 0
    %2563 = vmatpush2.bf16.msra.mxu0 0
    %2564 = vmatprep.subr.bf16.mxu0 0
    %2565 = vmatpush2.bf16.msra.mxu0 0
    %2566 = vmatprep.mubr.bf16.mxu0 0
    %2567 = vmatmul.mubr.bf16.gmra.mxu0 %v2526
    %v2568 = vpop.f32.mrf.mxu0
    %v2569 = vadd.f32 %v2523, %v2568
    %v2570 = vpop.f32.mrf.mxu0
    %v2571 = vpop.f32.mrf.mxu0
    %v2572 = vadd.f32 %v2523, %v2571
    %v2573 = vpop.f32.mrf.mxu0
    %2574 = vmatprep.mubr.bf16.mxu0 0
    %2575 = vmatmul.mubr.bf16.gmra.mxu0 %v2529
    %v2576 = vpop.f32.mrf.mxu0
    %v2577 = vadd.f32 %v2523, %v2576
    %v2578 = vpop.f32.mrf.mxu0
    %v2579 = vpop.f32.mrf.mxu0
    %v2580 = vadd.f32 %v2523, %v2579
    %v2581 = vpop.f32.mrf.mxu0
    %2582 = vdwg.mxu0
    %v2583 = vmax.f32 %v2569, 0.0
    %v2584 = vmax.f32 %v2572, 0.0
    %v2585 = vmax.f32 %v2577, 0.0
    %v2586 = vmax.f32 %v2580, 0.0
    %v2587 = vpack.c.bf16 %v2584, %v2583
    %v2588 = vpack.c.bf16 %v2586, %v2585
    %v2589 = vld [vmem:[%s19] sm:$0xf]
    %v2590 = vld [vmem:[%s19 + $0x4] sm:$0xf]
    %v2591 = vld [vmem:[%s19 + $0x8] sm:$0xf]
    %v2592 = vld [vmem:[%s19 + $0xc] sm:$0xf]
    %v2593 = vld [vmem:[%s20] sm:$0x1]
    %v2595 = vlaneseq
    %v2596 = vshrl.u32 %v2595, 7
    %v2597 = vsub.s32 0, %v2596
    %v2598 = vrot.slane %v2593, %v2597
    %v2604 = vunpack.c.l.b16 %v2589
    %v2605 = vunpack.c.l.b16 %v2590
    %v2606 = vunpack.c.l.b16 %v2591
    %v2607 = vunpack.c.l.b16 %v2592
    %v2608 = vpack.c.b16 %v2605, %v2604
    %v2609 = vpack.c.b16 %v2607, %v2606
    %vm2612 = vcmask 261120
    %v2614 = vsel %vm2612, %v2587, 0
    %v2617 = vsel %vm2612, %v2588, 0
    %2619 = vmatprep.subr.bf16.mxu0 0
    %2620 = vmatpush1.bf16.msra.mxu0 0
    %2621 = vmatprep.subr.bf16.mxu0 0
    %2622 = vmatpush1.bf16.msra.mxu0 0
    %2623 = vmatprep.subr.bf16.mxu0 0
    %2624 = vmatpush1.bf16.msra.mxu0 0
    %2625 = vmatprep.subr.bf16.mxu0 0
    %2626 = vmatpush1.bf16.msra.mxu0 0
    %2627 = vmatprep.subr.bf16.mxu0 0
    %2628 = vmatpush1.bf16.msra.mxu0 0
    %2629 = vmatprep.subr.bf16.mxu0 0
    %2630 = vmatpush1.bf16.msra.mxu0 0
    %2631 = vmatprep.subr.bf16.mxu0 0
    %2632 = vmatpush1.bf16.msra.mxu0 %v2609
    %2633 = vmatprep.subr.bf16.mxu0 0
    %2634 = vmatpush1.bf16.msra.mxu0 %v2608
    %2635 = vmatprep.subr.bf16.mxu0 0
    %2636 = vmatpush2.bf16.msra.mxu0 0
    %2637 = vmatprep.subr.bf16.mxu0 0
    %2638 = vmatpush2.bf16.msra.mxu0 0
    %2639 = vmatprep.subr.bf16.mxu0 0
    %2640 = vmatpush2.bf16.msra.mxu0 0
    %2641 = vmatprep.subr.bf16.mxu0 0
    %2642 = vmatpush2.bf16.msra.mxu0 0
    %2643 = vmatprep.subr.bf16.mxu0 0
    %2644 = vmatpush2.bf16.msra.mxu0 0
    %2645 = vmatprep.subr.bf16.mxu0 0
    %2646 = vmatpush2.bf16.msra.mxu0 0
    %2647 = vmatprep.subr.bf16.mxu0 0
    %2648 = vmatpush2.bf16.msra.mxu0 0
    %2649 = vmatprep.subr.bf16.mxu0 0
    %2650 = vmatpush2.bf16.msra.mxu0 0
    %2651 = vmatprep.mubr.bf16.mxu0 0
    %2652 = vmatmul.mubr.bf16.gmra.mxu0 %v2614
    %v2653 = vpop.f32.mrf.mxu0
    %v2654 = vadd.f32 %v2598, %v2653
    %v2655 = vpop.f32.mrf.mxu0
    %v2656 = vpop.f32.mrf.mxu0
    %v2657 = vadd.f32 %v2598, %v2656
    %v2658 = vpop.f32.mrf.mxu0
    %2659 = vmatprep.mubr.bf16.mxu0 0
    %2660 = vmatmul.mubr.bf16.gmra.mxu0 %v2617
    %v2661 = vpop.f32.mrf.mxu0
    %v2662 = vadd.f32 %v2598, %v2661
    %v2663 = vpop.f32.mrf.mxu0
    %v2664 = vpop.f32.mrf.mxu0
    %v2665 = vadd.f32 %v2598, %v2664
    %v2666 = vpop.f32.mrf.mxu0
    %2667 = vdwg.mxu0
    %v2668 = vadd.f32 %v2511, %v2654
    %v2669 = vadd.f32 %v2512, %v2657
    %v2670 = vadd.f32 %v2513, %v2662
    %v2671 = vadd.f32 %v2514, %v2665
    %v2672 = vld [vmem:[%s23] sm:$0x1]
    %v2673 = vld [vmem:[%s24] sm:$0x1]
    %v2674 = vsel %vm165, %v2668, 0.0
    %2675 = vadd.xlane.f32.xlu0 %v2674
    %v2676 = vpop.xlane.xlu0 %2675
    %v2677 = vsel %vm165, %v2669, 0.0
    %2678 = vadd.xlane.f32.xlu0 %v2677
    %v2679 = vpop.xlane.xlu0 %2678
    %v2680 = vsel %vm165, %v2670, 0.0
    %2681 = vadd.xlane.f32.xlu0 %v2680
    %v2682 = vpop.xlane.xlu0 %2681
    %v2683 = vsel %vm165, %v2671, 0.0
    %2684 = vadd.xlane.f32.xlu0 %v2683
    %v2685 = vpop.xlane.xlu0 %2684
    %v2686 = vmul.f32 %v2676, %v2454
    %v2687 = vmul.f32 %v2679, %v2454
    %v2688 = vmul.f32 %v2682, %v2454
    %v2689 = vmul.f32 %v2685, %v2454
    %v2690 = vsub.f32 %v2668, %v2686
    %v2691 = vsub.f32 %v2669, %v2687
    %v2692 = vsub.f32 %v2670, %v2688
    %v2693 = vsub.f32 %v2671, %v2689
    %v2694 = vmul.f32 %v2690, %v2690
    %v2695 = vmul.f32 %v2691, %v2691
    %v2696 = vmul.f32 %v2692, %v2692
    %v2697 = vmul.f32 %v2693, %v2693
    %v2698 = vsel %vm165, %v2694, 0.0
    %2699 = vadd.xlane.f32.xlu0 %v2698
    %v2700 = vpop.xlane.xlu0 %2699
    %v2701 = vsel %vm165, %v2695, 0.0
    %2702 = vadd.xlane.f32.xlu0 %v2701
    %v2703 = vpop.xlane.xlu0 %2702
    %v2704 = vsel %vm165, %v2696, 0.0
    %2705 = vadd.xlane.f32.xlu0 %v2704
    %v2706 = vpop.xlane.xlu0 %2705
    %v2707 = vsel %vm165, %v2697, 0.0
    %2708 = vadd.xlane.f32.xlu0 %v2707
    %v2709 = vpop.xlane.xlu0 %2708
    %v2710 = vmul.f32 %v2700, %v2454
    %v2711 = vmul.f32 %v2703, %v2454
    %v2712 = vmul.f32 %v2706, %v2454
    %v2713 = vmul.f32 %v2709, %v2454
    %v2714 = vadd.f32 %v2710, 1e-05
    %v2715 = vadd.f32 %v2711, 1e-05
    %v2716 = vadd.f32 %v2712, 1e-05
    %v2717 = vadd.f32 %v2713, 1e-05
    %v2718 = vrsqrt.pop %v2714
    %v2719 = vrsqrt.pop %v2715
    %v2720 = vrsqrt.pop %v2716
    %v2721 = vrsqrt.pop %v2717
    %v2722 = vmul.f32 %v2690, %v2718
    %v2723 = vmul.f32 %v2691, %v2719
    %v2724 = vmul.f32 %v2692, %v2720
    %v2725 = vmul.f32 %v2693, %v2721
    %v2727 = vlaneseq
    %v2728 = vshrl.u32 %v2727, 7
    %v2729 = vsub.s32 0, %v2728
    %v2730 = vrot.slane %v2672, %v2729
    %v2732 = vmul.f32 %v2722, %v2730
    %v2733 = vmul.f32 %v2723, %v2730
    %v2734 = vmul.f32 %v2724, %v2730
    %v2735 = vmul.f32 %v2725, %v2730
    %v2737 = vlaneseq
    %v2738 = vshrl.u32 %v2737, 7
    %v2739 = vsub.s32 0, %v2738
    %v2740 = vrot.slane %v2673, %v2739
    %v2742 = vadd.f32 %v2732, %v2740
    %v2743 = vadd.f32 %v2733, %v2740
    %v2744 = vadd.f32 %v2734, %v2740
    %v2745 = vadd.f32 %v2735, %v2740
    %v2746 = vpack.c.bf16 %v2743, %v2742
    %v2747 = vpack.c.bf16 %v2745, %v2744
    %s2748 = scalar_lea.vmem %s13, 4
    %v2749 = vld [vmem:[%s2748] sm:$0xf]
    %s2750 = scalar_lea.vmem %s14, 1
    %v2751 = vld [vmem:[%s2750] sm:$0x1]
    %v2753 = vlaneseq
    %v2754 = vshrl.u32 %v2753, 7
    %v2755 = vsub.s32 0, %v2754
    %v2756 = vrot.slane %v2751, %v2755
    %v2759 = vsel %vm165, %v2746, 0
    %v2762 = vsel %vm165, %v2747, 0
    %v2765 = vsel %vm169, %v2749, 0
    %2767 = vmatprep.subr.bf16.mxu0 0
    %2768 = vmatpush1.bf16.msra.mxu0 0
    %2769 = vmatprep.subr.bf16.mxu0 0
    %2770 = vmatpush1.bf16.msra.mxu0 0
    %2771 = vmatprep.subr.bf16.mxu0 0
    %2772 = vmatpush1.bf16.msra.mxu0 0
    %2773 = vmatprep.subr.bf16.mxu0 0
    %2774 = vmatpush1.bf16.msra.mxu0 0
    %2775 = vmatprep.subr.bf16.mxu0 0
    %2776 = vmatpush1.bf16.msra.mxu0 0
    %2777 = vmatprep.subr.bf16.mxu0 0
    %2778 = vmatpush1.bf16.msra.mxu0 0
    %2779 = vmatprep.subr.bf16.mxu0 0
    %2780 = vmatpush1.bf16.msra.mxu0 0
    %2781 = vmatprep.subr.bf16.mxu0 0
    %2782 = vmatpush1.bf16.msra.mxu0 %v2765
    %2783 = vmatprep.subr.bf16.mxu0 0
    %2784 = vmatpush2.bf16.msra.mxu0 0
    %2785 = vmatprep.subr.bf16.mxu0 0
    %2786 = vmatpush2.bf16.msra.mxu0 0
    %2787 = vmatprep.subr.bf16.mxu0 0
    %2788 = vmatpush2.bf16.msra.mxu0 0
    %2789 = vmatprep.subr.bf16.mxu0 0
    %2790 = vmatpush2.bf16.msra.mxu0 0
    %2791 = vmatprep.subr.bf16.mxu0 0
    %2792 = vmatpush2.bf16.msra.mxu0 0
    %2793 = vmatprep.subr.bf16.mxu0 0
    %2794 = vmatpush2.bf16.msra.mxu0 0
    %2795 = vmatprep.subr.bf16.mxu0 0
    %2796 = vmatpush2.bf16.msra.mxu0 0
    %2797 = vmatprep.subr.bf16.mxu0 0
    %2798 = vmatpush2.bf16.msra.mxu0 0
    %2799 = vmatprep.mubr.bf16.mxu0 0
    %2800 = vmatmul.mubr.bf16.gmra.mxu0 %v2759
    %v2801 = vpop.f32.mrf.mxu0
    %v2802 = vadd.f32 %v2756, %v2801
    %v2803 = vpop.f32.mrf.mxu0
    %v2804 = vpop.f32.mrf.mxu0
    %v2805 = vadd.f32 %v2756, %v2804
    %v2806 = vpop.f32.mrf.mxu0
    %2807 = vmatprep.mubr.bf16.mxu0 0
    %2808 = vmatmul.mubr.bf16.gmra.mxu0 %v2762
    %v2809 = vpop.f32.mrf.mxu0
    %v2810 = vadd.f32 %v2756, %v2809
    %v2811 = vpop.f32.mrf.mxu0
    %v2812 = vpop.f32.mrf.mxu0
    %v2813 = vadd.f32 %v2756, %v2812
    %v2814 = vpop.f32.mrf.mxu0
    %2815 = vdwg.mxu0
    %2818 = vrot.lane.b32.xlu0 %v2802, 120
    %v2819 = vpop.permute.xlu0 %2818
    %2820 = vrot.lane.b32.xlu0 %v2805, 120
    %v2821 = vpop.permute.xlu0 %2820
    %v2822 = vsel %vm1520, %v2802, 0
    %v2824 = vsel %vm1520, %v2805, 0
    %v2826 = vsel %vm1520, %v2819, 0
    %v2828 = vsel %vm1520, %v2821, 0
    %2830 = vmatprep.subr.mxu0 0.0
    %2831 = vmatpush1.xpose.msra.mxu0 0.0
    %2832 = vmatprep.subr.mxu0 0.0
    %2833 = vmatpush1.xpose.msra.mxu0 0.0
    %2834 = vmatprep.subr.mxu0 0.0
    %2835 = vmatpush1.xpose.msra.mxu0 0.0
    %2836 = vmatprep.subr.mxu0 0.0
    %2837 = vmatpush1.xpose.msra.mxu0 0.0
    %2838 = vmatprep.subr.mxu0 0.0
    %2839 = vmatpush1.xpose.msra.mxu0 0.0
    %2840 = vmatprep.subr.mxu0 0.0
    %2841 = vmatpush1.xpose.msra.mxu0 0.0
    %2842 = vmatprep.subr.mxu0 0.0
    %2843 = vmatpush1.xpose.msra.mxu0 0.0
    %2844 = vmatprep.subr.mxu0 0.0
    %2845 = vmatpush1.xpose.msra.mxu0 0.0
    %2846 = vmatprep.subr.mxu0 0.0
    %2847 = vmatpush1.xpose.msra.mxu0 0.0
    %2848 = vmatprep.subr.mxu0 0.0
    %2849 = vmatpush1.xpose.msra.mxu0 0.0
    %2850 = vmatprep.subr.mxu0 0.0
    %2851 = vmatpush1.xpose.msra.mxu0 0.0
    %2852 = vmatprep.subr.mxu0 0.0
    %2853 = vmatpush1.xpose.msra.mxu0 0.0
    %2854 = vmatprep.subr.mxu0 0.0
    %2855 = vmatpush1.xpose.msra.mxu0 0.0
    %2856 = vmatprep.subr.mxu0 0.0
    %2857 = vmatpush1.xpose.msra.mxu0 0.0
    %2858 = vmatprep.subr.mxu0 0.0
    %2859 = vmatpush1.xpose.msra.mxu0 %v2828
    %2860 = vmatprep.subr.mxu0 0.0
    %2861 = vmatpush1.xpose.msra.mxu0 %v2826
    %2862 = vmatprep.subr.mxu0 0.0
    %2863 = vmatpush2.xpose.msra.mxu0 0.0
    %2864 = vmatprep.subr.mxu0 0.0
    %2865 = vmatpush2.xpose.msra.mxu0 0.0
    %2866 = vmatprep.subr.mxu0 0.0
    %2867 = vmatpush2.xpose.msra.mxu0 0.0
    %2868 = vmatprep.subr.mxu0 0.0
    %2869 = vmatpush2.xpose.msra.mxu0 0.0
    %2870 = vmatprep.subr.mxu0 0.0
    %2871 = vmatpush2.xpose.msra.mxu0 0.0
    %2872 = vmatprep.subr.mxu0 0.0
    %2873 = vmatpush2.xpose.msra.mxu0 0.0
    %2874 = vmatprep.subr.mxu0 0.0
    %2875 = vmatpush2.xpose.msra.mxu0 0.0
    %2876 = vmatprep.subr.mxu0 0.0
    %2877 = vmatpush2.xpose.msra.mxu0 0.0
    %2878 = vmatprep.subr.mxu0 0.0
    %2879 = vmatpush2.xpose.msra.mxu0 0.0
    %2880 = vmatprep.subr.mxu0 0.0
    %2881 = vmatpush2.xpose.msra.mxu0 0.0
    %2882 = vmatprep.subr.mxu0 0.0
    %2883 = vmatpush2.xpose.msra.mxu0 0.0
    %2884 = vmatprep.subr.mxu0 0.0
    %2885 = vmatpush2.xpose.msra.mxu0 0.0
    %2886 = vmatprep.subr.mxu0 0.0
    %2887 = vmatpush2.xpose.msra.mxu0 0.0
    %2888 = vmatprep.subr.mxu0 0.0
    %2889 = vmatpush2.xpose.msra.mxu0 0.0
    %2890 = vmatprep.subr.mxu0 0.0
    %2891 = vmatpush2.xpose.msra.mxu0 0.0
    %2892 = vmatprep.subr.mxu0 0.0
    %2893 = vmatpush2.xpose.msra.mxu0 0.0
    %2894 = vmatprep.mubr.f32.mxu0 0.0
    %2895 = vmatmul.mubr.f32.gmra.mxu0 %v2822
    %v2896 = vpop.f32.mrf.mxu0
    %v2897 = vadd.f32 %v1403, %v2896
    %v2898 = vpop.f32.mrf.mxu0
    %2899 = vmatprep.mubr.f32.mxu0 0.0
    %2900 = vmatmul.mubr.f32.gmra.mxu0 %v2824
    %v2901 = vpop.f32.mrf.mxu0
    %v2902 = vadd.f32 %v1404, %v2901
    %v2903 = vpop.f32.mrf.mxu0
    %2904 = vdwg.mxu0
    %v2905 = vsel %vm922, %v2897, -inf
    %2906 = vmax.xlane.f32.xlu0 %v2905
    %v2907 = vpop.xlane.xlu0 %2906
    %v2908 = vsel %vm922, %v2902, -inf
    %2909 = vmax.xlane.f32.xlu0 %v2908
    %v2910 = vpop.xlane.xlu0 %2909
    %v2911 = vsub.f32 %v2897, %v2907
    %v2912 = vsub.f32 %v2902, %v2910
    %v2913 = vmul.f32 %v2911, 1.442695
    %v2914 = vpow.pop %v2913
    %v2915 = vmul.f32 %v2912, 1.442695
    %v2916 = vpow.pop %v2915
    %v2917 = vsel %vm922, %v2914, 0.0
    %2918 = vadd.xlane.f32.xlu0 %v2917
    %v2919 = vpop.xlane.xlu0 %2918
    %v2920 = vsel %vm922, %v2916, 0.0
    %2921 = vadd.xlane.f32.xlu0 %v2920
    %v2922 = vpop.xlane.xlu0 %2921
    %v2923 = vrcp.pop %v2919
    %v2924 = vrcp.pop %v2922
    %v2925 = vmul.f32 %v2914, %v2923
    %v2926 = vmul.f32 %v2916, %v2924
    %2927 = vrot.lane.b32.xlu0 %v2802, 112
    %v2928 = vpop.permute.xlu0 %2927
    %2929 = vrot.lane.b32.xlu0 %v2805, 112
    %v2930 = vpop.permute.xlu0 %2929
    %v2934 = vsel %vm922, %v2925, 0
    %v2937 = vsel %vm922, %v2926, 0
    %2939 = vmatprep.subr.mxu0 0.0
    %2940 = vmatpush1.msra.mxu0 0.0
    %2941 = vmatprep.subr.mxu0 0.0
    %2942 = vmatpush1.msra.mxu0 0.0
    %2943 = vmatprep.subr.mxu0 0.0
    %2944 = vmatpush1.msra.mxu0 0.0
    %2945 = vmatprep.subr.mxu0 0.0
    %2946 = vmatpush1.msra.mxu0 0.0
    %2947 = vmatprep.subr.mxu0 0.0
    %2948 = vmatpush1.msra.mxu0 0.0
    %2949 = vmatprep.subr.mxu0 0.0
    %2950 = vmatpush1.msra.mxu0 0.0
    %2951 = vmatprep.subr.mxu0 0.0
    %2952 = vmatpush1.msra.mxu0 0.0
    %2953 = vmatprep.subr.mxu0 0.0
    %2954 = vmatpush1.msra.mxu0 0.0
    %2955 = vmatprep.subr.mxu0 0.0
    %2956 = vmatpush1.msra.mxu0 0.0
    %2957 = vmatprep.subr.mxu0 0.0
    %2958 = vmatpush1.msra.mxu0 0.0
    %2959 = vmatprep.subr.mxu0 0.0
    %2960 = vmatpush1.msra.mxu0 0.0
    %2961 = vmatprep.subr.mxu0 0.0
    %2962 = vmatpush1.msra.mxu0 0.0
    %2963 = vmatprep.subr.mxu0 0.0
    %2964 = vmatpush1.msra.mxu0 0.0
    %2965 = vmatprep.subr.mxu0 0.0
    %2966 = vmatpush1.msra.mxu0 0.0
    %2967 = vmatprep.subr.mxu0 0.0
    %2968 = vmatpush1.msra.mxu0 %v2930
    %2969 = vmatprep.subr.mxu0 0.0
    %2970 = vmatpush1.msra.mxu0 %v2928
    %2971 = vmatprep.subr.mxu0 0.0
    %2972 = vmatpush2.msra.mxu0 0.0
    %2973 = vmatprep.subr.mxu0 0.0
    %2974 = vmatpush2.msra.mxu0 0.0
    %2975 = vmatprep.subr.mxu0 0.0
    %2976 = vmatpush2.msra.mxu0 0.0
    %2977 = vmatprep.subr.mxu0 0.0
    %2978 = vmatpush2.msra.mxu0 0.0
    %2979 = vmatprep.subr.mxu0 0.0
    %2980 = vmatpush2.msra.mxu0 0.0
    %2981 = vmatprep.subr.mxu0 0.0
    %2982 = vmatpush2.msra.mxu0 0.0
    %2983 = vmatprep.subr.mxu0 0.0
    %2984 = vmatpush2.msra.mxu0 0.0
    %2985 = vmatprep.subr.mxu0 0.0
    %2986 = vmatpush2.msra.mxu0 0.0
    %2987 = vmatprep.subr.mxu0 0.0
    %2988 = vmatpush2.msra.mxu0 0.0
    %2989 = vmatprep.subr.mxu0 0.0
    %2990 = vmatpush2.msra.mxu0 0.0
    %2991 = vmatprep.subr.mxu0 0.0
    %2992 = vmatpush2.msra.mxu0 0.0
    %2993 = vmatprep.subr.mxu0 0.0
    %2994 = vmatpush2.msra.mxu0 0.0
    %2995 = vmatprep.subr.mxu0 0.0
    %2996 = vmatpush2.msra.mxu0 0.0
    %2997 = vmatprep.subr.mxu0 0.0
    %2998 = vmatpush2.msra.mxu0 0.0
    %2999 = vmatprep.subr.mxu0 0.0
    %3000 = vmatpush2.msra.mxu0 0.0
    %3001 = vmatprep.subr.mxu0 0.0
    %3002 = vmatpush2.msra.mxu0 0.0
    %3003 = vmatprep.mubr.f32.mxu0 0.0
    %3004 = vmatmul.mubr.f32.gmra.mxu0 %v2934
    %v3005 = vpop.f32.mrf.mxu0
    %v3006 = vadd.f32 0.0, %v3005
    %v3007 = vpop.f32.mrf.mxu0
    %3008 = vmatprep.mubr.f32.mxu0 0.0
    %3009 = vmatmul.mubr.f32.gmra.mxu0 %v2937
    %v3010 = vpop.f32.mrf.mxu0
    %v3011 = vadd.f32 0.0, %v3010
    %v3012 = vpop.f32.mrf.mxu0
    %3013 = vdwg.mxu0
    %3014 = vrot.lane.b32.xlu0 %v2802, 124
    %v3015 = vpop.permute.xlu0 %3014
    %3016 = vrot.lane.b32.xlu0 %v2805, 124
    %v3017 = vpop.permute.xlu0 %3016
    %3018 = vrot.lane.b32.xlu0 %v2802, 116
    %v3019 = vpop.permute.xlu0 %3018
    %3020 = vrot.lane.b32.xlu0 %v2805, 116
    %v3021 = vpop.permute.xlu0 %3020
    %v3022 = vsel %vm1520, %v3015, 0
    %v3024 = vsel %vm1520, %v3017, 0
    %v3026 = vsel %vm1520, %v3019, 0
    %v3028 = vsel %vm1520, %v3021, 0
    %3030 = vmatprep.subr.mxu0 0.0
    %3031 = vmatpush1.xpose.msra.mxu0 0.0
    %3032 = vmatprep.subr.mxu0 0.0
    %3033 = vmatpush1.xpose.msra.mxu0 0.0
    %3034 = vmatprep.subr.mxu0 0.0
    %3035 = vmatpush1.xpose.msra.mxu0 0.0
    %3036 = vmatprep.subr.mxu0 0.0
    %3037 = vmatpush1.xpose.msra.mxu0 0.0
    %3038 = vmatprep.subr.mxu0 0.0
    %3039 = vmatpush1.xpose.msra.mxu0 0.0
    %3040 = vmatprep.subr.mxu0 0.0
    %3041 = vmatpush1.xpose.msra.mxu0 0.0
    %3042 = vmatprep.subr.mxu0 0.0
    %3043 = vmatpush1.xpose.msra.mxu0 0.0
    %3044 = vmatprep.subr.mxu0 0.0
    %3045 = vmatpush1.xpose.msra.mxu0 0.0
    %3046 = vmatprep.subr.mxu0 0.0
    %3047 = vmatpush1.xpose.msra.mxu0 0.0
    %3048 = vmatprep.subr.mxu0 0.0
    %3049 = vmatpush1.xpose.msra.mxu0 0.0
    %3050 = vmatprep.subr.mxu0 0.0
    %3051 = vmatpush1.xpose.msra.mxu0 0.0
    %3052 = vmatprep.subr.mxu0 0.0
    %3053 = vmatpush1.xpose.msra.mxu0 0.0
    %3054 = vmatprep.subr.mxu0 0.0
    %3055 = vmatpush1.xpose.msra.mxu0 0.0
    %3056 = vmatprep.subr.mxu0 0.0
    %3057 = vmatpush1.xpose.msra.mxu0 0.0
    %3058 = vmatprep.subr.mxu0 0.0
    %3059 = vmatpush1.xpose.msra.mxu0 %v3028
    %3060 = vmatprep.subr.mxu0 0.0
    %3061 = vmatpush1.xpose.msra.mxu0 %v3026
    %3062 = vmatprep.subr.mxu0 0.0
    %3063 = vmatpush2.xpose.msra.mxu0 0.0
    %3064 = vmatprep.subr.mxu0 0.0
    %3065 = vmatpush2.xpose.msra.mxu0 0.0
    %3066 = vmatprep.subr.mxu0 0.0
    %3067 = vmatpush2.xpose.msra.mxu0 0.0
    %3068 = vmatprep.subr.mxu0 0.0
    %3069 = vmatpush2.xpose.msra.mxu0 0.0
    %3070 = vmatprep.subr.mxu0 0.0
    %3071 = vmatpush2.xpose.msra.mxu0 0.0
    %3072 = vmatprep.subr.mxu0 0.0
    %3073 = vmatpush2.xpose.msra.mxu0 0.0
    %3074 = vmatprep.subr.mxu0 0.0
    %3075 = vmatpush2.xpose.msra.mxu0 0.0
    %3076 = vmatprep.subr.mxu0 0.0
    %3077 = vmatpush2.xpose.msra.mxu0 0.0
    %3078 = vmatprep.subr.mxu0 0.0
    %3079 = vmatpush2.xpose.msra.mxu0 0.0
    %3080 = vmatprep.subr.mxu0 0.0
    %3081 = vmatpush2.xpose.msra.mxu0 0.0
    %3082 = vmatprep.subr.mxu0 0.0
    %3083 = vmatpush2.xpose.msra.mxu0 0.0
    %3084 = vmatprep.subr.mxu0 0.0
    %3085 = vmatpush2.xpose.msra.mxu0 0.0
    %3086 = vmatprep.subr.mxu0 0.0
    %3087 = vmatpush2.xpose.msra.mxu0 0.0
    %3088 = vmatprep.subr.mxu0 0.0
    %3089 = vmatpush2.xpose.msra.mxu0 0.0
    %3090 = vmatprep.subr.mxu0 0.0
    %3091 = vmatpush2.xpose.msra.mxu0 0.0
    %3092 = vmatprep.subr.mxu0 0.0
    %3093 = vmatpush2.xpose.msra.mxu0 0.0
    %3094 = vmatprep.mubr.f32.mxu0 0.0
    %3095 = vmatmul.mubr.f32.gmra.mxu0 %v3022
    %v3096 = vpop.f32.mrf.mxu0
    %v3097 = vadd.f32 %v1403, %v3096
    %v3098 = vpop.f32.mrf.mxu0
    %3099 = vmatprep.mubr.f32.mxu0 0.0
    %3100 = vmatmul.mubr.f32.gmra.mxu0 %v3024
    %v3101 = vpop.f32.mrf.mxu0
    %v3102 = vadd.f32 %v1404, %v3101
    %v3103 = vpop.f32.mrf.mxu0
    %3104 = vdwg.mxu0
    %v3105 = vsel %vm922, %v3097, -inf
    %3106 = vmax.xlane.f32.xlu0 %v3105
    %v3107 = vpop.xlane.xlu0 %3106
    %v3108 = vsel %vm922, %v3102, -inf
    %3109 = vmax.xlane.f32.xlu0 %v3108
    %v3110 = vpop.xlane.xlu0 %3109
    %v3111 = vsub.f32 %v3097, %v3107
    %v3112 = vsub.f32 %v3102, %v3110
    %v3113 = vmul.f32 %v3111, 1.442695
    %v3114 = vpow.pop %v3113
    %v3115 = vmul.f32 %v3112, 1.442695
    %v3116 = vpow.pop %v3115
    %v3117 = vsel %vm922, %v3114, 0.0
    %3118 = vadd.xlane.f32.xlu0 %v3117
    %v3119 = vpop.xlane.xlu0 %3118
    %v3120 = vsel %vm922, %v3116, 0.0
    %3121 = vadd.xlane.f32.xlu0 %v3120
    %v3122 = vpop.xlane.xlu0 %3121
    %v3123 = vrcp.pop %v3119
    %v3124 = vrcp.pop %v3122
    %v3125 = vmul.f32 %v3114, %v3123
    %v3126 = vmul.f32 %v3116, %v3124
    %3127 = vrot.lane.b32.xlu0 %v2802, 108
    %v3128 = vpop.permute.xlu0 %3127
    %3129 = vrot.lane.b32.xlu0 %v2805, 108
    %v3130 = vpop.permute.xlu0 %3129
    %v3134 = vsel %vm922, %v3125, 0
    %v3137 = vsel %vm922, %v3126, 0
    %3139 = vmatprep.subr.mxu0 0.0
    %3140 = vmatpush1.msra.mxu0 0.0
    %3141 = vmatprep.subr.mxu0 0.0
    %3142 = vmatpush1.msra.mxu0 0.0
    %3143 = vmatprep.subr.mxu0 0.0
    %3144 = vmatpush1.msra.mxu0 0.0
    %3145 = vmatprep.subr.mxu0 0.0
    %3146 = vmatpush1.msra.mxu0 0.0
    %3147 = vmatprep.subr.mxu0 0.0
    %3148 = vmatpush1.msra.mxu0 0.0
    %3149 = vmatprep.subr.mxu0 0.0
    %3150 = vmatpush1.msra.mxu0 0.0
    %3151 = vmatprep.subr.mxu0 0.0
    %3152 = vmatpush1.msra.mxu0 0.0
    %3153 = vmatprep.subr.mxu0 0.0
    %3154 = vmatpush1.msra.mxu0 0.0
    %3155 = vmatprep.subr.mxu0 0.0
    %3156 = vmatpush1.msra.mxu0 0.0
    %3157 = vmatprep.subr.mxu0 0.0
    %3158 = vmatpush1.msra.mxu0 0.0
    %3159 = vmatprep.subr.mxu0 0.0
    %3160 = vmatpush1.msra.mxu0 0.0
    %3161 = vmatprep.subr.mxu0 0.0
    %3162 = vmatpush1.msra.mxu0 0.0
    %3163 = vmatprep.subr.mxu0 0.0
    %3164 = vmatpush1.msra.mxu0 0.0
    %3165 = vmatprep.subr.mxu0 0.0
    %3166 = vmatpush1.msra.mxu0 0.0
    %3167 = vmatprep.subr.mxu0 0.0
    %3168 = vmatpush1.msra.mxu0 %v3130
    %3169 = vmatprep.subr.mxu0 0.0
    %3170 = vmatpush1.msra.mxu0 %v3128
    %3171 = vmatprep.subr.mxu0 0.0
    %3172 = vmatpush2.msra.mxu0 0.0
    %3173 = vmatprep.subr.mxu0 0.0
    %3174 = vmatpush2.msra.mxu0 0.0
    %3175 = vmatprep.subr.mxu0 0.0
    %3176 = vmatpush2.msra.mxu0 0.0
    %3177 = vmatprep.subr.mxu0 0.0
    %3178 = vmatpush2.msra.mxu0 0.0
    %3179 = vmatprep.subr.mxu0 0.0
    %3180 = vmatpush2.msra.mxu0 0.0
    %3181 = vmatprep.subr.mxu0 0.0
    %3182 = vmatpush2.msra.mxu0 0.0
    %3183 = vmatprep.subr.mxu0 0.0
    %3184 = vmatpush2.msra.mxu0 0.0
    %3185 = vmatprep.subr.mxu0 0.0
    %3186 = vmatpush2.msra.mxu0 0.0
    %3187 = vmatprep.subr.mxu0 0.0
    %3188 = vmatpush2.msra.mxu0 0.0
    %3189 = vmatprep.subr.mxu0 0.0
    %3190 = vmatpush2.msra.mxu0 0.0
    %3191 = vmatprep.subr.mxu0 0.0
    %3192 = vmatpush2.msra.mxu0 0.0
    %3193 = vmatprep.subr.mxu0 0.0
    %3194 = vmatpush2.msra.mxu0 0.0
    %3195 = vmatprep.subr.mxu0 0.0
    %3196 = vmatpush2.msra.mxu0 0.0
    %3197 = vmatprep.subr.mxu0 0.0
    %3198 = vmatpush2.msra.mxu0 0.0
    %3199 = vmatprep.subr.mxu0 0.0
    %3200 = vmatpush2.msra.mxu0 0.0
    %3201 = vmatprep.subr.mxu0 0.0
    %3202 = vmatpush2.msra.mxu0 0.0
    %3203 = vmatprep.mubr.f32.mxu0 0.0
    %3204 = vmatmul.mubr.f32.gmra.mxu0 %v3134
    %v3205 = vpop.f32.mrf.mxu0
    %v3206 = vadd.f32 0.0, %v3205
    %v3207 = vpop.f32.mrf.mxu0
    %3208 = vmatprep.mubr.f32.mxu0 0.0
    %3209 = vmatmul.mubr.f32.gmra.mxu0 %v3137
    %v3210 = vpop.f32.mrf.mxu0
    %v3211 = vadd.f32 0.0, %v3210
    %v3212 = vpop.f32.mrf.mxu0
    %3213 = vdwg.mxu0
    %3216 = vrot.lane.b32.xlu0 %v3206, 4
    %v3217 = vpop.permute.xlu0 %3216
    %3218 = vrot.lane.b32.xlu0 %v3211, 4
    %v3219 = vpop.permute.xlu0 %3218
    %v3222 = vsel %vm1520, %v3006, %v3217
    %v3223 = vsel %vm1520, %v3011, %v3219
    %v3224 = vpack.c.bf16 %v3223, %v3222
    %s3225 = scalar_lea.vmem %s15, 4
    %v3226 = vld [vmem:[%s3225] sm:$0xf]
    %v3228 = vsel %vm165, %v3224, 0
    %v3231 = vsel %vm169, %v3226, 0
    %3233 = vmatprep.subr.bf16.mxu0 0
    %3234 = vmatpush1.bf16.msra.mxu0 0
    %3235 = vmatprep.subr.bf16.mxu0 0
    %3236 = vmatpush1.bf16.msra.mxu0 0
    %3237 = vmatprep.subr.bf16.mxu0 0
    %3238 = vmatpush1.bf16.msra.mxu0 0
    %3239 = vmatprep.subr.bf16.mxu0 0
    %3240 = vmatpush1.bf16.msra.mxu0 0
    %3241 = vmatprep.subr.bf16.mxu0 0
    %3242 = vmatpush1.bf16.msra.mxu0 0
    %3243 = vmatprep.subr.bf16.mxu0 0
    %3244 = vmatpush1.bf16.msra.mxu0 0
    %3245 = vmatprep.subr.bf16.mxu0 0
    %3246 = vmatpush1.bf16.msra.mxu0 0
    %3247 = vmatprep.subr.bf16.mxu0 0
    %3248 = vmatpush1.bf16.msra.mxu0 %v3231
    %3249 = vmatprep.subr.bf16.mxu0 0
    %3250 = vmatpush2.bf16.msra.mxu0 0
    %3251 = vmatprep.subr.bf16.mxu0 0
    %3252 = vmatpush2.bf16.msra.mxu0 0
    %3253 = vmatprep.subr.bf16.mxu0 0
    %3254 = vmatpush2.bf16.msra.mxu0 0
    %3255 = vmatprep.subr.bf16.mxu0 0
    %3256 = vmatpush2.bf16.msra.mxu0 0
    %3257 = vmatprep.subr.bf16.mxu0 0
    %3258 = vmatpush2.bf16.msra.mxu0 0
    %3259 = vmatprep.subr.bf16.mxu0 0
    %3260 = vmatpush2.bf16.msra.mxu0 0
    %3261 = vmatprep.subr.bf16.mxu0 0
    %3262 = vmatpush2.bf16.msra.mxu0 0
    %3263 = vmatprep.subr.bf16.mxu0 0
    %3264 = vmatpush2.bf16.msra.mxu0 0
    %3265 = vmatprep.mubr.bf16.mxu0 0
    %3266 = vmatmul.mubr.bf16.gmra.mxu0 %v3228
    %v3267 = vpop.f32.mrf.mxu0
    %v3268 = vadd.f32 0.0, %v3267
    %v3269 = vpop.f32.mrf.mxu0
    %v3270 = vpop.f32.mrf.mxu0
    %v3271 = vadd.f32 0.0, %v3270
    %v3272 = vpop.f32.mrf.mxu0
    %3273 = vdwg.mxu0
    %3276 = vrot.lane.b32.xlu0 %v2810, 120
    %v3277 = vpop.permute.xlu0 %3276
    %3278 = vrot.lane.b32.xlu0 %v2813, 120
    %v3279 = vpop.permute.xlu0 %3278
    %v3280 = vsel %vm1520, %v2810, 0
    %v3282 = vsel %vm1520, %v2813, 0
    %v3284 = vsel %vm1520, %v3277, 0
    %v3286 = vsel %vm1520, %v3279, 0
    %3288 = vmatprep.subr.mxu0 0.0
    %3289 = vmatpush1.xpose.msra.mxu0 0.0
    %3290 = vmatprep.subr.mxu0 0.0
    %3291 = vmatpush1.xpose.msra.mxu0 0.0
    %3292 = vmatprep.subr.mxu0 0.0
    %3293 = vmatpush1.xpose.msra.mxu0 0.0
    %3294 = vmatprep.subr.mxu0 0.0
    %3295 = vmatpush1.xpose.msra.mxu0 0.0
    %3296 = vmatprep.subr.mxu0 0.0
    %3297 = vmatpush1.xpose.msra.mxu0 0.0
    %3298 = vmatprep.subr.mxu0 0.0
    %3299 = vmatpush1.xpose.msra.mxu0 0.0
    %3300 = vmatprep.subr.mxu0 0.0
    %3301 = vmatpush1.xpose.msra.mxu0 0.0
    %3302 = vmatprep.subr.mxu0 0.0
    %3303 = vmatpush1.xpose.msra.mxu0 0.0
    %3304 = vmatprep.subr.mxu0 0.0
    %3305 = vmatpush1.xpose.msra.mxu0 0.0
    %3306 = vmatprep.subr.mxu0 0.0
    %3307 = vmatpush1.xpose.msra.mxu0 0.0
    %3308 = vmatprep.subr.mxu0 0.0
    %3309 = vmatpush1.xpose.msra.mxu0 0.0
    %3310 = vmatprep.subr.mxu0 0.0
    %3311 = vmatpush1.xpose.msra.mxu0 0.0
    %3312 = vmatprep.subr.mxu0 0.0
    %3313 = vmatpush1.xpose.msra.mxu0 0.0
    %3314 = vmatprep.subr.mxu0 0.0
    %3315 = vmatpush1.xpose.msra.mxu0 0.0
    %3316 = vmatprep.subr.mxu0 0.0
    %3317 = vmatpush1.xpose.msra.mxu0 %v3286
    %3318 = vmatprep.subr.mxu0 0.0
    %3319 = vmatpush1.xpose.msra.mxu0 %v3284
    %3320 = vmatprep.subr.mxu0 0.0
    %3321 = vmatpush2.xpose.msra.mxu0 0.0
    %3322 = vmatprep.subr.mxu0 0.0
    %3323 = vmatpush2.xpose.msra.mxu0 0.0
    %3324 = vmatprep.subr.mxu0 0.0
    %3325 = vmatpush2.xpose.msra.mxu0 0.0
    %3326 = vmatprep.subr.mxu0 0.0
    %3327 = vmatpush2.xpose.msra.mxu0 0.0
    %3328 = vmatprep.subr.mxu0 0.0
    %3329 = vmatpush2.xpose.msra.mxu0 0.0
    %3330 = vmatprep.subr.mxu0 0.0
    %3331 = vmatpush2.xpose.msra.mxu0 0.0
    %3332 = vmatprep.subr.mxu0 0.0
    %3333 = vmatpush2.xpose.msra.mxu0 0.0
    %3334 = vmatprep.subr.mxu0 0.0
    %3335 = vmatpush2.xpose.msra.mxu0 0.0
    %3336 = vmatprep.subr.mxu0 0.0
    %3337 = vmatpush2.xpose.msra.mxu0 0.0
    %3338 = vmatprep.subr.mxu0 0.0
    %3339 = vmatpush2.xpose.msra.mxu0 0.0
    %3340 = vmatprep.subr.mxu0 0.0
    %3341 = vmatpush2.xpose.msra.mxu0 0.0
    %3342 = vmatprep.subr.mxu0 0.0
    %3343 = vmatpush2.xpose.msra.mxu0 0.0
    %3344 = vmatprep.subr.mxu0 0.0
    %3345 = vmatpush2.xpose.msra.mxu0 0.0
    %3346 = vmatprep.subr.mxu0 0.0
    %3347 = vmatpush2.xpose.msra.mxu0 0.0
    %3348 = vmatprep.subr.mxu0 0.0
    %3349 = vmatpush2.xpose.msra.mxu0 0.0
    %3350 = vmatprep.subr.mxu0 0.0
    %3351 = vmatpush2.xpose.msra.mxu0 0.0
    %3352 = vmatprep.mubr.f32.mxu0 0.0
    %3353 = vmatmul.mubr.f32.gmra.mxu0 %v3280
    %v3354 = vpop.f32.mrf.mxu0
    %v3355 = vadd.f32 %v1444, %v3354
    %v3356 = vpop.f32.mrf.mxu0
    %3357 = vmatprep.mubr.f32.mxu0 0.0
    %3358 = vmatmul.mubr.f32.gmra.mxu0 %v3282
    %v3359 = vpop.f32.mrf.mxu0
    %v3360 = vadd.f32 %v1445, %v3359
    %v3361 = vpop.f32.mrf.mxu0
    %3362 = vdwg.mxu0
    %v3363 = vsel %vm922, %v3355, -inf
    %3364 = vmax.xlane.f32.xlu0 %v3363
    %v3365 = vpop.xlane.xlu0 %3364
    %v3366 = vsel %vm922, %v3360, -inf
    %3367 = vmax.xlane.f32.xlu0 %v3366
    %v3368 = vpop.xlane.xlu0 %3367
    %v3369 = vsub.f32 %v3355, %v3365
    %v3370 = vsub.f32 %v3360, %v3368
    %v3371 = vmul.f32 %v3369, 1.442695
    %v3372 = vpow.pop %v3371
    %v3373 = vmul.f32 %v3370, 1.442695
    %v3374 = vpow.pop %v3373
    %v3375 = vsel %vm922, %v3372, 0.0
    %3376 = vadd.xlane.f32.xlu0 %v3375
    %v3377 = vpop.xlane.xlu0 %3376
    %v3378 = vsel %vm922, %v3374, 0.0
    %3379 = vadd.xlane.f32.xlu0 %v3378
    %v3380 = vpop.xlane.xlu0 %3379
    %v3381 = vrcp.pop %v3377
    %v3382 = vrcp.pop %v3380
    %v3383 = vmul.f32 %v3372, %v3381
    %v3384 = vmul.f32 %v3374, %v3382
    %3385 = vrot.lane.b32.xlu0 %v2810, 112
    %v3386 = vpop.permute.xlu0 %3385
    %3387 = vrot.lane.b32.xlu0 %v2813, 112
    %v3388 = vpop.permute.xlu0 %3387
    %v3392 = vsel %vm922, %v3383, 0
    %v3395 = vsel %vm922, %v3384, 0
    %3397 = vmatprep.subr.mxu0 0.0
    %3398 = vmatpush1.msra.mxu0 0.0
    %3399 = vmatprep.subr.mxu0 0.0
    %3400 = vmatpush1.msra.mxu0 0.0
    %3401 = vmatprep.subr.mxu0 0.0
    %3402 = vmatpush1.msra.mxu0 0.0
    %3403 = vmatprep.subr.mxu0 0.0
    %3404 = vmatpush1.msra.mxu0 0.0
    %3405 = vmatprep.subr.mxu0 0.0
    %3406 = vmatpush1.msra.mxu0 0.0
    %3407 = vmatprep.subr.mxu0 0.0
    %3408 = vmatpush1.msra.mxu0 0.0
    %3409 = vmatprep.subr.mxu0 0.0
    %3410 = vmatpush1.msra.mxu0 0.0
    %3411 = vmatprep.subr.mxu0 0.0
    %3412 = vmatpush1.msra.mxu0 0.0
    %3413 = vmatprep.subr.mxu0 0.0
    %3414 = vmatpush1.msra.mxu0 0.0
    %3415 = vmatprep.subr.mxu0 0.0
    %3416 = vmatpush1.msra.mxu0 0.0
    %3417 = vmatprep.subr.mxu0 0.0
    %3418 = vmatpush1.msra.mxu0 0.0
    %3419 = vmatprep.subr.mxu0 0.0
    %3420 = vmatpush1.msra.mxu0 0.0
    %3421 = vmatprep.subr.mxu0 0.0
    %3422 = vmatpush1.msra.mxu0 0.0
    %3423 = vmatprep.subr.mxu0 0.0
    %3424 = vmatpush1.msra.mxu0 0.0
    %3425 = vmatprep.subr.mxu0 0.0
    %3426 = vmatpush1.msra.mxu0 %v3388
    %3427 = vmatprep.subr.mxu0 0.0
    %3428 = vmatpush1.msra.mxu0 %v3386
    %3429 = vmatprep.subr.mxu0 0.0
    %3430 = vmatpush2.msra.mxu0 0.0
    %3431 = vmatprep.subr.mxu0 0.0
    %3432 = vmatpush2.msra.mxu0 0.0
    %3433 = vmatprep.subr.mxu0 0.0
    %3434 = vmatpush2.msra.mxu0 0.0
    %3435 = vmatprep.subr.mxu0 0.0
    %3436 = vmatpush2.msra.mxu0 0.0
    %3437 = vmatprep.subr.mxu0 0.0
    %3438 = vmatpush2.msra.mxu0 0.0
    %3439 = vmatprep.subr.mxu0 0.0
    %3440 = vmatpush2.msra.mxu0 0.0
    %3441 = vmatprep.subr.mxu0 0.0
    %3442 = vmatpush2.msra.mxu0 0.0
    %3443 = vmatprep.subr.mxu0 0.0
    %3444 = vmatpush2.msra.mxu0 0.0
    %3445 = vmatprep.subr.mxu0 0.0
    %3446 = vmatpush2.msra.mxu0 0.0
    %3447 = vmatprep.subr.mxu0 0.0
    %3448 = vmatpush2.msra.mxu0 0.0
    %3449 = vmatprep.subr.mxu0 0.0
    %3450 = vmatpush2.msra.mxu0 0.0
    %3451 = vmatprep.subr.mxu0 0.0
    %3452 = vmatpush2.msra.mxu0 0.0
    %3453 = vmatprep.subr.mxu0 0.0
    %3454 = vmatpush2.msra.mxu0 0.0
    %3455 = vmatprep.subr.mxu0 0.0
    %3456 = vmatpush2.msra.mxu0 0.0
    %3457 = vmatprep.subr.mxu0 0.0
    %3458 = vmatpush2.msra.mxu0 0.0
    %3459 = vmatprep.subr.mxu0 0.0
    %3460 = vmatpush2.msra.mxu0 0.0
    %3461 = vmatprep.mubr.f32.mxu0 0.0
    %3462 = vmatmul.mubr.f32.gmra.mxu0 %v3392
    %v3463 = vpop.f32.mrf.mxu0
    %v3464 = vadd.f32 0.0, %v3463
    %v3465 = vpop.f32.mrf.mxu0
    %3466 = vmatprep.mubr.f32.mxu0 0.0
    %3467 = vmatmul.mubr.f32.gmra.mxu0 %v3395
    %v3468 = vpop.f32.mrf.mxu0
    %v3469 = vadd.f32 0.0, %v3468
    %v3470 = vpop.f32.mrf.mxu0
    %3471 = vdwg.mxu0
    %3472 = vrot.lane.b32.xlu0 %v2810, 124
    %v3473 = vpop.permute.xlu0 %3472
    %3474 = vrot.lane.b32.xlu0 %v2813, 124
    %v3475 = vpop.permute.xlu0 %3474
    %3476 = vrot.lane.b32.xlu0 %v2810, 116
    %v3477 = vpop.permute.xlu0 %3476
    %3478 = vrot.lane.b32.xlu0 %v2813, 116
    %v3479 = vpop.permute.xlu0 %3478
    %v3480 = vsel %vm1520, %v3473, 0
    %v3482 = vsel %vm1520, %v3475, 0
    %v3484 = vsel %vm1520, %v3477, 0
    %v3486 = vsel %vm1520, %v3479, 0
    %3488 = vmatprep.subr.mxu0 0.0
    %3489 = vmatpush1.xpose.msra.mxu0 0.0
    %3490 = vmatprep.subr.mxu0 0.0
    %3491 = vmatpush1.xpose.msra.mxu0 0.0
    %3492 = vmatprep.subr.mxu0 0.0
    %3493 = vmatpush1.xpose.msra.mxu0 0.0
    %3494 = vmatprep.subr.mxu0 0.0
    %3495 = vmatpush1.xpose.msra.mxu0 0.0
    %3496 = vmatprep.subr.mxu0 0.0
    %3497 = vmatpush1.xpose.msra.mxu0 0.0
    %3498 = vmatprep.subr.mxu0 0.0
    %3499 = vmatpush1.xpose.msra.mxu0 0.0
    %3500 = vmatprep.subr.mxu0 0.0
    %3501 = vmatpush1.xpose.msra.mxu0 0.0
    %3502 = vmatprep.subr.mxu0 0.0
    %3503 = vmatpush1.xpose.msra.mxu0 0.0
    %3504 = vmatprep.subr.mxu0 0.0
    %3505 = vmatpush1.xpose.msra.mxu0 0.0
    %3506 = vmatprep.subr.mxu0 0.0
    %3507 = vmatpush1.xpose.msra.mxu0 0.0
    %3508 = vmatprep.subr.mxu0 0.0
    %3509 = vmatpush1.xpose.msra.mxu0 0.0
    %3510 = vmatprep.subr.mxu0 0.0
    %3511 = vmatpush1.xpose.msra.mxu0 0.0
    %3512 = vmatprep.subr.mxu0 0.0
    %3513 = vmatpush1.xpose.msra.mxu0 0.0
    %3514 = vmatprep.subr.mxu0 0.0
    %3515 = vmatpush1.xpose.msra.mxu0 0.0
    %3516 = vmatprep.subr.mxu0 0.0
    %3517 = vmatpush1.xpose.msra.mxu0 %v3486
    %3518 = vmatprep.subr.mxu0 0.0
    %3519 = vmatpush1.xpose.msra.mxu0 %v3484
    %3520 = vmatprep.subr.mxu0 0.0
    %3521 = vmatpush2.xpose.msra.mxu0 0.0
    %3522 = vmatprep.subr.mxu0 0.0
    %3523 = vmatpush2.xpose.msra.mxu0 0.0
    %3524 = vmatprep.subr.mxu0 0.0
    %3525 = vmatpush2.xpose.msra.mxu0 0.0
    %3526 = vmatprep.subr.mxu0 0.0
    %3527 = vmatpush2.xpose.msra.mxu0 0.0
    %3528 = vmatprep.subr.mxu0 0.0
    %3529 = vmatpush2.xpose.msra.mxu0 0.0
    %3530 = vmatprep.subr.mxu0 0.0
    %3531 = vmatpush2.xpose.msra.mxu0 0.0
    %3532 = vmatprep.subr.mxu0 0.0
    %3533 = vmatpush2.xpose.msra.mxu0 0.0
    %3534 = vmatprep.subr.mxu0 0.0
    %3535 = vmatpush2.xpose.msra.mxu0 0.0
    %3536 = vmatprep.subr.mxu0 0.0
    %3537 = vmatpush2.xpose.msra.mxu0 0.0
    %3538 = vmatprep.subr.mxu0 0.0
    %3539 = vmatpush2.xpose.msra.mxu0 0.0
    %3540 = vmatprep.subr.mxu0 0.0
    %3541 = vmatpush2.xpose.msra.mxu0 0.0
    %3542 = vmatprep.subr.mxu0 0.0
    %3543 = vmatpush2.xpose.msra.mxu0 0.0
    %3544 = vmatprep.subr.mxu0 0.0
    %3545 = vmatpush2.xpose.msra.mxu0 0.0
    %3546 = vmatprep.subr.mxu0 0.0
    %3547 = vmatpush2.xpose.msra.mxu0 0.0
    %3548 = vmatprep.subr.mxu0 0.0
    %3549 = vmatpush2.xpose.msra.mxu0 0.0
    %3550 = vmatprep.subr.mxu0 0.0
    %3551 = vmatpush2.xpose.msra.mxu0 0.0
    %3552 = vmatprep.mubr.f32.mxu0 0.0
    %3553 = vmatmul.mubr.f32.gmra.mxu0 %v3480
    %v3554 = vpop.f32.mrf.mxu0
    %v3555 = vadd.f32 %v1444, %v3554
    %v3556 = vpop.f32.mrf.mxu0
    %3557 = vmatprep.mubr.f32.mxu0 0.0
    %3558 = vmatmul.mubr.f32.gmra.mxu0 %v3482
    %v3559 = vpop.f32.mrf.mxu0
    %v3560 = vadd.f32 %v1445, %v3559
    %v3561 = vpop.f32.mrf.mxu0
    %3562 = vdwg.mxu0
    %v3563 = vsel %vm922, %v3555, -inf
    %3564 = vmax.xlane.f32.xlu0 %v3563
    %v3565 = vpop.xlane.xlu0 %3564
    %v3566 = vsel %vm922, %v3560, -inf
    %3567 = vmax.xlane.f32.xlu0 %v3566
    %v3568 = vpop.xlane.xlu0 %3567
    %v3569 = vsub.f32 %v3555, %v3565
    %v3570 = vsub.f32 %v3560, %v3568
    %v3571 = vmul.f32 %v3569, 1.442695
    %v3572 = vpow.pop %v3571
    %v3573 = vmul.f32 %v3570, 1.442695
    %v3574 = vpow.pop %v3573
    %v3575 = vsel %vm922, %v3572, 0.0
    %3576 = vadd.xlane.f32.xlu0 %v3575
    %v3577 = vpop.xlane.xlu0 %3576
    %v3578 = vsel %vm922, %v3574, 0.0
    %3579 = vadd.xlane.f32.xlu0 %v3578
    %v3580 = vpop.xlane.xlu0 %3579
    %v3581 = vrcp.pop %v3577
    %v3582 = vrcp.pop %v3580
    %v3583 = vmul.f32 %v3572, %v3581
    %v3584 = vmul.f32 %v3574, %v3582
    %3585 = vrot.lane.b32.xlu0 %v2810, 108
    %v3586 = vpop.permute.xlu0 %3585
    %3587 = vrot.lane.b32.xlu0 %v2813, 108
    %v3588 = vpop.permute.xlu0 %3587
    %v3592 = vsel %vm922, %v3583, 0
    %v3595 = vsel %vm922, %v3584, 0
    %3597 = vmatprep.subr.mxu0 0.0
    %3598 = vmatpush1.msra.mxu0 0.0
    %3599 = vmatprep.subr.mxu0 0.0
    %3600 = vmatpush1.msra.mxu0 0.0
    %3601 = vmatprep.subr.mxu0 0.0
    %3602 = vmatpush1.msra.mxu0 0.0
    %3603 = vmatprep.subr.mxu0 0.0
    %3604 = vmatpush1.msra.mxu0 0.0
    %3605 = vmatprep.subr.mxu0 0.0
    %3606 = vmatpush1.msra.mxu0 0.0
    %3607 = vmatprep.subr.mxu0 0.0
    %3608 = vmatpush1.msra.mxu0 0.0
    %3609 = vmatprep.subr.mxu0 0.0
    %3610 = vmatpush1.msra.mxu0 0.0
    %3611 = vmatprep.subr.mxu0 0.0
    %3612 = vmatpush1.msra.mxu0 0.0
    %3613 = vmatprep.subr.mxu0 0.0
    %3614 = vmatpush1.msra.mxu0 0.0
    %3615 = vmatprep.subr.mxu0 0.0
    %3616 = vmatpush1.msra.mxu0 0.0
    %3617 = vmatprep.subr.mxu0 0.0
    %3618 = vmatpush1.msra.mxu0 0.0
    %3619 = vmatprep.subr.mxu0 0.0
    %3620 = vmatpush1.msra.mxu0 0.0
    %3621 = vmatprep.subr.mxu0 0.0
    %3622 = vmatpush1.msra.mxu0 0.0
    %3623 = vmatprep.subr.mxu0 0.0
    %3624 = vmatpush1.msra.mxu0 0.0
    %3625 = vmatprep.subr.mxu0 0.0
    %3626 = vmatpush1.msra.mxu0 %v3588
    %3627 = vmatprep.subr.mxu0 0.0
    %3628 = vmatpush1.msra.mxu0 %v3586
    %3629 = vmatprep.subr.mxu0 0.0
    %3630 = vmatpush2.msra.mxu0 0.0
    %3631 = vmatprep.subr.mxu0 0.0
    %3632 = vmatpush2.msra.mxu0 0.0
    %3633 = vmatprep.subr.mxu0 0.0
    %3634 = vmatpush2.msra.mxu0 0.0
    %3635 = vmatprep.subr.mxu0 0.0
    %3636 = vmatpush2.msra.mxu0 0.0
    %3637 = vmatprep.subr.mxu0 0.0
    %3638 = vmatpush2.msra.mxu0 0.0
    %3639 = vmatprep.subr.mxu0 0.0
    %3640 = vmatpush2.msra.mxu0 0.0
    %3641 = vmatprep.subr.mxu0 0.0
    %3642 = vmatpush2.msra.mxu0 0.0
    %3643 = vmatprep.subr.mxu0 0.0
    %3644 = vmatpush2.msra.mxu0 0.0
    %3645 = vmatprep.subr.mxu0 0.0
    %3646 = vmatpush2.msra.mxu0 0.0
    %3647 = vmatprep.subr.mxu0 0.0
    %3648 = vmatpush2.msra.mxu0 0.0
    %3649 = vmatprep.subr.mxu0 0.0
    %3650 = vmatpush2.msra.mxu0 0.0
    %3651 = vmatprep.subr.mxu0 0.0
    %3652 = vmatpush2.msra.mxu0 0.0
    %3653 = vmatprep.subr.mxu0 0.0
    %3654 = vmatpush2.msra.mxu0 0.0
    %3655 = vmatprep.subr.mxu0 0.0
    %3656 = vmatpush2.msra.mxu0 0.0
    %3657 = vmatprep.subr.mxu0 0.0
    %3658 = vmatpush2.msra.mxu0 0.0
    %3659 = vmatprep.subr.mxu0 0.0
    %3660 = vmatpush2.msra.mxu0 0.0
    %3661 = vmatprep.mubr.f32.mxu0 0.0
    %3662 = vmatmul.mubr.f32.gmra.mxu0 %v3592
    %v3663 = vpop.f32.mrf.mxu0
    %v3664 = vadd.f32 0.0, %v3663
    %v3665 = vpop.f32.mrf.mxu0
    %3666 = vmatprep.mubr.f32.mxu0 0.0
    %3667 = vmatmul.mubr.f32.gmra.mxu0 %v3595
    %v3668 = vpop.f32.mrf.mxu0
    %v3669 = vadd.f32 0.0, %v3668
    %v3670 = vpop.f32.mrf.mxu0
    %3671 = vdwg.mxu0
    %3674 = vrot.lane.b32.xlu0 %v3664, 4
    %v3675 = vpop.permute.xlu0 %3674
    %3676 = vrot.lane.b32.xlu0 %v3669, 4
    %v3677 = vpop.permute.xlu0 %3676
    %v3680 = vsel %vm1520, %v3464, %v3675
    %v3681 = vsel %vm1520, %v3469, %v3677
    %v3682 = vpack.c.bf16 %v3681, %v3680
    %v3684 = vsel %vm165, %v3682, 0
    %3686 = vmatprep.subr.bf16.mxu0 0
    %3687 = vmatpush1.bf16.msra.mxu0 0
    %3688 = vmatprep.subr.bf16.mxu0 0
    %3689 = vmatpush1.bf16.msra.mxu0 0
    %3690 = vmatprep.subr.bf16.mxu0 0
    %3691 = vmatpush1.bf16.msra.mxu0 0
    %3692 = vmatprep.subr.bf16.mxu0 0
    %3693 = vmatpush1.bf16.msra.mxu0 0
    %3694 = vmatprep.subr.bf16.mxu0 0
    %3695 = vmatpush1.bf16.msra.mxu0 0
    %3696 = vmatprep.subr.bf16.mxu0 0
    %3697 = vmatpush1.bf16.msra.mxu0 0
    %3698 = vmatprep.subr.bf16.mxu0 0
    %3699 = vmatpush1.bf16.msra.mxu0 0
    %3700 = vmatprep.subr.bf16.mxu0 0
    %3701 = vmatpush1.bf16.msra.mxu0 %v3231
    %3702 = vmatprep.subr.bf16.mxu0 0
    %3703 = vmatpush2.bf16.msra.mxu0 0
    %3704 = vmatprep.subr.bf16.mxu0 0
    %3705 = vmatpush2.bf16.msra.mxu0 0
    %3706 = vmatprep.subr.bf16.mxu0 0
    %3707 = vmatpush2.bf16.msra.mxu0 0
    %3708 = vmatprep.subr.bf16.mxu0 0
    %3709 = vmatpush2.bf16.msra.mxu0 0
    %3710 = vmatprep.subr.bf16.mxu0 0
    %3711 = vmatpush2.bf16.msra.mxu0 0
    %3712 = vmatprep.subr.bf16.mxu0 0
    %3713 = vmatpush2.bf16.msra.mxu0 0
    %3714 = vmatprep.subr.bf16.mxu0 0
    %3715 = vmatpush2.bf16.msra.mxu0 0
    %3716 = vmatprep.subr.bf16.mxu0 0
    %3717 = vmatpush2.bf16.msra.mxu0 0
    %3718 = vmatprep.mubr.bf16.mxu0 0
    %3719 = vmatmul.mubr.bf16.gmra.mxu0 %v3684
    %v3720 = vpop.f32.mrf.mxu0
    %v3721 = vadd.f32 0.0, %v3720
    %v3722 = vpop.f32.mrf.mxu0
    %v3723 = vpop.f32.mrf.mxu0
    %v3724 = vadd.f32 0.0, %v3723
    %v3725 = vpop.f32.mrf.mxu0
    %3726 = vdwg.mxu0
    %s3727 = scalar_lea.vmem %s16, 1
    %v3728 = vld [vmem:[%s3727] sm:$0x1]
    %v3730 = vlaneseq
    %v3731 = vshrl.u32 %v3730, 7
    %v3732 = vsub.s32 0, %v3731
    %v3733 = vrot.slane %v3728, %v3732
    %v3735 = vadd.f32 %v3268, %v3733
    %v3736 = vadd.f32 %v3271, %v3733
    %v3737 = vadd.f32 %v3721, %v3733
    %v3738 = vadd.f32 %v3724, %v3733
    %v3739 = vadd.f32 %v2742, %v3735
    %v3740 = vadd.f32 %v2743, %v3736
    %v3741 = vadd.f32 %v2744, %v3737
    %v3742 = vadd.f32 %v2745, %v3738
    %s3743 = scalar_lea.vmem %s21, 1
    %v3744 = vld [vmem:[%s3743] sm:$0x1]
    %s3745 = scalar_lea.vmem %s22, 1
    %v3746 = vld [vmem:[%s3745] sm:$0x1]
    %v3747 = vsel %vm165, %v3739, 0.0
    %3748 = vadd.xlane.f32.xlu0 %v3747
    %v3749 = vpop.xlane.xlu0 %3748
    %v3750 = vsel %vm165, %v3740, 0.0
    %3751 = vadd.xlane.f32.xlu0 %v3750
    %v3752 = vpop.xlane.xlu0 %3751
    %v3753 = vsel %vm165, %v3741, 0.0
    %3754 = vadd.xlane.f32.xlu0 %v3753
    %v3755 = vpop.xlane.xlu0 %3754
    %v3756 = vsel %vm165, %v3742, 0.0
    %3757 = vadd.xlane.f32.xlu0 %v3756
    %v3758 = vpop.xlane.xlu0 %3757
    %v3759 = vmul.f32 %v3749, %v2454
    %v3760 = vmul.f32 %v3752, %v2454
    %v3761 = vmul.f32 %v3755, %v2454
    %v3762 = vmul.f32 %v3758, %v2454
    %v3763 = vsub.f32 %v3739, %v3759
    %v3764 = vsub.f32 %v3740, %v3760
    %v3765 = vsub.f32 %v3741, %v3761
    %v3766 = vsub.f32 %v3742, %v3762
    %v3767 = vmul.f32 %v3763, %v3763
    %v3768 = vmul.f32 %v3764, %v3764
    %v3769 = vmul.f32 %v3765, %v3765
    %v3770 = vmul.f32 %v3766, %v3766
    %v3771 = vsel %vm165, %v3767, 0.0
    %3772 = vadd.xlane.f32.xlu0 %v3771
    %v3773 = vpop.xlane.xlu0 %3772
    %v3774 = vsel %vm165, %v3768, 0.0
    %3775 = vadd.xlane.f32.xlu0 %v3774
    %v3776 = vpop.xlane.xlu0 %3775
    %v3777 = vsel %vm165, %v3769, 0.0
    %3778 = vadd.xlane.f32.xlu0 %v3777
    %v3779 = vpop.xlane.xlu0 %3778
    %v3780 = vsel %vm165, %v3770, 0.0
    %3781 = vadd.xlane.f32.xlu0 %v3780
    %v3782 = vpop.xlane.xlu0 %3781
    %v3783 = vmul.f32 %v3773, %v2454
    %v3784 = vmul.f32 %v3776, %v2454
    %v3785 = vmul.f32 %v3779, %v2454
    %v3786 = vmul.f32 %v3782, %v2454
    %v3787 = vadd.f32 %v3783, 1e-05
    %v3788 = vadd.f32 %v3784, 1e-05
    %v3789 = vadd.f32 %v3785, 1e-05
    %v3790 = vadd.f32 %v3786, 1e-05
    %v3791 = vrsqrt.pop %v3787
    %v3792 = vrsqrt.pop %v3788
    %v3793 = vrsqrt.pop %v3789
    %v3794 = vrsqrt.pop %v3790
    %v3795 = vmul.f32 %v3763, %v3791
    %v3796 = vmul.f32 %v3764, %v3792
    %v3797 = vmul.f32 %v3765, %v3793
    %v3798 = vmul.f32 %v3766, %v3794
    %v3800 = vlaneseq
    %v3801 = vshrl.u32 %v3800, 7
    %v3802 = vsub.s32 0, %v3801
    %v3803 = vrot.slane %v3744, %v3802
    %v3805 = vmul.f32 %v3795, %v3803
    %v3806 = vmul.f32 %v3796, %v3803
    %v3807 = vmul.f32 %v3797, %v3803
    %v3808 = vmul.f32 %v3798, %v3803
    %v3810 = vlaneseq
    %v3811 = vshrl.u32 %v3810, 7
    %v3812 = vsub.s32 0, %v3811
    %v3813 = vrot.slane %v3746, %v3812
    %v3815 = vadd.f32 %v3805, %v3813
    %v3816 = vadd.f32 %v3806, %v3813
    %v3817 = vadd.f32 %v3807, %v3813
    %v3818 = vadd.f32 %v3808, %v3813
    %v3819 = vpack.c.bf16 %v3816, %v3815
    %v3820 = vpack.c.bf16 %v3818, %v3817
    %s3821 = scalar_lea.vmem %s17, 4
    %v3822 = vld [vmem:[%s3821] sm:$0xf]
    %s3823 = scalar_lea.vmem %s18, 1
    %v3824 = vld [vmem:[%s3823] sm:$0x1]
    %v3826 = vlaneseq
    %v3827 = vshrl.u32 %v3826, 7
    %v3828 = vsub.s32 0, %v3827
    %v3829 = vrot.slane %v3824, %v3828
    %v3832 = vsel %vm165, %v3819, 0
    %v3835 = vsel %vm165, %v3820, 0
    %v3838 = vsel %vm169, %v3822, 0
    %3840 = vmatprep.subr.bf16.mxu0 0
    %3841 = vmatpush1.bf16.msra.mxu0 0
    %3842 = vmatprep.subr.bf16.mxu0 0
    %3843 = vmatpush1.bf16.msra.mxu0 0
    %3844 = vmatprep.subr.bf16.mxu0 0
    %3845 = vmatpush1.bf16.msra.mxu0 0
    %3846 = vmatprep.subr.bf16.mxu0 0
    %3847 = vmatpush1.bf16.msra.mxu0 0
    %3848 = vmatprep.subr.bf16.mxu0 0
    %3849 = vmatpush1.bf16.msra.mxu0 0
    %3850 = vmatprep.subr.bf16.mxu0 0
    %3851 = vmatpush1.bf16.msra.mxu0 0
    %3852 = vmatprep.subr.bf16.mxu0 0
    %3853 = vmatpush1.bf16.msra.mxu0 0
    %3854 = vmatprep.subr.bf16.mxu0 0
    %3855 = vmatpush1.bf16.msra.mxu0 %v3838
    %3856 = vmatprep.subr.bf16.mxu0 0
    %3857 = vmatpush2.bf16.msra.mxu0 0
    %3858 = vmatprep.subr.bf16.mxu0 0
    %3859 = vmatpush2.bf16.msra.mxu0 0
    %3860 = vmatprep.subr.bf16.mxu0 0
    %3861 = vmatpush2.bf16.msra.mxu0 0
    %3862 = vmatprep.subr.bf16.mxu0 0
    %3863 = vmatpush2.bf16.msra.mxu0 0
    %3864 = vmatprep.subr.bf16.mxu0 0
    %3865 = vmatpush2.bf16.msra.mxu0 0
    %3866 = vmatprep.subr.bf16.mxu0 0
    %3867 = vmatpush2.bf16.msra.mxu0 0
    %3868 = vmatprep.subr.bf16.mxu0 0
    %3869 = vmatpush2.bf16.msra.mxu0 0
    %3870 = vmatprep.subr.bf16.mxu0 0
    %3871 = vmatpush2.bf16.msra.mxu0 0
    %3872 = vmatprep.mubr.bf16.mxu0 0
    %3873 = vmatmul.mubr.bf16.gmra.mxu0 %v3832
    %v3874 = vpop.f32.mrf.mxu0
    %v3875 = vadd.f32 %v3829, %v3874
    %v3876 = vpop.f32.mrf.mxu0
    %v3877 = vpop.f32.mrf.mxu0
    %v3878 = vadd.f32 %v3829, %v3877
    %v3879 = vpop.f32.mrf.mxu0
    %3880 = vmatprep.mubr.bf16.mxu0 0
    %3881 = vmatmul.mubr.bf16.gmra.mxu0 %v3835
    %v3882 = vpop.f32.mrf.mxu0
    %v3883 = vadd.f32 %v3829, %v3882
    %v3884 = vpop.f32.mrf.mxu0
    %v3885 = vpop.f32.mrf.mxu0
    %v3886 = vadd.f32 %v3829, %v3885
    %v3887 = vpop.f32.mrf.mxu0
    %3888 = vdwg.mxu0
    %v3889 = vmax.f32 %v3875, 0.0
    %v3890 = vmax.f32 %v3878, 0.0
    %v3891 = vmax.f32 %v3883, 0.0
    %v3892 = vmax.f32 %v3886, 0.0
    %v3893 = vpack.c.bf16 %v3890, %v3889
    %v3894 = vpack.c.bf16 %v3892, %v3891
    %s3895 = scalar_lea.vmem %s19, 16
    %v3896 = vld [vmem:[%s3895] sm:$0xf]
    %v3897 = vld [vmem:[%s3895 + $0x4] sm:$0xf]
    %v3898 = vld [vmem:[%s3895 + $0x8] sm:$0xf]
    %v3899 = vld [vmem:[%s3895 + $0xc] sm:$0xf]
    %s3900 = scalar_lea.vmem %s20, 1
    %v3901 = vld [vmem:[%s3900] sm:$0x1]
    %v3903 = vlaneseq
    %v3904 = vshrl.u32 %v3903, 7
    %v3905 = vsub.s32 0, %v3904
    %v3906 = vrot.slane %v3901, %v3905
    %v3912 = vunpack.c.l.b16 %v3896
    %v3913 = vunpack.c.l.b16 %v3897
    %v3914 = vunpack.c.l.b16 %v3898
    %v3915 = vunpack.c.l.b16 %v3899
    %v3916 = vpack.c.b16 %v3913, %v3912
    %v3917 = vpack.c.b16 %v3915, %v3914
    %v3921 = vsel %vm2612, %v3893, 0
    %v3924 = vsel %vm2612, %v3894, 0
    %3926 = vmatprep.subr.bf16.mxu0 0
    %3927 = vmatpush1.bf16.msra.mxu0 0
    %3928 = vmatprep.subr.bf16.mxu0 0
    %3929 = vmatpush1.bf16.msra.mxu0 0
    %3930 = vmatprep.subr.bf16.mxu0 0
    %3931 = vmatpush1.bf16.msra.mxu0 0
    %3932 = vmatprep.subr.bf16.mxu0 0
    %3933 = vmatpush1.bf16.msra.mxu0 0
    %3934 = vmatprep.subr.bf16.mxu0 0
    %3935 = vmatpush1.bf16.msra.mxu0 0
    %3936 = vmatprep.subr.bf16.mxu0 0
    %3937 = vmatpush1.bf16.msra.mxu0 0
    %3938 = vmatprep.subr.bf16.mxu0 0
    %3939 = vmatpush1.bf16.msra.mxu0 %v3917
    %3940 = vmatprep.subr.bf16.mxu0 0
    %3941 = vmatpush1.bf16.msra.mxu0 %v3916
    %3942 = vmatprep.subr.bf16.mxu0 0
    %3943 = vmatpush2.bf16.msra.mxu0 0
    %3944 = vmatprep.subr.bf16.mxu0 0
    %3945 = vmatpush2.bf16.msra.mxu0 0
    %3946 = vmatprep.subr.bf16.mxu0 0
    %3947 = vmatpush2.bf16.msra.mxu0 0
    %3948 = vmatprep.subr.bf16.mxu0 0
    %3949 = vmatpush2.bf16.msra.mxu0 0
    %3950 = vmatprep.subr.bf16.mxu0 0
    %3951 = vmatpush2.bf16.msra.mxu0 0
    %3952 = vmatprep.subr.bf16.mxu0 0
    %3953 = vmatpush2.bf16.msra.mxu0 0
    %3954 = vmatprep.subr.bf16.mxu0 0
    %3955 = vmatpush2.bf16.msra.mxu0 0
    %3956 = vmatprep.subr.bf16.mxu0 0
    %3957 = vmatpush2.bf16.msra.mxu0 0
    %3958 = vmatprep.mubr.bf16.mxu0 0
    %3959 = vmatmul.mubr.bf16.gmra.mxu0 %v3921
    %v3960 = vpop.f32.mrf.mxu0
    %v3961 = vadd.f32 %v3906, %v3960
    %v3962 = vpop.f32.mrf.mxu0
    %v3963 = vpop.f32.mrf.mxu0
    %v3964 = vadd.f32 %v3906, %v3963
    %v3965 = vpop.f32.mrf.mxu0
    %3966 = vmatprep.mubr.bf16.mxu0 0
    %3967 = vmatmul.mubr.bf16.gmra.mxu0 %v3924
    %v3968 = vpop.f32.mrf.mxu0
    %v3969 = vadd.f32 %v3906, %v3968
    %v3970 = vpop.f32.mrf.mxu0
    %v3971 = vpop.f32.mrf.mxu0
    %v3972 = vadd.f32 %v3906, %v3971
    %v3973 = vpop.f32.mrf.mxu0
    %3974 = vdwg.mxu0
    %v3975 = vadd.f32 %v3815, %v3961
    %v3976 = vadd.f32 %v3816, %v3964
    %v3977 = vadd.f32 %v3817, %v3969
    %v3978 = vadd.f32 %v3818, %v3972
    %s3979 = scalar_lea.vmem %s23, 1
    %v3980 = vld [vmem:[%s3979] sm:$0x1]
    %s3981 = scalar_lea.vmem %s24, 1
    %v3982 = vld [vmem:[%s3981] sm:$0x1]
    %v3983 = vsel %vm165, %v3975, 0.0
    %3984 = vadd.xlane.f32.xlu0 %v3983
    %v3985 = vpop.xlane.xlu0 %3984
    %v3986 = vsel %vm165, %v3976, 0.0
    %3987 = vadd.xlane.f32.xlu0 %v3986
    %v3988 = vpop.xlane.xlu0 %3987
    %v3989 = vsel %vm165, %v3977, 0.0
    %3990 = vadd.xlane.f32.xlu0 %v3989
    %v3991 = vpop.xlane.xlu0 %3990
    %v3992 = vsel %vm165, %v3978, 0.0
    %3993 = vadd.xlane.f32.xlu0 %v3992
    %v3994 = vpop.xlane.xlu0 %3993
    %v3995 = vmul.f32 %v3985, %v2454
    %v3996 = vmul.f32 %v3988, %v2454
    %v3997 = vmul.f32 %v3991, %v2454
    %v3998 = vmul.f32 %v3994, %v2454
    %v3999 = vsub.f32 %v3975, %v3995
    %v4000 = vsub.f32 %v3976, %v3996
    %v4001 = vsub.f32 %v3977, %v3997
    %v4002 = vsub.f32 %v3978, %v3998
    %v4003 = vmul.f32 %v3999, %v3999
    %v4004 = vmul.f32 %v4000, %v4000
    %v4005 = vmul.f32 %v4001, %v4001
    %v4006 = vmul.f32 %v4002, %v4002
    %v4007 = vsel %vm165, %v4003, 0.0
    %4008 = vadd.xlane.f32.xlu0 %v4007
    %v4009 = vpop.xlane.xlu0 %4008
    %v4010 = vsel %vm165, %v4004, 0.0
    %4011 = vadd.xlane.f32.xlu0 %v4010
    %v4012 = vpop.xlane.xlu0 %4011
    %v4013 = vsel %vm165, %v4005, 0.0
    %4014 = vadd.xlane.f32.xlu0 %v4013
    %v4015 = vpop.xlane.xlu0 %4014
    %v4016 = vsel %vm165, %v4006, 0.0
    %4017 = vadd.xlane.f32.xlu0 %v4016
    %v4018 = vpop.xlane.xlu0 %4017
    %v4019 = vmul.f32 %v4009, %v2454
    %v4020 = vmul.f32 %v4012, %v2454
    %v4021 = vmul.f32 %v4015, %v2454
    %v4022 = vmul.f32 %v4018, %v2454
    %v4023 = vadd.f32 %v4019, 1e-05
    %v4024 = vadd.f32 %v4020, 1e-05
    %v4025 = vadd.f32 %v4021, 1e-05
    %v4026 = vadd.f32 %v4022, 1e-05
    %v4027 = vrsqrt.pop %v4023
    %v4028 = vrsqrt.pop %v4024
    %v4029 = vrsqrt.pop %v4025
    %v4030 = vrsqrt.pop %v4026
    %v4031 = vmul.f32 %v3999, %v4027
    %v4032 = vmul.f32 %v4000, %v4028
    %v4033 = vmul.f32 %v4001, %v4029
    %v4034 = vmul.f32 %v4002, %v4030
    %v4036 = vlaneseq
    %v4037 = vshrl.u32 %v4036, 7
    %v4038 = vsub.s32 0, %v4037
    %v4039 = vrot.slane %v3980, %v4038
    %v4041 = vmul.f32 %v4031, %v4039
    %v4042 = vmul.f32 %v4032, %v4039
    %v4043 = vmul.f32 %v4033, %v4039
    %v4044 = vmul.f32 %v4034, %v4039
    %v4046 = vlaneseq
    %v4047 = vshrl.u32 %v4046, 7
    %v4048 = vsub.s32 0, %v4047
    %v4049 = vrot.slane %v3982, %v4048
    %v4051 = vadd.f32 %v4041, %v4049
    %v4052 = vadd.f32 %v4042, %v4049
    %v4053 = vadd.f32 %v4043, %v4049
    %v4054 = vadd.f32 %v4044, %v4049
    %v4055 = vpack.c.bf16 %v4052, %v4051
    %v4056 = vpack.c.bf16 %v4054, %v4053
    %v4057 = vld [vmem:[%s25] sm:$0xf]
    %v4058 = vld [vmem:[%s26] sm:$0x1]
    %v4060 = vlaneseq
    %v4061 = vshrl.u32 %v4060, 7
    %v4062 = vsub.s32 0, %v4061
    %v4063 = vrot.slane %v4058, %v4062
    %v4066 = vsel %vm165, %v4055, 0
    %v4069 = vsel %vm165, %v4056, 0
    %v4072 = vsel %vm169, %v4057, 0
    %4074 = vmatprep.subr.bf16.mxu0 0
    %4075 = vmatpush1.bf16.msra.mxu0 0
    %4076 = vmatprep.subr.bf16.mxu0 0
    %4077 = vmatpush1.bf16.msra.mxu0 0
    %4078 = vmatprep.subr.bf16.mxu0 0
    %4079 = vmatpush1.bf16.msra.mxu0 0
    %4080 = vmatprep.subr.bf16.mxu0 0
    %4081 = vmatpush1.bf16.msra.mxu0 0
    %4082 = vmatprep.subr.bf16.mxu0 0
    %4083 = vmatpush1.bf16.msra.mxu0 0
    %4084 = vmatprep.subr.bf16.mxu0 0
    %4085 = vmatpush1.bf16.msra.mxu0 0
    %4086 = vmatprep.subr.bf16.mxu0 0
    %4087 = vmatpush1.bf16.msra.mxu0 0
    %4088 = vmatprep.subr.bf16.mxu0 0
    %4089 = vmatpush1.bf16.msra.mxu0 %v4072
    %4090 = vmatprep.subr.bf16.mxu0 0
    %4091 = vmatpush2.bf16.msra.mxu0 0
    %4092 = vmatprep.subr.bf16.mxu0 0
    %4093 = vmatpush2.bf16.msra.mxu0 0
    %4094 = vmatprep.subr.bf16.mxu0 0
    %4095 = vmatpush2.bf16.msra.mxu0 0
    %4096 = vmatprep.subr.bf16.mxu0 0
    %4097 = vmatpush2.bf16.msra.mxu0 0
    %4098 = vmatprep.subr.bf16.mxu0 0
    %4099 = vmatpush2.bf16.msra.mxu0 0
    %4100 = vmatprep.subr.bf16.mxu0 0
    %4101 = vmatpush2.bf16.msra.mxu0 0
    %4102 = vmatprep.subr.bf16.mxu0 0
    %4103 = vmatpush2.bf16.msra.mxu0 0
    %4104 = vmatprep.subr.bf16.mxu0 0
    %4105 = vmatpush2.bf16.msra.mxu0 0
    %4106 = vmatprep.mubr.bf16.mxu0 0
    %4107 = vmatmul.mubr.bf16.gmra.mxu0 %v4066
    %v4108 = vpop.f32.mrf.mxu0
    %v4109 = vadd.f32 %v4063, %v4108
    %v4110 = vpop.f32.mrf.mxu0
    %v4111 = vpop.f32.mrf.mxu0
    %v4112 = vadd.f32 %v4063, %v4111
    %v4113 = vpop.f32.mrf.mxu0
    %4114 = vmatprep.mubr.bf16.mxu0 0
    %4115 = vmatmul.mubr.bf16.gmra.mxu0 %v4069
    %v4116 = vpop.f32.mrf.mxu0
    %v4117 = vadd.f32 %v4063, %v4116
    %v4118 = vpop.f32.mrf.mxu0
    %v4119 = vpop.f32.mrf.mxu0
    %v4120 = vadd.f32 %v4063, %v4119
    %v4121 = vpop.f32.mrf.mxu0
    %4122 = vdwg.mxu0
    %4123 = vst.msk [vmem:[%s27] sm:$0xff] %vm1520, %v4109
    %4124 = vst.msk [vmem:[%s27 + $0x8] sm:$0xff] %vm1520, %v4112
    %4125 = vst.msk [vmem:[%s27 + $0x10] sm:$0xff] %vm1520, %v4117
    %4126 = vst.msk [vmem:[%s27 + $0x18] sm:$0xff] %vm1520, %v4120
    // Predicated region
    $region122: #{forward.1} parent=1 // pred_check
      _
    $region123: #{forward.1} parent=1 // pred_check_branch
      %4128 = sbr.rel (0) target = $region125
    $region124: #{forward.1} parent=1 // pred_region
      _
    $region125: #{forward.1} parent=1 // pred_fallthru
      _
    // Predicated region
    $region126: #{forward.1} parent=1 // pred_check
      _
    $region127: #{forward.1} parent=1 // pred_check_branch
      %4130 = sbr.rel (0) target = $region129
    $region128: #{forward.1} parent=1 // pred_region
      _
    $region129: #{forward.1} parent=1 // pred_fallthru
      _
    %4131 = vsyncpa [#allocation3], 1
    %4132 = vsyncpa [#allocation4], 1
    %4133 = vsyncpa [#allocation6], 1

</llo_original>
